<compile_context>
chip_gen: v7x
topology: tpu7x:2x2x1
jax: 0.10.0
libtpu: 0.0.40
codegen_flags: <defaults>
</compile_context>

<pallas_src>
import functools

import numpy as np
import jax
import jax.numpy as jnp
from jax import lax
from jax.experimental import pallas as pl
from jax.experimental.pallas import tpu as pltpu

# ----------------------------------------------------------------------------
# Deterministic constants (mirroring the module-level torch setup)
# ----------------------------------------------------------------------------
DX = 5.0
DT = 0.5
BETA = 4.0
G_Z = 9.81
RHO = 1.0 / G_Z
EPSILON_ETA = 1e-4

INV_DX2 = 1.0 / (DX * DX)
INV_2DX = 1.0 / (2.0 * DX)

# In-script deterministic stencils (documentation of the factorized forms used
# inside the kernel):  diff = Laplacian, xadv/yadv = central diff, cmm = mean.
W_DIFF = np.array([[1., 1., 1.], [1., -8., 1.], [1., 1., 1.]], np.float32) * INV_DX2
W_XADV = np.array([[0., 0., 0.], [-1., 0., 1.], [0., 0., 0.]], np.float32) * INV_2DX
W_YADV = np.array([[0., -1., 0.], [0., 0., 0.], [0., 1., 0.]], np.float32) * INV_2DX
W_CMM = np.ones((3, 3), np.float32) / 9.0
DIAG = float(-W_DIFF[1, 1])          # diag = -w1[0, 0, 1, 1]  (= 8 / dx^2)


def _round_up(x, m):
    return (x + m - 1) // m * m


# ----------------------------------------------------------------------------
# Fused SWE-step kernel
# ----------------------------------------------------------------------------
def _make_swe_kernel(ny, nx, nyp, nxp):
    """Kernel over (nyp, nxp) padded-layout fields; physical cell (r,c)->(r+1,c+1)."""

    # result[i, j] = x[i + dr, j + dc]; wrap-around only touches the pad/ring,
    # which is never read when producing physical-region values.
    def _sh(x, dr, dc):
        if dr:
            x = pltpu.roll(x, (-dr) % nyp, axis=0)
        if dc:
            x = pltpu.roll(x, (-dc) % nxp, axis=1)
        return x

    def _box3(f):                       # 3x3 box sum (separable: 4 rolls, 4 adds)
        rs = f + _sh(f, 0, -1) + _sh(f, 0, 1)
        return rs + _sh(rs, -1, 0) + _sh(rs, 1, 0)

    def _diff(f):                       # Laplacian: (box - 9*center) / dx^2
        return (_box3(f) - 9.0 * f) * INV_DX2

    def _xadv(f):
        return (_sh(f, 0, 1) - _sh(f, 0, -1)) * INV_2DX

    def _yadv(f):
        return (_sh(f, 1, 0) - _sh(f, -1, 0)) * INV_2DX

    def _cmm(f):
        return _box3(f) * (1.0 / 9.0)

    def _grad_all(f):                   # diff, xadv, yadv sharing the rolls
        fl = _sh(f, 0, -1)
        fr = _sh(f, 0, 1)
        rs = f + fl + fr
        box = rs + _sh(rs, -1, 0) + _sh(rs, 1, 0)
        d = (box - 9.0 * f) * INV_DX2
        gx = (fr - fl) * INV_2DX
        gy = (_sh(f, 1, 0) - _sh(f, -1, 0)) * INV_2DX
        return d, gx, gy

    def kernel(u_ref, v_ref, h_big_ref, h_ref, hh_ref, difh_ref,
               k1_ref, k2_ref, k3_ref, src_ref,
               u_out, v_out, h_out, hh_out, b_out, difh_out, sq_out):
        row = lax.broadcasted_iota(jnp.int32, (nyp, nxp), 0)
        col = lax.broadcasted_iota(jnp.int32, (nyp, nxp), 1)
        interior = (row >= 1) & (row <= ny) & (col >= 1) & (col <= nx)

        def mask(f):                    # zero ring + pad (keeps pad NaN-free)
            return jnp.where(interior, f, 0.0)

        bc_eta = mask                   # zero Dirichlet ring

        def bc_u(f):                    # zero side columns, replicate top/bottom rows
            g = mask(f)
            g = jnp.where(row == 0, _sh(g, 1, 0), g)         # row 0     <- row 1
            g = jnp.where(row == ny + 1, _sh(g, -1, 0), g)   # row ny+1  <- row ny
            return g

        def bc_v(f):                    # replicate side columns, zero top/bottom rows
            g = mask(f)
            g = jnp.where(col == 0, _sh(g, 0, 1), g)         # col 0     <- col 1
            g = jnp.where(col == nx + 1, _sh(g, 0, -1), g)   # col nx+1  <- col nx
            return jnp.where((row == 0) | (row == ny + 1), 0.0, g)

        def pg_k(d, gx, gy, u, v):      # Petrov-Galerkin limiter coefficient
            num = (0.25 * DX * 0.5 * INV_DX2) * jnp.abs((jnp.abs(u) + jnp.abs(v)) * DX * d)
            den = 0.001 + (jnp.abs(gx) + jnp.abs(gy)) * (0.5 * INV_DX2)
            return num * pl.reciprocal(den, approx=True)

        u = u_ref[...]
        v = v_ref[...]
        h_big = h_big_ref[...]
        h = h_ref[...]
        hh = hh_ref[...]
        difh = difh_ref[...]
        k1 = k1_ref[...]
        k2 = k2_ref[...]
        k3 = k3_ref[...]
        src = src_ref[...]

        # ------------------------------ predictor ------------------------------
        uu = bc_u(u)
        vv = bc_v(v)
        d_uu, gx_uu, gy_uu = _grad_all(uu)
        d_vv, gx_vv, gy_vv = _grad_all(vv)
        k_u = pg_k(d_uu, gx_uu, gy_uu, u, v)
        k_v = pg_k(d_vv, gx_vv, gy_vv, u, v)
        k_uu = bc_eta(jnp.minimum(k_u, k3))
        k_vv = bc_eta(jnp.minimum(k_v, k3))
        k_x = 0.5 * (k_u * d_uu + _diff(uu * k_uu) - u * _diff(k_uu))
        k_y = 0.5 * (k_v * d_vv + _diff(vv * k_vv) - v * _diff(k_vv))

        b_u = (k_x * DT - u * gx_uu * DT - v * gy_uu * DT) * 0.5 + u
        b_v = (k_y * DT - u * gx_vv * DT - v * gy_vv * DT) * 0.5 + v

        hp = bc_eta(h)
        gxh = _xadv(hp)
        gyh = _yadv(hp)
        b_u = b_u - gxh * DT
        b_v = b_v - gyh * DT

        b_uu = bc_u(b_u)
        b_vv = bc_v(b_v)

        hh_tot = h_big + h                                   # values_H + values_h
        denom_base = jnp.maximum(k1, DX * _cmm(bc_eta(hh_tot)) * 0.01 + hh_tot * 0.99)
        denom = jnp.exp(jnp.log(jnp.maximum(denom_base, 1e-30)) * (4.0 / 3.0))
        sigma_q = jnp.sqrt(b_u * b_u + b_v * b_v) * (0.055 ** 2) / denom
        fric = pl.reciprocal(1.0 + sigma_q * (DT / RHO), approx=True)
        b_u = b_u * fric
        b_v = b_v * fric

        # ------------------------------ corrector ------------------------------
        d_buu, gx_buu, gy_buu = _grad_all(b_uu)
        d_bvv, gx_bvv, gy_bvv = _grad_all(b_vv)
        k_u2 = pg_k(d_buu, gx_buu, gy_buu, b_u, b_v)
        k_v2 = pg_k(d_bvv, gx_bvv, gy_bvv, b_u, b_v)
        k_uu2 = bc_eta(jnp.minimum(k_u2, k3))
        k_vv2 = bc_eta(jnp.minimum(k_v2, k3))
        k_x2 = 0.5 * (k_u2 * d_buu + _diff(b_uu * k_uu2) - b_u * _diff(k_uu2))
        k_y2 = 0.5 * (k_v2 * d_bvv + _diff(b_vv * k_vv2) - b_v * _diff(k_vv2))

        u_n = u + k_x2 * DT - b_u * gx_buu * DT - b_v * gy_buu * DT
        v_n = v + k_y2 * DT - b_u * gx_bvv * DT - b_v * gy_bvv * DT
        u_n = u_n - gxh * DT
        v_n = v_n - gyh * DT

        sigma_q = jnp.sqrt(u_n * u_n + v_n * v_n) * (0.055 ** 2) / denom
        fric2 = pl.reciprocal(1.0 + sigma_q * (DT / RHO), approx=True)
        u_n = u_n * fric2
        v_n = v_n * fric2

        uu2 = bc_u(u_n)
        vv2 = bc_v(v_n)

        # --------------------- pressure / surface elevation --------------------
        eta1 = jnp.maximum(k2, hh_tot)
        eta2 = jnp.maximum(k1, hh_tot)
        eta1_p = bc_eta(eta1)
        d_e1, gx_e1, gy_e1 = _grad_all(eta1_p)               # shared with PG_scalar
        gx_uu2 = _xadv(uu2)
        gy_vv2 = _yadv(vv2)

        k_s = pg_k(d_e1, gx_e1, gy_e1, u_n, v_n)
        k_su = bc_eta(jnp.minimum(k_s, k3))
        pg_s = 0.5 * (k_s * d_e1 + _diff(eta1_p * k_su) - eta1 * _diff(k_su))

        cmm_dif = _cmm(bc_eta(difh))
        b = (BETA * RHO) * (-gx_e1 * u_n - gy_e1 * v_n
                            - eta1 * gx_uu2 - eta1 * gy_vv2
                            + pg_s - cmm_dif * (1.0 / DT) + src) / (DT * eta2)

        # -------------------- two in-VMEM Jacobi sweeps -------------------------
        c_eta = (BETA * RHO / (DT * DT)) / eta2
        inv_jac = 1.0 / (DIAG + c_eta)
        hh_c = hh
        for _ in range(2):
            d_hh = _diff(bc_eta(hh_c))
            hh_c = hh_c - (-d_hh + c_eta * hh_c) * inv_jac + b * inv_jac

        h_n = h + hh_c
        dif_n = h_n - h

        hhp = bc_eta(hh_c)
        u_n = u_n - _xadv(hhp) * (DT / RHO)
        v_n = v_n - _yadv(hhp) * (DT / RHO)

        # lane-dense, interior-masked stores (pad region written as zeros)
        u_out[...] = mask(u_n)
        v_out[...] = mask(v_n)
        h_out[...] = mask(h_n)
        hh_out[...] = mask(hh_c)
        b_out[...] = mask(b)
        difh_out[...] = mask(dif_n)
        sq_out[...] = mask(sigma_q)

    return kernel


# ----------------------------------------------------------------------------
# Wrapper: embed (ny, nx) fields in an aligned padded layout, run fused kernel
# ----------------------------------------------------------------------------
def ai4swe_forward(values_u, values_v, values_H, values_h, values_hh,
                   dif_values_h, k1, k2, k3, source_h):
    ny, nx = values_u.shape
    nyp = _round_up(ny + 2, 8)       # sublane-aligned
    nxp = _round_up(nx + 2, 128)     # lane-aligned (lane-dense stores)

    def embed(f):
        f = jnp.asarray(f, jnp.float32)
        return jnp.pad(f, ((1, nyp - ny - 1), (1, nxp - nx - 1)))

    fields = [embed(a) for a in (values_u, values_v, values_H, values_h,
                                 values_hh, dif_values_h, k1, k2, k3, source_h)]

    full_spec = pl.BlockSpec((nyp, nxp), lambda i: (0, 0))
    out_shape = tuple(jax.ShapeDtypeStruct((nyp, nxp), jnp.float32) for _ in range(7))

    outs = pl.pallas_call(
        _make_swe_kernel(ny, nx, nyp, nxp),
        out_shape=out_shape,
        grid=(1,),
        in_specs=[full_spec] * 10,
        out_specs=tuple([full_spec] * 7),
        # update the state fields (u, v, h, hh, dif_h) in place in HBM
        input_output_aliases={0: 0, 1: 1, 3: 2, 4: 3, 5: 5},
        compiler_params=pltpu.CompilerParams(
            dimension_semantics=("arbitrary",),
            vmem_limit_bytes=64 * 1024 * 1024),
    )(*fields)

    crop = lambda a: a[1:ny + 1, 1:nx + 1]
    return tuple(crop(o) for o in outs)


# ----------------------------------------------------------------------------
if __name__ == "__main__":
    ny, nx = 16, 16   # small demo shapes (reference model uses ny=611, nx=951)
    key = jax.random.PRNGKey(0)
    ks = jax.random.split(key, 7)

    values_u = 0.10 * jax.random.normal(ks[0], (ny, nx), jnp.float32)
    values_v = 0.10 * jax.random.normal(ks[1], (ny, nx), jnp.float32)
    values_H = 1.00 + 0.10 * jax.random.normal(ks[2], (ny, nx), jnp.float32)
    values_h = 0.05 * jax.random.normal(ks[3], (ny, nx), jnp.float32)
    values_hh = 0.01 * jax.random.normal(ks[4], (ny, nx), jnp.float32)
    dif_values_h = 0.01 * jax.random.normal(ks[5], (ny, nx), jnp.float32)
    source_h = 0.01 * jax.random.normal(ks[6], (ny, nx), jnp.float32)
    k1 = jnp.full((ny, nx), EPSILON_ETA, jnp.float32)
    k2 = jnp.zeros((ny, nx), jnp.float32)
    k3 = jnp.full((ny, nx), DX * DX * 0.5 / DT, jnp.float32)

    fwd = jax.jit(ai4swe_forward)
    out = fwd(values_u, values_v, values_H, values_h, values_hh,
              dif_values_h, k1, k2, k3, source_h)
    out = jax.block_until_ready(out)
    assert all(o.shape == (ny, nx) for o in out)
    assert all(bool(jnp.all(jnp.isfinite(o))) for o in out)
    print("KERNEL_OK")
</pallas_src>

<mosaic_0001>
module attributes {stable_mosaic.version = 11 : i64} {
  func.func @kernel(%arg0: i32, %arg1: memref<24x128xf32, #tpu.memory_space<vmem>>, %arg2: memref<24x128xf32, #tpu.memory_space<vmem>>, %arg3: memref<24x128xf32, #tpu.memory_space<vmem>>, %arg4: memref<24x128xf32, #tpu.memory_space<vmem>>, %arg5: memref<24x128xf32, #tpu.memory_space<vmem>>, %arg6: memref<24x128xf32, #tpu.memory_space<vmem>>, %arg7: memref<24x128xf32, #tpu.memory_space<vmem>>, %arg8: memref<24x128xf32, #tpu.memory_space<vmem>>, %arg9: memref<24x128xf32, #tpu.memory_space<vmem>>, %arg10: memref<24x128xf32, #tpu.memory_space<vmem>>, %arg11: memref<24x128xf32, #tpu.memory_space<vmem>>, %arg12: memref<24x128xf32, #tpu.memory_space<vmem>>, %arg13: memref<24x128xf32, #tpu.memory_space<vmem>>, %arg14: memref<24x128xf32, #tpu.memory_space<vmem>>, %arg15: memref<24x128xf32, #tpu.memory_space<vmem>>, %arg16: memref<24x128xf32, #tpu.memory_space<vmem>>, %arg17: memref<24x128xf32, #tpu.memory_space<vmem>>) attributes {dimension_semantics = [#tpu.dimension_semantics<arbitrary>], iteration_bounds = array<i64: 1>, scalar_prefetch = 0 : i64, scratch_operands = 0 : i64, tpu.core_type = #tpu.core_type<tc>, window_params = [{pipeline_mode = #tpu.pipeline_mode<synchronous>, transform_indices = @transform_0, window_bounds = array<i64: 24, 128>}, {pipeline_mode = #tpu.pipeline_mode<synchronous>, transform_indices = @transform_1, window_bounds = array<i64: 24, 128>}, {pipeline_mode = #tpu.pipeline_mode<synchronous>, transform_indices = @transform_2, window_bounds = array<i64: 24, 128>}, {pipeline_mode = #tpu.pipeline_mode<synchronous>, transform_indices = @transform_3, window_bounds = array<i64: 24, 128>}, {pipeline_mode = #tpu.pipeline_mode<synchronous>, transform_indices = @transform_4, window_bounds = array<i64: 24, 128>}, {pipeline_mode = #tpu.pipeline_mode<synchronous>, transform_indices = @transform_5, window_bounds = array<i64: 24, 128>}, {pipeline_mode = #tpu.pipeline_mode<synchronous>, transform_indices = @transform_6, window_bounds = array<i64: 24, 128>}, {pipeline_mode = #tpu.pipeline_mode<synchronous>, transform_indices = @transform_7, window_bounds = array<i64: 24, 128>}, {pipeline_mode = #tpu.pipeline_mode<synchronous>, transform_indices = @transform_8, window_bounds = array<i64: 24, 128>}, {pipeline_mode = #tpu.pipeline_mode<synchronous>, transform_indices = @transform_9, window_bounds = array<i64: 24, 128>}, {pipeline_mode = #tpu.pipeline_mode<synchronous>, transform_indices = @transform_10, window_bounds = array<i64: 24, 128>}, {pipeline_mode = #tpu.pipeline_mode<synchronous>, transform_indices = @transform_11, window_bounds = array<i64: 24, 128>}, {pipeline_mode = #tpu.pipeline_mode<synchronous>, transform_indices = @transform_12, window_bounds = array<i64: 24, 128>}, {pipeline_mode = #tpu.pipeline_mode<synchronous>, transform_indices = @transform_13, window_bounds = array<i64: 24, 128>}, {pipeline_mode = #tpu.pipeline_mode<synchronous>, transform_indices = @transform_14, window_bounds = array<i64: 24, 128>}, {pipeline_mode = #tpu.pipeline_mode<synchronous>, transform_indices = @transform_15, window_bounds = array<i64: 24, 128>}, {pipeline_mode = #tpu.pipeline_mode<synchronous>, transform_indices = @transform_16, window_bounds = array<i64: 24, 128>}]} {
    %0 = tpu.iota {dimensions = array<i32: 0>} : vector<24x128xi32>
    %1 = tpu.iota {dimensions = array<i32: 1>} : vector<24x128xi32>
    %c1_i32 = arith.constant 1 : i32
    %2 = vector.broadcast %c1_i32 : i32 to vector<24x128xi32>
    %3 = arith.cmpi sge, %0, %2 : vector<24x128xi32>
    %c16_i32 = arith.constant 16 : i32
    %4 = vector.broadcast %c16_i32 : i32 to vector<24x128xi32>
    %5 = arith.cmpi sle, %0, %4 : vector<24x128xi32>
    %6 = arith.andi %3, %5 : vector<24x128xi1>
    %c1_i32_0 = arith.constant 1 : i32
    %7 = vector.broadcast %c1_i32_0 : i32 to vector<24x128xi32>
    %8 = arith.cmpi sge, %1, %7 : vector<24x128xi32>
    %9 = arith.andi %6, %8 : vector<24x128xi1>
    %c16_i32_1 = arith.constant 16 : i32
    %10 = vector.broadcast %c16_i32_1 : i32 to vector<24x128xi32>
    %11 = arith.cmpi sle, %1, %10 : vector<24x128xi32>
    %12 = arith.andi %9, %11 : vector<24x128xi1>
    %c0 = arith.constant 0 : index
    %c0_2 = arith.constant 0 : index
    %13 = vector.load %arg1[%c0, %c0_2] : memref<24x128xf32, #tpu.memory_space<vmem>>, vector<24x128xf32>
    %c0_3 = arith.constant 0 : index
    %c0_4 = arith.constant 0 : index
    %14 = vector.load %arg2[%c0_3, %c0_4] : memref<24x128xf32, #tpu.memory_space<vmem>>, vector<24x128xf32>
    %c0_5 = arith.constant 0 : index
    %c0_6 = arith.constant 0 : index
    %15 = vector.load %arg3[%c0_5, %c0_6] : memref<24x128xf32, #tpu.memory_space<vmem>>, vector<24x128xf32>
    %c0_7 = arith.constant 0 : index
    %c0_8 = arith.constant 0 : index
    %16 = vector.load %arg4[%c0_7, %c0_8] : memref<24x128xf32, #tpu.memory_space<vmem>>, vector<24x128xf32>
    %c0_9 = arith.constant 0 : index
    %c0_10 = arith.constant 0 : index
    %17 = vector.load %arg5[%c0_9, %c0_10] : memref<24x128xf32, #tpu.memory_space<vmem>>, vector<24x128xf32>
    %c0_11 = arith.constant 0 : index
    %c0_12 = arith.constant 0 : index
    %18 = vector.load %arg6[%c0_11, %c0_12] : memref<24x128xf32, #tpu.memory_space<vmem>>, vector<24x128xf32>
    %c0_13 = arith.constant 0 : index
    %c0_14 = arith.constant 0 : index
    %19 = vector.load %arg7[%c0_13, %c0_14] : memref<24x128xf32, #tpu.memory_space<vmem>>, vector<24x128xf32>
    %c0_15 = arith.constant 0 : index
    %c0_16 = arith.constant 0 : index
    %20 = vector.load %arg8[%c0_15, %c0_16] : memref<24x128xf32, #tpu.memory_space<vmem>>, vector<24x128xf32>
    %c0_17 = arith.constant 0 : index
    %c0_18 = arith.constant 0 : index
    %21 = vector.load %arg9[%c0_17, %c0_18] : memref<24x128xf32, #tpu.memory_space<vmem>>, vector<24x128xf32>
    %c0_19 = arith.constant 0 : index
    %c0_20 = arith.constant 0 : index
    %22 = vector.load %arg10[%c0_19, %c0_20] : memref<24x128xf32, #tpu.memory_space<vmem>>, vector<24x128xf32>
    %cst = arith.constant 0.000000e+00 : f32
    %23 = vector.broadcast %cst : f32 to vector<24x128xf32>
    %24 = arith.select %12, %13, %23 : vector<24x128xi1>, vector<24x128xf32>
    %c0_i32 = arith.constant 0 : i32
    %25 = vector.broadcast %c0_i32 : i32 to vector<24x128xi32>
    %26 = arith.cmpi eq, %0, %25 : vector<24x128xi32>
    %c23_i32 = arith.constant 23 : i32
    %27 = tpu.dynamic_rotate %24 by %c23_i32 dim 0 : vector<24x128xf32>, i32 -> vector<24x128xf32>
    %28 = arith.select %26, %27, %24 : vector<24x128xi1>, vector<24x128xf32>
    %c17_i32 = arith.constant 17 : i32
    %29 = vector.broadcast %c17_i32 : i32 to vector<24x128xi32>
    %30 = arith.cmpi eq, %0, %29 : vector<24x128xi32>
    %c1_i32_21 = arith.constant 1 : i32
    %31 = tpu.dynamic_rotate %28 by %c1_i32_21 dim 0 : vector<24x128xf32>, i32 -> vector<24x128xf32>
    %32 = arith.select %30, %31, %28 : vector<24x128xi1>, vector<24x128xf32>
    %cst_22 = arith.constant 0.000000e+00 : f32
    %33 = vector.broadcast %cst_22 : f32 to vector<24x128xf32>
    %34 = arith.select %12, %14, %33 : vector<24x128xi1>, vector<24x128xf32>
    %c0_i32_23 = arith.constant 0 : i32
    %35 = vector.broadcast %c0_i32_23 : i32 to vector<24x128xi32>
    %36 = arith.cmpi eq, %1, %35 : vector<24x128xi32>
    %c127_i32 = arith.constant 127 : i32
    %37 = tpu.dynamic_rotate %34 by %c127_i32 dim 1 : vector<24x128xf32>, i32 -> vector<24x128xf32>
    %38 = arith.select %36, %37, %34 : vector<24x128xi1>, vector<24x128xf32>
    %c17_i32_24 = arith.constant 17 : i32
    %39 = vector.broadcast %c17_i32_24 : i32 to vector<24x128xi32>
    %40 = arith.cmpi eq, %1, %39 : vector<24x128xi32>
    %c1_i32_25 = arith.constant 1 : i32
    %41 = tpu.dynamic_rotate %38 by %c1_i32_25 dim 1 : vector<24x128xf32>, i32 -> vector<24x128xf32>
    %42 = arith.select %40, %41, %38 : vector<24x128xi1>, vector<24x128xf32>
    %c0_i32_26 = arith.constant 0 : i32
    %43 = vector.broadcast %c0_i32_26 : i32 to vector<24x128xi32>
    %44 = arith.cmpi eq, %0, %43 : vector<24x128xi32>
    %c17_i32_27 = arith.constant 17 : i32
    %45 = vector.broadcast %c17_i32_27 : i32 to vector<24x128xi32>
    %46 = arith.cmpi eq, %0, %45 : vector<24x128xi32>
    %47 = arith.ori %44, %46 : vector<24x128xi1>
    %cst_28 = arith.constant 0.000000e+00 : f32
    %48 = vector.broadcast %cst_28 : f32 to vector<24x128xf32>
    %49 = arith.select %47, %48, %42 : vector<24x128xi1>, vector<24x128xf32>
    %c1_i32_29 = arith.constant 1 : i32
    %50 = tpu.dynamic_rotate %32 by %c1_i32_29 dim 1 : vector<24x128xf32>, i32 -> vector<24x128xf32>
    %c127_i32_30 = arith.constant 127 : i32
    %51 = tpu.dynamic_rotate %32 by %c127_i32_30 dim 1 : vector<24x128xf32>, i32 -> vector<24x128xf32>
    %52 = arith.addf %32, %50 : vector<24x128xf32>
    %53 = arith.addf %52, %51 : vector<24x128xf32>
    %c1_i32_31 = arith.constant 1 : i32
    %54 = tpu.dynamic_rotate %53 by %c1_i32_31 dim 0 : vector<24x128xf32>, i32 -> vector<24x128xf32>
    %55 = arith.addf %53, %54 : vector<24x128xf32>
    %c23_i32_32 = arith.constant 23 : i32
    %56 = tpu.dynamic_rotate %53 by %c23_i32_32 dim 0 : vector<24x128xf32>, i32 -> vector<24x128xf32>
    %57 = arith.addf %55, %56 : vector<24x128xf32>
    %cst_33 = arith.constant 9.000000e+00 : f32
    %58 = vector.broadcast %cst_33 : f32 to vector<24x128xf32>
    %59 = arith.mulf %58, %32 : vector<24x128xf32>
    %60 = arith.subf %57, %59 : vector<24x128xf32>
    %cst_34 = arith.constant 4.000000e-02 : f32
    %61 = vector.broadcast %cst_34 : f32 to vector<24x128xf32>
    %62 = arith.mulf %60, %61 : vector<24x128xf32>
    %63 = arith.subf %51, %50 : vector<24x128xf32>
    %cst_35 = arith.constant 1.000000e-01 : f32
    %64 = vector.broadcast %cst_35 : f32 to vector<24x128xf32>
    %65 = arith.mulf %63, %64 : vector<24x128xf32>
    %c23_i32_36 = arith.constant 23 : i32
    %66 = tpu.dynamic_rotate %32 by %c23_i32_36 dim 0 : vector<24x128xf32>, i32 -> vector<24x128xf32>
    %c1_i32_37 = arith.constant 1 : i32
    %67 = tpu.dynamic_rotate %32 by %c1_i32_37 dim 0 : vector<24x128xf32>, i32 -> vector<24x128xf32>
    %68 = arith.subf %66, %67 : vector<24x128xf32>
    %cst_38 = arith.constant 1.000000e-01 : f32
    %69 = vector.broadcast %cst_38 : f32 to vector<24x128xf32>
    %70 = arith.mulf %68, %69 : vector<24x128xf32>
    %c1_i32_39 = arith.constant 1 : i32
    %71 = tpu.dynamic_rotate %49 by %c1_i32_39 dim 1 : vector<24x128xf32>, i32 -> vector<24x128xf32>
    %c127_i32_40 = arith.constant 127 : i32
    %72 = tpu.dynamic_rotate %49 by %c127_i32_40 dim 1 : vector<24x128xf32>, i32 -> vector<24x128xf32>
    %73 = arith.addf %49, %71 : vector<24x128xf32>
    %74 = arith.addf %73, %72 : vector<24x128xf32>
    %c1_i32_41 = arith.constant 1 : i32
    %75 = tpu.dynamic_rotate %74 by %c1_i32_41 dim 0 : vector<24x128xf32>, i32 -> vector<24x128xf32>
    %76 = arith.addf %74, %75 : vector<24x128xf32>
    %c23_i32_42 = arith.constant 23 : i32
    %77 = tpu.dynamic_rotate %74 by %c23_i32_42 dim 0 : vector<24x128xf32>, i32 -> vector<24x128xf32>
    %78 = arith.addf %76, %77 : vector<24x128xf32>
    %cst_43 = arith.constant 9.000000e+00 : f32
    %79 = vector.broadcast %cst_43 : f32 to vector<24x128xf32>
    %80 = arith.mulf %79, %49 : vector<24x128xf32>
    %81 = arith.subf %78, %80 : vector<24x128xf32>
    %cst_44 = arith.constant 4.000000e-02 : f32
    %82 = vector.broadcast %cst_44 : f32 to vector<24x128xf32>
    %83 = arith.mulf %81, %82 : vector<24x128xf32>
    %84 = arith.subf %72, %71 : vector<24x128xf32>
    %cst_45 = arith.constant 1.000000e-01 : f32
    %85 = vector.broadcast %cst_45 : f32 to vector<24x128xf32>
    %86 = arith.mulf %84, %85 : vector<24x128xf32>
    %c23_i32_46 = arith.constant 23 : i32
    %87 = tpu.dynamic_rotate %49 by %c23_i32_46 dim 0 : vector<24x128xf32>, i32 -> vector<24x128xf32>
    %c1_i32_47 = arith.constant 1 : i32
    %88 = tpu.dynamic_rotate %49 by %c1_i32_47 dim 0 : vector<24x128xf32>, i32 -> vector<24x128xf32>
    %89 = arith.subf %87, %88 : vector<24x128xf32>
    %cst_48 = arith.constant 1.000000e-01 : f32
    %90 = vector.broadcast %cst_48 : f32 to vector<24x128xf32>
    %91 = arith.mulf %89, %90 : vector<24x128xf32>
    %92 = math.absf %13 : vector<24x128xf32>
    %93 = math.absf %14 : vector<24x128xf32>
    %94 = arith.addf %92, %93 : vector<24x128xf32>
    %cst_49 = arith.constant 5.000000e+00 : f32
    %95 = vector.broadcast %cst_49 : f32 to vector<24x128xf32>
    %96 = arith.mulf %94, %95 : vector<24x128xf32>
    %97 = arith.mulf %96, %62 : vector<24x128xf32>
    %98 = math.absf %97 : vector<24x128xf32>
    %cst_50 = arith.constant 2.500000e-02 : f32
    %99 = vector.broadcast %cst_50 : f32 to vector<24x128xf32>
    %100 = arith.mulf %99, %98 : vector<24x128xf32>
    %101 = math.absf %65 : vector<24x128xf32>
    %102 = math.absf %70 : vector<24x128xf32>
    %103 = arith.addf %101, %102 : vector<24x128xf32>
    %cst_51 = arith.constant 2.000000e-02 : f32
    %104 = vector.broadcast %cst_51 : f32 to vector<24x128xf32>
    %105 = arith.mulf %103, %104 : vector<24x128xf32>
    %cst_52 = arith.constant 1.000000e-03 : f32
    %106 = vector.broadcast %cst_52 : f32 to vector<24x128xf32>
    %107 = arith.addf %106, %105 : vector<24x128xf32>
    %108 = tpu.reciprocal %107 {approx = true} : vector<24x128xf32> -> vector<24x128xf32>
    %109 = arith.mulf %100, %108 : vector<24x128xf32>
    %110 = math.absf %13 : vector<24x128xf32>
    %111 = math.absf %14 : vector<24x128xf32>
    %112 = arith.addf %110, %111 : vector<24x128xf32>
    %cst_53 = arith.constant 5.000000e+00 : f32
    %113 = vector.broadcast %cst_53 : f32 to vector<24x128xf32>
    %114 = arith.mulf %112, %113 : vector<24x128xf32>
    %115 = arith.mulf %114, %83 : vector<24x128xf32>
    %116 = math.absf %115 : vector<24x128xf32>
    %cst_54 = arith.constant 2.500000e-02 : f32
    %117 = vector.broadcast %cst_54 : f32 to vector<24x128xf32>
    %118 = arith.mulf %117, %116 : vector<24x128xf32>
    %119 = math.absf %86 : vector<24x128xf32>
    %120 = math.absf %91 : vector<24x128xf32>
    %121 = arith.addf %119, %120 : vector<24x128xf32>
    %cst_55 = arith.constant 2.000000e-02 : f32
    %122 = vector.broadcast %cst_55 : f32 to vector<24x128xf32>
    %123 = arith.mulf %121, %122 : vector<24x128xf32>
    %cst_56 = arith.constant 1.000000e-03 : f32
    %124 = vector.broadcast %cst_56 : f32 to vector<24x128xf32>
    %125 = arith.addf %124, %123 : vector<24x128xf32>
    %126 = tpu.reciprocal %125 {approx = true} : vector<24x128xf32> -> vector<24x128xf32>
    %127 = arith.mulf %118, %126 : vector<24x128xf32>
    %128 = arith.minimumf %109, %21 : vector<24x128xf32>
    %cst_57 = arith.constant 0.000000e+00 : f32
    %129 = vector.broadcast %cst_57 : f32 to vector<24x128xf32>
    %130 = arith.select %12, %128, %129 : vector<24x128xi1>, vector<24x128xf32>
    %131 = arith.minimumf %127, %21 : vector<24x128xf32>
    %cst_58 = arith.constant 0.000000e+00 : f32
    %132 = vector.broadcast %cst_58 : f32 to vector<24x128xf32>
    %133 = arith.select %12, %131, %132 : vector<24x128xi1>, vector<24x128xf32>
    %134 = arith.mulf %109, %62 : vector<24x128xf32>
    %135 = arith.mulf %32, %130 : vector<24x128xf32>
    %c1_i32_59 = arith.constant 1 : i32
    %136 = tpu.dynamic_rotate %135 by %c1_i32_59 dim 1 : vector<24x128xf32>, i32 -> vector<24x128xf32>
    %137 = arith.addf %135, %136 : vector<24x128xf32>
    %c127_i32_60 = arith.constant 127 : i32
    %138 = tpu.dynamic_rotate %135 by %c127_i32_60 dim 1 : vector<24x128xf32>, i32 -> vector<24x128xf32>
    %139 = arith.addf %137, %138 : vector<24x128xf32>
    %c1_i32_61 = arith.constant 1 : i32
    %140 = tpu.dynamic_rotate %139 by %c1_i32_61 dim 0 : vector<24x128xf32>, i32 -> vector<24x128xf32>
    %141 = arith.addf %139, %140 : vector<24x128xf32>
    %c23_i32_62 = arith.constant 23 : i32
    %142 = tpu.dynamic_rotate %139 by %c23_i32_62 dim 0 : vector<24x128xf32>, i32 -> vector<24x128xf32>
    %143 = arith.addf %141, %142 : vector<24x128xf32>
    %cst_63 = arith.constant 9.000000e+00 : f32
    %144 = vector.broadcast %cst_63 : f32 to vector<24x128xf32>
    %145 = arith.mulf %144, %135 : vector<24x128xf32>
    %146 = arith.subf %143, %145 : vector<24x128xf32>
    %cst_64 = arith.constant 4.000000e-02 : f32
    %147 = vector.broadcast %cst_64 : f32 to vector<24x128xf32>
    %148 = arith.mulf %146, %147 : vector<24x128xf32>
    %149 = arith.addf %134, %148 : vector<24x128xf32>
    %c1_i32_65 = arith.constant 1 : i32
    %150 = tpu.dynamic_rotate %130 by %c1_i32_65 dim 1 : vector<24x128xf32>, i32 -> vector<24x128xf32>
    %151 = arith.addf %130, %150 : vector<24x128xf32>
    %c127_i32_66 = arith.constant 127 : i32
    %152 = tpu.dynamic_rotate %130 by %c127_i32_66 dim 1 : vector<24x128xf32>, i32 -> vector<24x128xf32>
    %153 = arith.addf %151, %152 : vector<24x128xf32>
    %c1_i32_67 = arith.constant 1 : i32
    %154 = tpu.dynamic_rotate %153 by %c1_i32_67 dim 0 : vector<24x128xf32>, i32 -> vector<24x128xf32>
    %155 = arith.addf %153, %154 : vector<24x128xf32>
    %c23_i32_68 = arith.constant 23 : i32
    %156 = tpu.dynamic_rotate %153 by %c23_i32_68 dim 0 : vector<24x128xf32>, i32 -> vector<24x128xf32>
    %157 = arith.addf %155, %156 : vector<24x128xf32>
    %cst_69 = arith.constant 9.000000e+00 : f32
    %158 = vector.broadcast %cst_69 : f32 to vector<24x128xf32>
    %159 = arith.mulf %158, %130 : vector<24x128xf32>
    %160 = arith.subf %157, %159 : vector<24x128xf32>
    %cst_70 = arith.constant 4.000000e-02 : f32
    %161 = vector.broadcast %cst_70 : f32 to vector<24x128xf32>
    %162 = arith.mulf %160, %161 : vector<24x128xf32>
    %163 = arith.mulf %13, %162 : vector<24x128xf32>
    %164 = arith.subf %149, %163 : vector<24x128xf32>
    %cst_71 = arith.constant 5.000000e-01 : f32
    %165 = vector.broadcast %cst_71 : f32 to vector<24x128xf32>
    %166 = arith.mulf %165, %164 : vector<24x128xf32>
    %167 = arith.mulf %127, %83 : vector<24x128xf32>
    %168 = arith.mulf %49, %133 : vector<24x128xf32>
    %c1_i32_72 = arith.constant 1 : i32
    %169 = tpu.dynamic_rotate %168 by %c1_i32_72 dim 1 : vector<24x128xf32>, i32 -> vector<24x128xf32>
    %170 = arith.addf %168, %169 : vector<24x128xf32>
    %c127_i32_73 = arith.constant 127 : i32
    %171 = tpu.dynamic_rotate %168 by %c127_i32_73 dim 1 : vector<24x128xf32>, i32 -> vector<24x128xf32>
    %172 = arith.addf %170, %171 : vector<24x128xf32>
    %c1_i32_74 = arith.constant 1 : i32
    %173 = tpu.dynamic_rotate %172 by %c1_i32_74 dim 0 : vector<24x128xf32>, i32 -> vector<24x128xf32>
    %174 = arith.addf %172, %173 : vector<24x128xf32>
    %c23_i32_75 = arith.constant 23 : i32
    %175 = tpu.dynamic_rotate %172 by %c23_i32_75 dim 0 : vector<24x128xf32>, i32 -> vector<24x128xf32>
    %176 = arith.addf %174, %175 : vector<24x128xf32>
    %cst_76 = arith.constant 9.000000e+00 : f32
    %177 = vector.broadcast %cst_76 : f32 to vector<24x128xf32>
    %178 = arith.mulf %177, %168 : vector<24x128xf32>
    %179 = arith.subf %176, %178 : vector<24x128xf32>
    %cst_77 = arith.constant 4.000000e-02 : f32
    %180 = vector.broadcast %cst_77 : f32 to vector<24x128xf32>
    %181 = arith.mulf %179, %180 : vector<24x128xf32>
    %182 = arith.addf %167, %181 : vector<24x128xf32>
    %c1_i32_78 = arith.constant 1 : i32
    %183 = tpu.dynamic_rotate %133 by %c1_i32_78 dim 1 : vector<24x128xf32>, i32 -> vector<24x128xf32>
    %184 = arith.addf %133, %183 : vector<24x128xf32>
    %c127_i32_79 = arith.constant 127 : i32
    %185 = tpu.dynamic_rotate %133 by %c127_i32_79 dim 1 : vector<24x128xf32>, i32 -> vector<24x128xf32>
    %186 = arith.addf %184, %185 : vector<24x128xf32>
    %c1_i32_80 = arith.constant 1 : i32
    %187 = tpu.dynamic_rotate %186 by %c1_i32_80 dim 0 : vector<24x128xf32>, i32 -> vector<24x128xf32>
    %188 = arith.addf %186, %187 : vector<24x128xf32>
    %c23_i32_81 = arith.constant 23 : i32
    %189 = tpu.dynamic_rotate %186 by %c23_i32_81 dim 0 : vector<24x128xf32>, i32 -> vector<24x128xf32>
    %190 = arith.addf %188, %189 : vector<24x128xf32>
    %cst_82 = arith.constant 9.000000e+00 : f32
    %191 = vector.broadcast %cst_82 : f32 to vector<24x128xf32>
    %192 = arith.mulf %191, %133 : vector<24x128xf32>
    %193 = arith.subf %190, %192 : vector<24x128xf32>
    %cst_83 = arith.constant 4.000000e-02 : f32
    %194 = vector.broadcast %cst_83 : f32 to vector<24x128xf32>
    %195 = arith.mulf %193, %194 : vector<24x128xf32>
    %196 = arith.mulf %14, %195 : vector<24x128xf32>
    %197 = arith.subf %182, %196 : vector<24x128xf32>
    %cst_84 = arith.constant 5.000000e-01 : f32
    %198 = vector.broadcast %cst_84 : f32 to vector<24x128xf32>
    %199 = arith.mulf %198, %197 : vector<24x128xf32>
    %cst_85 = arith.constant 5.000000e-01 : f32
    %200 = vector.broadcast %cst_85 : f32 to vector<24x128xf32>
    %201 = arith.mulf %166, %200 : vector<24x128xf32>
    %202 = arith.mulf %13, %65 : vector<24x128xf32>
    %cst_86 = arith.constant 5.000000e-01 : f32
    %203 = vector.broadcast %cst_86 : f32 to vector<24x128xf32>
    %204 = arith.mulf %202, %203 : vector<24x128xf32>
    %205 = arith.subf %201, %204 : vector<24x128xf32>
    %206 = arith.mulf %14, %70 : vector<24x128xf32>
    %cst_87 = arith.constant 5.000000e-01 : f32
    %207 = vector.broadcast %cst_87 : f32 to vector<24x128xf32>
    %208 = arith.mulf %206, %207 : vector<24x128xf32>
    %209 = arith.subf %205, %208 : vector<24x128xf32>
    %cst_88 = arith.constant 5.000000e-01 : f32
    %210 = vector.broadcast %cst_88 : f32 to vector<24x128xf32>
    %211 = arith.mulf %209, %210 : vector<24x128xf32>
    %212 = arith.addf %211, %13 : vector<24x128xf32>
    %cst_89 = arith.constant 5.000000e-01 : f32
    %213 = vector.broadcast %cst_89 : f32 to vector<24x128xf32>
    %214 = arith.mulf %199, %213 : vector<24x128xf32>
    %215 = arith.mulf %13, %86 : vector<24x128xf32>
    %cst_90 = arith.constant 5.000000e-01 : f32
    %216 = vector.broadcast %cst_90 : f32 to vector<24x128xf32>
    %217 = arith.mulf %215, %216 : vector<24x128xf32>
    %218 = arith.subf %214, %217 : vector<24x128xf32>
    %219 = arith.mulf %14, %91 : vector<24x128xf32>
    %cst_91 = arith.constant 5.000000e-01 : f32
    %220 = vector.broadcast %cst_91 : f32 to vector<24x128xf32>
    %221 = arith.mulf %219, %220 : vector<24x128xf32>
    %222 = arith.subf %218, %221 : vector<24x128xf32>
    %cst_92 = arith.constant 5.000000e-01 : f32
    %223 = vector.broadcast %cst_92 : f32 to vector<24x128xf32>
    %224 = arith.mulf %222, %223 : vector<24x128xf32>
    %225 = arith.addf %224, %14 : vector<24x128xf32>
    %cst_93 = arith.constant 0.000000e+00 : f32
    %226 = vector.broadcast %cst_93 : f32 to vector<24x128xf32>
    %227 = arith.select %12, %16, %226 : vector<24x128xi1>, vector<24x128xf32>
    %c127_i32_94 = arith.constant 127 : i32
    %228 = tpu.dynamic_rotate %227 by %c127_i32_94 dim 1 : vector<24x128xf32>, i32 -> vector<24x128xf32>
    %c1_i32_95 = arith.constant 1 : i32
    %229 = tpu.dynamic_rotate %227 by %c1_i32_95 dim 1 : vector<24x128xf32>, i32 -> vector<24x128xf32>
    %230 = arith.subf %228, %229 : vector<24x128xf32>
    %cst_96 = arith.constant 1.000000e-01 : f32
    %231 = vector.broadcast %cst_96 : f32 to vector<24x128xf32>
    %232 = arith.mulf %230, %231 : vector<24x128xf32>
    %c23_i32_97 = arith.constant 23 : i32
    %233 = tpu.dynamic_rotate %227 by %c23_i32_97 dim 0 : vector<24x128xf32>, i32 -> vector<24x128xf32>
    %c1_i32_98 = arith.constant 1 : i32
    %234 = tpu.dynamic_rotate %227 by %c1_i32_98 dim 0 : vector<24x128xf32>, i32 -> vector<24x128xf32>
    %235 = arith.subf %233, %234 : vector<24x128xf32>
    %cst_99 = arith.constant 1.000000e-01 : f32
    %236 = vector.broadcast %cst_99 : f32 to vector<24x128xf32>
    %237 = arith.mulf %235, %236 : vector<24x128xf32>
    %cst_100 = arith.constant 5.000000e-01 : f32
    %238 = vector.broadcast %cst_100 : f32 to vector<24x128xf32>
    %239 = arith.mulf %232, %238 : vector<24x128xf32>
    %240 = arith.subf %212, %239 : vector<24x128xf32>
    %cst_101 = arith.constant 5.000000e-01 : f32
    %241 = vector.broadcast %cst_101 : f32 to vector<24x128xf32>
    %242 = arith.mulf %237, %241 : vector<24x128xf32>
    %243 = arith.subf %225, %242 : vector<24x128xf32>
    %cst_102 = arith.constant 0.000000e+00 : f32
    %244 = vector.broadcast %cst_102 : f32 to vector<24x128xf32>
    %245 = arith.select %12, %240, %244 : vector<24x128xi1>, vector<24x128xf32>
    %c0_i32_103 = arith.constant 0 : i32
    %246 = vector.broadcast %c0_i32_103 : i32 to vector<24x128xi32>
    %247 = arith.cmpi eq, %0, %246 : vector<24x128xi32>
    %c23_i32_104 = arith.constant 23 : i32
    %248 = tpu.dynamic_rotate %245 by %c23_i32_104 dim 0 : vector<24x128xf32>, i32 -> vector<24x128xf32>
    %249 = arith.select %247, %248, %245 : vector<24x128xi1>, vector<24x128xf32>
    %c17_i32_105 = arith.constant 17 : i32
    %250 = vector.broadcast %c17_i32_105 : i32 to vector<24x128xi32>
    %251 = arith.cmpi eq, %0, %250 : vector<24x128xi32>
    %c1_i32_106 = arith.constant 1 : i32
    %252 = tpu.dynamic_rotate %249 by %c1_i32_106 dim 0 : vector<24x128xf32>, i32 -> vector<24x128xf32>
    %253 = arith.select %251, %252, %249 : vector<24x128xi1>, vector<24x128xf32>
    %cst_107 = arith.constant 0.000000e+00 : f32
    %254 = vector.broadcast %cst_107 : f32 to vector<24x128xf32>
    %255 = arith.select %12, %243, %254 : vector<24x128xi1>, vector<24x128xf32>
    %c0_i32_108 = arith.constant 0 : i32
    %256 = vector.broadcast %c0_i32_108 : i32 to vector<24x128xi32>
    %257 = arith.cmpi eq, %1, %256 : vector<24x128xi32>
    %c127_i32_109 = arith.constant 127 : i32
    %258 = tpu.dynamic_rotate %255 by %c127_i32_109 dim 1 : vector<24x128xf32>, i32 -> vector<24x128xf32>
    %259 = arith.select %257, %258, %255 : vector<24x128xi1>, vector<24x128xf32>
    %c17_i32_110 = arith.constant 17 : i32
    %260 = vector.broadcast %c17_i32_110 : i32 to vector<24x128xi32>
    %261 = arith.cmpi eq, %1, %260 : vector<24x128xi32>
    %c1_i32_111 = arith.constant 1 : i32
    %262 = tpu.dynamic_rotate %259 by %c1_i32_111 dim 1 : vector<24x128xf32>, i32 -> vector<24x128xf32>
    %263 = arith.select %261, %262, %259 : vector<24x128xi1>, vector<24x128xf32>
    %c0_i32_112 = arith.constant 0 : i32
    %264 = vector.broadcast %c0_i32_112 : i32 to vector<24x128xi32>
    %265 = arith.cmpi eq, %0, %264 : vector<24x128xi32>
    %c17_i32_113 = arith.constant 17 : i32
    %266 = vector.broadcast %c17_i32_113 : i32 to vector<24x128xi32>
    %267 = arith.cmpi eq, %0, %266 : vector<24x128xi32>
    %268 = arith.ori %265, %267 : vector<24x128xi1>
    %cst_114 = arith.constant 0.000000e+00 : f32
    %269 = vector.broadcast %cst_114 : f32 to vector<24x128xf32>
    %270 = arith.select %268, %269, %263 : vector<24x128xi1>, vector<24x128xf32>
    %271 = arith.addf %15, %16 : vector<24x128xf32>
    %cst_115 = arith.constant 0.000000e+00 : f32
    %272 = vector.broadcast %cst_115 : f32 to vector<24x128xf32>
    %273 = arith.select %12, %271, %272 : vector<24x128xi1>, vector<24x128xf32>
    %c1_i32_116 = arith.constant 1 : i32
    %274 = tpu.dynamic_rotate %273 by %c1_i32_116 dim 1 : vector<24x128xf32>, i32 -> vector<24x128xf32>
    %275 = arith.addf %273, %274 : vector<24x128xf32>
    %c127_i32_117 = arith.constant 127 : i32
    %276 = tpu.dynamic_rotate %273 by %c127_i32_117 dim 1 : vector<24x128xf32>, i32 -> vector<24x128xf32>
    %277 = arith.addf %275, %276 : vector<24x128xf32>
    %c1_i32_118 = arith.constant 1 : i32
    %278 = tpu.dynamic_rotate %277 by %c1_i32_118 dim 0 : vector<24x128xf32>, i32 -> vector<24x128xf32>
    %279 = arith.addf %277, %278 : vector<24x128xf32>
    %c23_i32_119 = arith.constant 23 : i32
    %280 = tpu.dynamic_rotate %277 by %c23_i32_119 dim 0 : vector<24x128xf32>, i32 -> vector<24x128xf32>
    %281 = arith.addf %279, %280 : vector<24x128xf32>
    %cst_120 = arith.constant 0.111111112 : f32
    %282 = vector.broadcast %cst_120 : f32 to vector<24x128xf32>
    %283 = arith.mulf %281, %282 : vector<24x128xf32>
    %cst_121 = arith.constant 5.000000e+00 : f32
    %284 = vector.broadcast %cst_121 : f32 to vector<24x128xf32>
    %285 = arith.mulf %284, %283 : vector<24x128xf32>
    %cst_122 = arith.constant 0.00999999977 : f32
    %286 = vector.broadcast %cst_122 : f32 to vector<24x128xf32>
    %287 = arith.mulf %285, %286 : vector<24x128xf32>
    %cst_123 = arith.constant 9.900000e-01 : f32
    %288 = vector.broadcast %cst_123 : f32 to vector<24x128xf32>
    %289 = arith.mulf %271, %288 : vector<24x128xf32>
    %290 = arith.addf %287, %289 : vector<24x128xf32>
    %291 = arith.maximumf %19, %290 : vector<24x128xf32>
    %cst_124 = arith.constant 1.000000e-30 : f32
    %292 = vector.broadcast %cst_124 : f32 to vector<24x128xf32>
    %293 = arith.maximumf %291, %292 : vector<24x128xf32>
    %294 = math.log %293 : vector<24x128xf32>
    %cst_125 = arith.constant 1.33333337 : f32
    %295 = vector.broadcast %cst_125 : f32 to vector<24x128xf32>
    %296 = arith.mulf %294, %295 : vector<24x128xf32>
    %297 = math.exp %296 : vector<24x128xf32>
    %298 = arith.mulf %240, %240 : vector<24x128xf32>
    %299 = arith.mulf %243, %243 : vector<24x128xf32>
    %300 = arith.addf %298, %299 : vector<24x128xf32>
    %301 = math.sqrt %300 : vector<24x128xf32>
    %cst_126 = arith.constant 3.025000e-03 : f32
    %302 = vector.broadcast %cst_126 : f32 to vector<24x128xf32>
    %303 = arith.mulf %301, %302 : vector<24x128xf32>
    %304 = arith.divf %303, %297 : vector<24x128xf32>
    %cst_127 = arith.constant 4.905000e+00 : f32
    %305 = vector.broadcast %cst_127 : f32 to vector<24x128xf32>
    %306 = arith.mulf %304, %305 : vector<24x128xf32>
    %cst_128 = arith.constant 1.000000e+00 : f32
    %307 = vector.broadcast %cst_128 : f32 to vector<24x128xf32>
    %308 = arith.addf %307, %306 : vector<24x128xf32>
    %309 = tpu.reciprocal %308 {approx = true} : vector<24x128xf32> -> vector<24x128xf32>
    %310 = arith.mulf %240, %309 : vector<24x128xf32>
    %311 = arith.mulf %243, %309 : vector<24x128xf32>
    %c1_i32_129 = arith.constant 1 : i32
    %312 = tpu.dynamic_rotate %253 by %c1_i32_129 dim 1 : vector<24x128xf32>, i32 -> vector<24x128xf32>
    %c127_i32_130 = arith.constant 127 : i32
    %313 = tpu.dynamic_rotate %253 by %c127_i32_130 dim 1 : vector<24x128xf32>, i32 -> vector<24x128xf32>
    %314 = arith.addf %253, %312 : vector<24x128xf32>
    %315 = arith.addf %314, %313 : vector<24x128xf32>
    %c1_i32_131 = arith.constant 1 : i32
    %316 = tpu.dynamic_rotate %315 by %c1_i32_131 dim 0 : vector<24x128xf32>, i32 -> vector<24x128xf32>
    %317 = arith.addf %315, %316 : vector<24x128xf32>
    %c23_i32_132 = arith.constant 23 : i32
    %318 = tpu.dynamic_rotate %315 by %c23_i32_132 dim 0 : vector<24x128xf32>, i32 -> vector<24x128xf32>
    %319 = arith.addf %317, %318 : vector<24x128xf32>
    %cst_133 = arith.constant 9.000000e+00 : f32
    %320 = vector.broadcast %cst_133 : f32 to vector<24x128xf32>
    %321 = arith.mulf %320, %253 : vector<24x128xf32>
    %322 = arith.subf %319, %321 : vector<24x128xf32>
    %cst_134 = arith.constant 4.000000e-02 : f32
    %323 = vector.broadcast %cst_134 : f32 to vector<24x128xf32>
    %324 = arith.mulf %322, %323 : vector<24x128xf32>
    %325 = arith.subf %313, %312 : vector<24x128xf32>
    %cst_135 = arith.constant 1.000000e-01 : f32
    %326 = vector.broadcast %cst_135 : f32 to vector<24x128xf32>
    %327 = arith.mulf %325, %326 : vector<24x128xf32>
    %c23_i32_136 = arith.constant 23 : i32
    %328 = tpu.dynamic_rotate %253 by %c23_i32_136 dim 0 : vector<24x128xf32>, i32 -> vector<24x128xf32>
    %c1_i32_137 = arith.constant 1 : i32
    %329 = tpu.dynamic_rotate %253 by %c1_i32_137 dim 0 : vector<24x128xf32>, i32 -> vector<24x128xf32>
    %330 = arith.subf %328, %329 : vector<24x128xf32>
    %cst_138 = arith.constant 1.000000e-01 : f32
    %331 = vector.broadcast %cst_138 : f32 to vector<24x128xf32>
    %332 = arith.mulf %330, %331 : vector<24x128xf32>
    %c1_i32_139 = arith.constant 1 : i32
    %333 = tpu.dynamic_rotate %270 by %c1_i32_139 dim 1 : vector<24x128xf32>, i32 -> vector<24x128xf32>
    %c127_i32_140 = arith.constant 127 : i32
    %334 = tpu.dynamic_rotate %270 by %c127_i32_140 dim 1 : vector<24x128xf32>, i32 -> vector<24x128xf32>
    %335 = arith.addf %270, %333 : vector<24x128xf32>
    %336 = arith.addf %335, %334 : vector<24x128xf32>
    %c1_i32_141 = arith.constant 1 : i32
    %337 = tpu.dynamic_rotate %336 by %c1_i32_141 dim 0 : vector<24x128xf32>, i32 -> vector<24x128xf32>
    %338 = arith.addf %336, %337 : vector<24x128xf32>
    %c23_i32_142 = arith.constant 23 : i32
    %339 = tpu.dynamic_rotate %336 by %c23_i32_142 dim 0 : vector<24x128xf32>, i32 -> vector<24x128xf32>
    %340 = arith.addf %338, %339 : vector<24x128xf32>
    %cst_143 = arith.constant 9.000000e+00 : f32
    %341 = vector.broadcast %cst_143 : f32 to vector<24x128xf32>
    %342 = arith.mulf %341, %270 : vector<24x128xf32>
    %343 = arith.subf %340, %342 : vector<24x128xf32>
    %cst_144 = arith.constant 4.000000e-02 : f32
    %344 = vector.broadcast %cst_144 : f32 to vector<24x128xf32>
    %345 = arith.mulf %343, %344 : vector<24x128xf32>
    %346 = arith.subf %334, %333 : vector<24x128xf32>
    %cst_145 = arith.constant 1.000000e-01 : f32
    %347 = vector.broadcast %cst_145 : f32 to vector<24x128xf32>
    %348 = arith.mulf %346, %347 : vector<24x128xf32>
    %c23_i32_146 = arith.constant 23 : i32
    %349 = tpu.dynamic_rotate %270 by %c23_i32_146 dim 0 : vector<24x128xf32>, i32 -> vector<24x128xf32>
    %c1_i32_147 = arith.constant 1 : i32
    %350 = tpu.dynamic_rotate %270 by %c1_i32_147 dim 0 : vector<24x128xf32>, i32 -> vector<24x128xf32>
    %351 = arith.subf %349, %350 : vector<24x128xf32>
    %cst_148 = arith.constant 1.000000e-01 : f32
    %352 = vector.broadcast %cst_148 : f32 to vector<24x128xf32>
    %353 = arith.mulf %351, %352 : vector<24x128xf32>
    %354 = math.absf %310 : vector<24x128xf32>
    %355 = math.absf %311 : vector<24x128xf32>
    %356 = arith.addf %354, %355 : vector<24x128xf32>
    %cst_149 = arith.constant 5.000000e+00 : f32
    %357 = vector.broadcast %cst_149 : f32 to vector<24x128xf32>
    %358 = arith.mulf %356, %357 : vector<24x128xf32>
    %359 = arith.mulf %358, %324 : vector<24x128xf32>
    %360 = math.absf %359 : vector<24x128xf32>
    %cst_150 = arith.constant 2.500000e-02 : f32
    %361 = vector.broadcast %cst_150 : f32 to vector<24x128xf32>
    %362 = arith.mulf %361, %360 : vector<24x128xf32>
    %363 = math.absf %327 : vector<24x128xf32>
    %364 = math.absf %332 : vector<24x128xf32>
    %365 = arith.addf %363, %364 : vector<24x128xf32>
    %cst_151 = arith.constant 2.000000e-02 : f32
    %366 = vector.broadcast %cst_151 : f32 to vector<24x128xf32>
    %367 = arith.mulf %365, %366 : vector<24x128xf32>
    %cst_152 = arith.constant 1.000000e-03 : f32
    %368 = vector.broadcast %cst_152 : f32 to vector<24x128xf32>
    %369 = arith.addf %368, %367 : vector<24x128xf32>
    %370 = tpu.reciprocal %369 {approx = true} : vector<24x128xf32> -> vector<24x128xf32>
    %371 = arith.mulf %362, %370 : vector<24x128xf32>
    %372 = math.absf %310 : vector<24x128xf32>
    %373 = math.absf %311 : vector<24x128xf32>
    %374 = arith.addf %372, %373 : vector<24x128xf32>
    %cst_153 = arith.constant 5.000000e+00 : f32
    %375 = vector.broadcast %cst_153 : f32 to vector<24x128xf32>
    %376 = arith.mulf %374, %375 : vector<24x128xf32>
    %377 = arith.mulf %376, %345 : vector<24x128xf32>
    %378 = math.absf %377 : vector<24x128xf32>
    %cst_154 = arith.constant 2.500000e-02 : f32
    %379 = vector.broadcast %cst_154 : f32 to vector<24x128xf32>
    %380 = arith.mulf %379, %378 : vector<24x128xf32>
    %381 = math.absf %348 : vector<24x128xf32>
    %382 = math.absf %353 : vector<24x128xf32>
    %383 = arith.addf %381, %382 : vector<24x128xf32>
    %cst_155 = arith.constant 2.000000e-02 : f32
    %384 = vector.broadcast %cst_155 : f32 to vector<24x128xf32>
    %385 = arith.mulf %383, %384 : vector<24x128xf32>
    %cst_156 = arith.constant 1.000000e-03 : f32
    %386 = vector.broadcast %cst_156 : f32 to vector<24x128xf32>
    %387 = arith.addf %386, %385 : vector<24x128xf32>
    %388 = tpu.reciprocal %387 {approx = true} : vector<24x128xf32> -> vector<24x128xf32>
    %389 = arith.mulf %380, %388 : vector<24x128xf32>
    %390 = arith.minimumf %371, %21 : vector<24x128xf32>
    %cst_157 = arith.constant 0.000000e+00 : f32
    %391 = vector.broadcast %cst_157 : f32 to vector<24x128xf32>
    %392 = arith.select %12, %390, %391 : vector<24x128xi1>, vector<24x128xf32>
    %393 = arith.minimumf %389, %21 : vector<24x128xf32>
    %cst_158 = arith.constant 0.000000e+00 : f32
    %394 = vector.broadcast %cst_158 : f32 to vector<24x128xf32>
    %395 = arith.select %12, %393, %394 : vector<24x128xi1>, vector<24x128xf32>
    %396 = arith.mulf %371, %324 : vector<24x128xf32>
    %397 = arith.mulf %253, %392 : vector<24x128xf32>
    %c1_i32_159 = arith.constant 1 : i32
    %398 = tpu.dynamic_rotate %397 by %c1_i32_159 dim 1 : vector<24x128xf32>, i32 -> vector<24x128xf32>
    %399 = arith.addf %397, %398 : vector<24x128xf32>
    %c127_i32_160 = arith.constant 127 : i32
    %400 = tpu.dynamic_rotate %397 by %c127_i32_160 dim 1 : vector<24x128xf32>, i32 -> vector<24x128xf32>
    %401 = arith.addf %399, %400 : vector<24x128xf32>
    %c1_i32_161 = arith.constant 1 : i32
    %402 = tpu.dynamic_rotate %401 by %c1_i32_161 dim 0 : vector<24x128xf32>, i32 -> vector<24x128xf32>
    %403 = arith.addf %401, %402 : vector<24x128xf32>
    %c23_i32_162 = arith.constant 23 : i32
    %404 = tpu.dynamic_rotate %401 by %c23_i32_162 dim 0 : vector<24x128xf32>, i32 -> vector<24x128xf32>
    %405 = arith.addf %403, %404 : vector<24x128xf32>
    %cst_163 = arith.constant 9.000000e+00 : f32
    %406 = vector.broadcast %cst_163 : f32 to vector<24x128xf32>
    %407 = arith.mulf %406, %397 : vector<24x128xf32>
    %408 = arith.subf %405, %407 : vector<24x128xf32>
    %cst_164 = arith.constant 4.000000e-02 : f32
    %409 = vector.broadcast %cst_164 : f32 to vector<24x128xf32>
    %410 = arith.mulf %408, %409 : vector<24x128xf32>
    %411 = arith.addf %396, %410 : vector<24x128xf32>
    %c1_i32_165 = arith.constant 1 : i32
    %412 = tpu.dynamic_rotate %392 by %c1_i32_165 dim 1 : vector<24x128xf32>, i32 -> vector<24x128xf32>
    %413 = arith.addf %392, %412 : vector<24x128xf32>
    %c127_i32_166 = arith.constant 127 : i32
    %414 = tpu.dynamic_rotate %392 by %c127_i32_166 dim 1 : vector<24x128xf32>, i32 -> vector<24x128xf32>
    %415 = arith.addf %413, %414 : vector<24x128xf32>
    %c1_i32_167 = arith.constant 1 : i32
    %416 = tpu.dynamic_rotate %415 by %c1_i32_167 dim 0 : vector<24x128xf32>, i32 -> vector<24x128xf32>
    %417 = arith.addf %415, %416 : vector<24x128xf32>
    %c23_i32_168 = arith.constant 23 : i32
    %418 = tpu.dynamic_rotate %415 by %c23_i32_168 dim 0 : vector<24x128xf32>, i32 -> vector<24x128xf32>
    %419 = arith.addf %417, %418 : vector<24x128xf32>
    %cst_169 = arith.constant 9.000000e+00 : f32
    %420 = vector.broadcast %cst_169 : f32 to vector<24x128xf32>
    %421 = arith.mulf %420, %392 : vector<24x128xf32>
    %422 = arith.subf %419, %421 : vector<24x128xf32>
    %cst_170 = arith.constant 4.000000e-02 : f32
    %423 = vector.broadcast %cst_170 : f32 to vector<24x128xf32>
    %424 = arith.mulf %422, %423 : vector<24x128xf32>
    %425 = arith.mulf %310, %424 : vector<24x128xf32>
    %426 = arith.subf %411, %425 : vector<24x128xf32>
    %cst_171 = arith.constant 5.000000e-01 : f32
    %427 = vector.broadcast %cst_171 : f32 to vector<24x128xf32>
    %428 = arith.mulf %427, %426 : vector<24x128xf32>
    %429 = arith.mulf %389, %345 : vector<24x128xf32>
    %430 = arith.mulf %270, %395 : vector<24x128xf32>
    %c1_i32_172 = arith.constant 1 : i32
    %431 = tpu.dynamic_rotate %430 by %c1_i32_172 dim 1 : vector<24x128xf32>, i32 -> vector<24x128xf32>
    %432 = arith.addf %430, %431 : vector<24x128xf32>
    %c127_i32_173 = arith.constant 127 : i32
    %433 = tpu.dynamic_rotate %430 by %c127_i32_173 dim 1 : vector<24x128xf32>, i32 -> vector<24x128xf32>
    %434 = arith.addf %432, %433 : vector<24x128xf32>
    %c1_i32_174 = arith.constant 1 : i32
    %435 = tpu.dynamic_rotate %434 by %c1_i32_174 dim 0 : vector<24x128xf32>, i32 -> vector<24x128xf32>
    %436 = arith.addf %434, %435 : vector<24x128xf32>
    %c23_i32_175 = arith.constant 23 : i32
    %437 = tpu.dynamic_rotate %434 by %c23_i32_175 dim 0 : vector<24x128xf32>, i32 -> vector<24x128xf32>
    %438 = arith.addf %436, %437 : vector<24x128xf32>
    %cst_176 = arith.constant 9.000000e+00 : f32
    %439 = vector.broadcast %cst_176 : f32 to vector<24x128xf32>
    %440 = arith.mulf %439, %430 : vector<24x128xf32>
    %441 = arith.subf %438, %440 : vector<24x128xf32>
    %cst_177 = arith.constant 4.000000e-02 : f32
    %442 = vector.broadcast %cst_177 : f32 to vector<24x128xf32>
    %443 = arith.mulf %441, %442 : vector<24x128xf32>
    %444 = arith.addf %429, %443 : vector<24x128xf32>
    %c1_i32_178 = arith.constant 1 : i32
    %445 = tpu.dynamic_rotate %395 by %c1_i32_178 dim 1 : vector<24x128xf32>, i32 -> vector<24x128xf32>
    %446 = arith.addf %395, %445 : vector<24x128xf32>
    %c127_i32_179 = arith.constant 127 : i32
    %447 = tpu.dynamic_rotate %395 by %c127_i32_179 dim 1 : vector<24x128xf32>, i32 -> vector<24x128xf32>
    %448 = arith.addf %446, %447 : vector<24x128xf32>
    %c1_i32_180 = arith.constant 1 : i32
    %449 = tpu.dynamic_rotate %448 by %c1_i32_180 dim 0 : vector<24x128xf32>, i32 -> vector<24x128xf32>
    %450 = arith.addf %448, %449 : vector<24x128xf32>
    %c23_i32_181 = arith.constant 23 : i32
    %451 = tpu.dynamic_rotate %448 by %c23_i32_181 dim 0 : vector<24x128xf32>, i32 -> vector<24x128xf32>
    %452 = arith.addf %450, %451 : vector<24x128xf32>
    %cst_182 = arith.constant 9.000000e+00 : f32
    %453 = vector.broadcast %cst_182 : f32 to vector<24x128xf32>
    %454 = arith.mulf %453, %395 : vector<24x128xf32>
    %455 = arith.subf %452, %454 : vector<24x128xf32>
    %cst_183 = arith.constant 4.000000e-02 : f32
    %456 = vector.broadcast %cst_183 : f32 to vector<24x128xf32>
    %457 = arith.mulf %455, %456 : vector<24x128xf32>
    %458 = arith.mulf %311, %457 : vector<24x128xf32>
    %459 = arith.subf %444, %458 : vector<24x128xf32>
    %cst_184 = arith.constant 5.000000e-01 : f32
    %460 = vector.broadcast %cst_184 : f32 to vector<24x128xf32>
    %461 = arith.mulf %460, %459 : vector<24x128xf32>
    %cst_185 = arith.constant 5.000000e-01 : f32
    %462 = vector.broadcast %cst_185 : f32 to vector<24x128xf32>
    %463 = arith.mulf %428, %462 : vector<24x128xf32>
    %464 = arith.addf %13, %463 : vector<24x128xf32>
    %465 = arith.mulf %310, %327 : vector<24x128xf32>
    %cst_186 = arith.constant 5.000000e-01 : f32
    %466 = vector.broadcast %cst_186 : f32 to vector<24x128xf32>
    %467 = arith.mulf %465, %466 : vector<24x128xf32>
    %468 = arith.subf %464, %467 : vector<24x128xf32>
    %469 = arith.mulf %311, %332 : vector<24x128xf32>
    %cst_187 = arith.constant 5.000000e-01 : f32
    %470 = vector.broadcast %cst_187 : f32 to vector<24x128xf32>
    %471 = arith.mulf %469, %470 : vector<24x128xf32>
    %472 = arith.subf %468, %471 : vector<24x128xf32>
    %cst_188 = arith.constant 5.000000e-01 : f32
    %473 = vector.broadcast %cst_188 : f32 to vector<24x128xf32>
    %474 = arith.mulf %461, %473 : vector<24x128xf32>
    %475 = arith.addf %14, %474 : vector<24x128xf32>
    %476 = arith.mulf %310, %348 : vector<24x128xf32>
    %cst_189 = arith.constant 5.000000e-01 : f32
    %477 = vector.broadcast %cst_189 : f32 to vector<24x128xf32>
    %478 = arith.mulf %476, %477 : vector<24x128xf32>
    %479 = arith.subf %475, %478 : vector<24x128xf32>
    %480 = arith.mulf %311, %353 : vector<24x128xf32>
    %cst_190 = arith.constant 5.000000e-01 : f32
    %481 = vector.broadcast %cst_190 : f32 to vector<24x128xf32>
    %482 = arith.mulf %480, %481 : vector<24x128xf32>
    %483 = arith.subf %479, %482 : vector<24x128xf32>
    %cst_191 = arith.constant 5.000000e-01 : f32
    %484 = vector.broadcast %cst_191 : f32 to vector<24x128xf32>
    %485 = arith.mulf %232, %484 : vector<24x128xf32>
    %486 = arith.subf %472, %485 : vector<24x128xf32>
    %cst_192 = arith.constant 5.000000e-01 : f32
    %487 = vector.broadcast %cst_192 : f32 to vector<24x128xf32>
    %488 = arith.mulf %237, %487 : vector<24x128xf32>
    %489 = arith.subf %483, %488 : vector<24x128xf32>
    %490 = arith.mulf %486, %486 : vector<24x128xf32>
    %491 = arith.mulf %489, %489 : vector<24x128xf32>
    %492 = arith.addf %490, %491 : vector<24x128xf32>
    %493 = math.sqrt %492 : vector<24x128xf32>
    %cst_193 = arith.constant 3.025000e-03 : f32
    %494 = vector.broadcast %cst_193 : f32 to vector<24x128xf32>
    %495 = arith.mulf %493, %494 : vector<24x128xf32>
    %496 = arith.divf %495, %297 : vector<24x128xf32>
    %cst_194 = arith.constant 4.905000e+00 : f32
    %497 = vector.broadcast %cst_194 : f32 to vector<24x128xf32>
    %498 = arith.mulf %496, %497 : vector<24x128xf32>
    %cst_195 = arith.constant 1.000000e+00 : f32
    %499 = vector.broadcast %cst_195 : f32 to vector<24x128xf32>
    %500 = arith.addf %499, %498 : vector<24x128xf32>
    %501 = tpu.reciprocal %500 {approx = true} : vector<24x128xf32> -> vector<24x128xf32>
    %502 = arith.mulf %486, %501 : vector<24x128xf32>
    %503 = arith.mulf %489, %501 : vector<24x128xf32>
    %cst_196 = arith.constant 0.000000e+00 : f32
    %504 = vector.broadcast %cst_196 : f32 to vector<24x128xf32>
    %505 = arith.select %12, %502, %504 : vector<24x128xi1>, vector<24x128xf32>
    %c0_i32_197 = arith.constant 0 : i32
    %506 = vector.broadcast %c0_i32_197 : i32 to vector<24x128xi32>
    %507 = arith.cmpi eq, %0, %506 : vector<24x128xi32>
    %c23_i32_198 = arith.constant 23 : i32
    %508 = tpu.dynamic_rotate %505 by %c23_i32_198 dim 0 : vector<24x128xf32>, i32 -> vector<24x128xf32>
    %509 = arith.select %507, %508, %505 : vector<24x128xi1>, vector<24x128xf32>
    %c17_i32_199 = arith.constant 17 : i32
    %510 = vector.broadcast %c17_i32_199 : i32 to vector<24x128xi32>
    %511 = arith.cmpi eq, %0, %510 : vector<24x128xi32>
    %c1_i32_200 = arith.constant 1 : i32
    %512 = tpu.dynamic_rotate %509 by %c1_i32_200 dim 0 : vector<24x128xf32>, i32 -> vector<24x128xf32>
    %513 = arith.select %511, %512, %509 : vector<24x128xi1>, vector<24x128xf32>
    %cst_201 = arith.constant 0.000000e+00 : f32
    %514 = vector.broadcast %cst_201 : f32 to vector<24x128xf32>
    %515 = arith.select %12, %503, %514 : vector<24x128xi1>, vector<24x128xf32>
    %c0_i32_202 = arith.constant 0 : i32
    %516 = vector.broadcast %c0_i32_202 : i32 to vector<24x128xi32>
    %517 = arith.cmpi eq, %1, %516 : vector<24x128xi32>
    %c127_i32_203 = arith.constant 127 : i32
    %518 = tpu.dynamic_rotate %515 by %c127_i32_203 dim 1 : vector<24x128xf32>, i32 -> vector<24x128xf32>
    %519 = arith.select %517, %518, %515 : vector<24x128xi1>, vector<24x128xf32>
    %c17_i32_204 = arith.constant 17 : i32
    %520 = vector.broadcast %c17_i32_204 : i32 to vector<24x128xi32>
    %521 = arith.cmpi eq, %1, %520 : vector<24x128xi32>
    %c1_i32_205 = arith.constant 1 : i32
    %522 = tpu.dynamic_rotate %519 by %c1_i32_205 dim 1 : vector<24x128xf32>, i32 -> vector<24x128xf32>
    %523 = arith.select %521, %522, %519 : vector<24x128xi1>, vector<24x128xf32>
    %c0_i32_206 = arith.constant 0 : i32
    %524 = vector.broadcast %c0_i32_206 : i32 to vector<24x128xi32>
    %525 = arith.cmpi eq, %0, %524 : vector<24x128xi32>
    %c17_i32_207 = arith.constant 17 : i32
    %526 = vector.broadcast %c17_i32_207 : i32 to vector<24x128xi32>
    %527 = arith.cmpi eq, %0, %526 : vector<24x128xi32>
    %528 = arith.ori %525, %527 : vector<24x128xi1>
    %cst_208 = arith.constant 0.000000e+00 : f32
    %529 = vector.broadcast %cst_208 : f32 to vector<24x128xf32>
    %530 = arith.select %528, %529, %523 : vector<24x128xi1>, vector<24x128xf32>
    %531 = arith.maximumf %20, %271 : vector<24x128xf32>
    %532 = arith.maximumf %19, %271 : vector<24x128xf32>
    %cst_209 = arith.constant 0.000000e+00 : f32
    %533 = vector.broadcast %cst_209 : f32 to vector<24x128xf32>
    %534 = arith.select %12, %531, %533 : vector<24x128xi1>, vector<24x128xf32>
    %c1_i32_210 = arith.constant 1 : i32
    %535 = tpu.dynamic_rotate %534 by %c1_i32_210 dim 1 : vector<24x128xf32>, i32 -> vector<24x128xf32>
    %c127_i32_211 = arith.constant 127 : i32
    %536 = tpu.dynamic_rotate %534 by %c127_i32_211 dim 1 : vector<24x128xf32>, i32 -> vector<24x128xf32>
    %537 = arith.addf %534, %535 : vector<24x128xf32>
    %538 = arith.addf %537, %536 : vector<24x128xf32>
    %c1_i32_212 = arith.constant 1 : i32
    %539 = tpu.dynamic_rotate %538 by %c1_i32_212 dim 0 : vector<24x128xf32>, i32 -> vector<24x128xf32>
    %540 = arith.addf %538, %539 : vector<24x128xf32>
    %c23_i32_213 = arith.constant 23 : i32
    %541 = tpu.dynamic_rotate %538 by %c23_i32_213 dim 0 : vector<24x128xf32>, i32 -> vector<24x128xf32>
    %542 = arith.addf %540, %541 : vector<24x128xf32>
    %cst_214 = arith.constant 9.000000e+00 : f32
    %543 = vector.broadcast %cst_214 : f32 to vector<24x128xf32>
    %544 = arith.mulf %543, %534 : vector<24x128xf32>
    %545 = arith.subf %542, %544 : vector<24x128xf32>
    %cst_215 = arith.constant 4.000000e-02 : f32
    %546 = vector.broadcast %cst_215 : f32 to vector<24x128xf32>
    %547 = arith.mulf %545, %546 : vector<24x128xf32>
    %548 = arith.subf %536, %535 : vector<24x128xf32>
    %cst_216 = arith.constant 1.000000e-01 : f32
    %549 = vector.broadcast %cst_216 : f32 to vector<24x128xf32>
    %550 = arith.mulf %548, %549 : vector<24x128xf32>
    %c23_i32_217 = arith.constant 23 : i32
    %551 = tpu.dynamic_rotate %534 by %c23_i32_217 dim 0 : vector<24x128xf32>, i32 -> vector<24x128xf32>
    %c1_i32_218 = arith.constant 1 : i32
    %552 = tpu.dynamic_rotate %534 by %c1_i32_218 dim 0 : vector<24x128xf32>, i32 -> vector<24x128xf32>
    %553 = arith.subf %551, %552 : vector<24x128xf32>
    %cst_219 = arith.constant 1.000000e-01 : f32
    %554 = vector.broadcast %cst_219 : f32 to vector<24x128xf32>
    %555 = arith.mulf %553, %554 : vector<24x128xf32>
    %c127_i32_220 = arith.constant 127 : i32
    %556 = tpu.dynamic_rotate %513 by %c127_i32_220 dim 1 : vector<24x128xf32>, i32 -> vector<24x128xf32>
    %c1_i32_221 = arith.constant 1 : i32
    %557 = tpu.dynamic_rotate %513 by %c1_i32_221 dim 1 : vector<24x128xf32>, i32 -> vector<24x128xf32>
    %558 = arith.subf %556, %557 : vector<24x128xf32>
    %cst_222 = arith.constant 1.000000e-01 : f32
    %559 = vector.broadcast %cst_222 : f32 to vector<24x128xf32>
    %560 = arith.mulf %558, %559 : vector<24x128xf32>
    %c23_i32_223 = arith.constant 23 : i32
    %561 = tpu.dynamic_rotate %530 by %c23_i32_223 dim 0 : vector<24x128xf32>, i32 -> vector<24x128xf32>
    %c1_i32_224 = arith.constant 1 : i32
    %562 = tpu.dynamic_rotate %530 by %c1_i32_224 dim 0 : vector<24x128xf32>, i32 -> vector<24x128xf32>
    %563 = arith.subf %561, %562 : vector<24x128xf32>
    %cst_225 = arith.constant 1.000000e-01 : f32
    %564 = vector.broadcast %cst_225 : f32 to vector<24x128xf32>
    %565 = arith.mulf %563, %564 : vector<24x128xf32>
    %566 = math.absf %502 : vector<24x128xf32>
    %567 = math.absf %503 : vector<24x128xf32>
    %568 = arith.addf %566, %567 : vector<24x128xf32>
    %cst_226 = arith.constant 5.000000e+00 : f32
    %569 = vector.broadcast %cst_226 : f32 to vector<24x128xf32>
    %570 = arith.mulf %568, %569 : vector<24x128xf32>
    %571 = arith.mulf %570, %547 : vector<24x128xf32>
    %572 = math.absf %571 : vector<24x128xf32>
    %cst_227 = arith.constant 2.500000e-02 : f32
    %573 = vector.broadcast %cst_227 : f32 to vector<24x128xf32>
    %574 = arith.mulf %573, %572 : vector<24x128xf32>
    %575 = math.absf %550 : vector<24x128xf32>
    %576 = math.absf %555 : vector<24x128xf32>
    %577 = arith.addf %575, %576 : vector<24x128xf32>
    %cst_228 = arith.constant 2.000000e-02 : f32
    %578 = vector.broadcast %cst_228 : f32 to vector<24x128xf32>
    %579 = arith.mulf %577, %578 : vector<24x128xf32>
    %cst_229 = arith.constant 1.000000e-03 : f32
    %580 = vector.broadcast %cst_229 : f32 to vector<24x128xf32>
    %581 = arith.addf %580, %579 : vector<24x128xf32>
    %582 = tpu.reciprocal %581 {approx = true} : vector<24x128xf32> -> vector<24x128xf32>
    %583 = arith.mulf %574, %582 : vector<24x128xf32>
    %584 = arith.minimumf %583, %21 : vector<24x128xf32>
    %cst_230 = arith.constant 0.000000e+00 : f32
    %585 = vector.broadcast %cst_230 : f32 to vector<24x128xf32>
    %586 = arith.select %12, %584, %585 : vector<24x128xi1>, vector<24x128xf32>
    %587 = arith.mulf %583, %547 : vector<24x128xf32>
    %588 = arith.mulf %534, %586 : vector<24x128xf32>
    %c1_i32_231 = arith.constant 1 : i32
    %589 = tpu.dynamic_rotate %588 by %c1_i32_231 dim 1 : vector<24x128xf32>, i32 -> vector<24x128xf32>
    %590 = arith.addf %588, %589 : vector<24x128xf32>
    %c127_i32_232 = arith.constant 127 : i32
    %591 = tpu.dynamic_rotate %588 by %c127_i32_232 dim 1 : vector<24x128xf32>, i32 -> vector<24x128xf32>
    %592 = arith.addf %590, %591 : vector<24x128xf32>
    %c1_i32_233 = arith.constant 1 : i32
    %593 = tpu.dynamic_rotate %592 by %c1_i32_233 dim 0 : vector<24x128xf32>, i32 -> vector<24x128xf32>
    %594 = arith.addf %592, %593 : vector<24x128xf32>
    %c23_i32_234 = arith.constant 23 : i32
    %595 = tpu.dynamic_rotate %592 by %c23_i32_234 dim 0 : vector<24x128xf32>, i32 -> vector<24x128xf32>
    %596 = arith.addf %594, %595 : vector<24x128xf32>
    %cst_235 = arith.constant 9.000000e+00 : f32
    %597 = vector.broadcast %cst_235 : f32 to vector<24x128xf32>
    %598 = arith.mulf %597, %588 : vector<24x128xf32>
    %599 = arith.subf %596, %598 : vector<24x128xf32>
    %cst_236 = arith.constant 4.000000e-02 : f32
    %600 = vector.broadcast %cst_236 : f32 to vector<24x128xf32>
    %601 = arith.mulf %599, %600 : vector<24x128xf32>
    %602 = arith.addf %587, %601 : vector<24x128xf32>
    %c1_i32_237 = arith.constant 1 : i32
    %603 = tpu.dynamic_rotate %586 by %c1_i32_237 dim 1 : vector<24x128xf32>, i32 -> vector<24x128xf32>
    %604 = arith.addf %586, %603 : vector<24x128xf32>
    %c127_i32_238 = arith.constant 127 : i32
    %605 = tpu.dynamic_rotate %586 by %c127_i32_238 dim 1 : vector<24x128xf32>, i32 -> vector<24x128xf32>
    %606 = arith.addf %604, %605 : vector<24x128xf32>
    %c1_i32_239 = arith.constant 1 : i32
    %607 = tpu.dynamic_rotate %606 by %c1_i32_239 dim 0 : vector<24x128xf32>, i32 -> vector<24x128xf32>
    %608 = arith.addf %606, %607 : vector<24x128xf32>
    %c23_i32_240 = arith.constant 23 : i32
    %609 = tpu.dynamic_rotate %606 by %c23_i32_240 dim 0 : vector<24x128xf32>, i32 -> vector<24x128xf32>
    %610 = arith.addf %608, %609 : vector<24x128xf32>
    %cst_241 = arith.constant 9.000000e+00 : f32
    %611 = vector.broadcast %cst_241 : f32 to vector<24x128xf32>
    %612 = arith.mulf %611, %586 : vector<24x128xf32>
    %613 = arith.subf %610, %612 : vector<24x128xf32>
    %cst_242 = arith.constant 4.000000e-02 : f32
    %614 = vector.broadcast %cst_242 : f32 to vector<24x128xf32>
    %615 = arith.mulf %613, %614 : vector<24x128xf32>
    %616 = arith.mulf %531, %615 : vector<24x128xf32>
    %617 = arith.subf %602, %616 : vector<24x128xf32>
    %cst_243 = arith.constant 5.000000e-01 : f32
    %618 = vector.broadcast %cst_243 : f32 to vector<24x128xf32>
    %619 = arith.mulf %618, %617 : vector<24x128xf32>
    %cst_244 = arith.constant 0.000000e+00 : f32
    %620 = vector.broadcast %cst_244 : f32 to vector<24x128xf32>
    %621 = arith.select %12, %18, %620 : vector<24x128xi1>, vector<24x128xf32>
    %c1_i32_245 = arith.constant 1 : i32
    %622 = tpu.dynamic_rotate %621 by %c1_i32_245 dim 1 : vector<24x128xf32>, i32 -> vector<24x128xf32>
    %623 = arith.addf %621, %622 : vector<24x128xf32>
    %c127_i32_246 = arith.constant 127 : i32
    %624 = tpu.dynamic_rotate %621 by %c127_i32_246 dim 1 : vector<24x128xf32>, i32 -> vector<24x128xf32>
    %625 = arith.addf %623, %624 : vector<24x128xf32>
    %c1_i32_247 = arith.constant 1 : i32
    %626 = tpu.dynamic_rotate %625 by %c1_i32_247 dim 0 : vector<24x128xf32>, i32 -> vector<24x128xf32>
    %627 = arith.addf %625, %626 : vector<24x128xf32>
    %c23_i32_248 = arith.constant 23 : i32
    %628 = tpu.dynamic_rotate %625 by %c23_i32_248 dim 0 : vector<24x128xf32>, i32 -> vector<24x128xf32>
    %629 = arith.addf %627, %628 : vector<24x128xf32>
    %cst_249 = arith.constant 0.111111112 : f32
    %630 = vector.broadcast %cst_249 : f32 to vector<24x128xf32>
    %631 = arith.mulf %629, %630 : vector<24x128xf32>
    %cst_250 = arith.constant 0.000000e+00 : f32
    %632 = vector.broadcast %cst_250 : f32 to vector<24x128xf32>
    %633 = arith.subf %632, %550 : vector<24x128xf32>
    %634 = arith.mulf %633, %502 : vector<24x128xf32>
    %635 = arith.mulf %555, %503 : vector<24x128xf32>
    %636 = arith.subf %634, %635 : vector<24x128xf32>
    %637 = arith.mulf %531, %560 : vector<24x128xf32>
    %638 = arith.subf %636, %637 : vector<24x128xf32>
    %639 = arith.mulf %531, %565 : vector<24x128xf32>
    %640 = arith.subf %638, %639 : vector<24x128xf32>
    %641 = arith.addf %640, %619 : vector<24x128xf32>
    %cst_251 = arith.constant 2.000000e+00 : f32
    %642 = vector.broadcast %cst_251 : f32 to vector<24x128xf32>
    %643 = arith.mulf %631, %642 : vector<24x128xf32>
    %644 = arith.subf %641, %643 : vector<24x128xf32>
    %645 = arith.addf %644, %22 : vector<24x128xf32>
    %cst_252 = arith.constant 0.407747209 : f32
    %646 = vector.broadcast %cst_252 : f32 to vector<24x128xf32>
    %647 = arith.mulf %646, %645 : vector<24x128xf32>
    %cst_253 = arith.constant 5.000000e-01 : f32
    %648 = vector.broadcast %cst_253 : f32 to vector<24x128xf32>
    %649 = arith.mulf %648, %532 : vector<24x128xf32>
    %650 = arith.divf %647, %649 : vector<24x128xf32>
    %cst_254 = arith.constant 1.63098884 : f32
    %651 = vector.broadcast %cst_254 : f32 to vector<24x128xf32>
    %652 = arith.divf %651, %532 : vector<24x128xf32>
    %cst_255 = arith.constant 3.200000e-01 : f32
    %653 = vector.broadcast %cst_255 : f32 to vector<24x128xf32>
    %654 = arith.addf %653, %652 : vector<24x128xf32>
    %cst_256 = arith.constant 1.000000e+00 : f32
    %655 = vector.broadcast %cst_256 : f32 to vector<24x128xf32>
    %656 = arith.divf %655, %654 : vector<24x128xf32>
    %cst_257 = arith.constant 0.000000e+00 : f32
    %657 = vector.broadcast %cst_257 : f32 to vector<24x128xf32>
    %658 = arith.select %12, %17, %657 : vector<24x128xi1>, vector<24x128xf32>
    %c1_i32_258 = arith.constant 1 : i32
    %659 = tpu.dynamic_rotate %658 by %c1_i32_258 dim 1 : vector<24x128xf32>, i32 -> vector<24x128xf32>
    %660 = arith.addf %658, %659 : vector<24x128xf32>
    %c127_i32_259 = arith.constant 127 : i32
    %661 = tpu.dynamic_rotate %658 by %c127_i32_259 dim 1 : vector<24x128xf32>, i32 -> vector<24x128xf32>
    %662 = arith.addf %660, %661 : vector<24x128xf32>
    %c1_i32_260 = arith.constant 1 : i32
    %663 = tpu.dynamic_rotate %662 by %c1_i32_260 dim 0 : vector<24x128xf32>, i32 -> vector<24x128xf32>
    %664 = arith.addf %662, %663 : vector<24x128xf32>
    %c23_i32_261 = arith.constant 23 : i32
    %665 = tpu.dynamic_rotate %662 by %c23_i32_261 dim 0 : vector<24x128xf32>, i32 -> vector<24x128xf32>
    %666 = arith.addf %664, %665 : vector<24x128xf32>
    %cst_262 = arith.constant 9.000000e+00 : f32
    %667 = vector.broadcast %cst_262 : f32 to vector<24x128xf32>
    %668 = arith.mulf %667, %658 : vector<24x128xf32>
    %669 = arith.subf %666, %668 : vector<24x128xf32>
    %cst_263 = arith.constant 4.000000e-02 : f32
    %670 = vector.broadcast %cst_263 : f32 to vector<24x128xf32>
    %671 = arith.mulf %669, %670 : vector<24x128xf32>
    %cst_264 = arith.constant 0.000000e+00 : f32
    %672 = vector.broadcast %cst_264 : f32 to vector<24x128xf32>
    %673 = arith.subf %672, %671 : vector<24x128xf32>
    %674 = arith.mulf %652, %17 : vector<24x128xf32>
    %675 = arith.addf %673, %674 : vector<24x128xf32>
    %676 = arith.mulf %675, %656 : vector<24x128xf32>
    %677 = arith.subf %17, %676 : vector<24x128xf32>
    %678 = arith.mulf %650, %656 : vector<24x128xf32>
    %679 = arith.addf %677, %678 : vector<24x128xf32>
    %cst_265 = arith.constant 0.000000e+00 : f32
    %680 = vector.broadcast %cst_265 : f32 to vector<24x128xf32>
    %681 = arith.select %12, %679, %680 : vector<24x128xi1>, vector<24x128xf32>
    %c1_i32_266 = arith.constant 1 : i32
    %682 = tpu.dynamic_rotate %681 by %c1_i32_266 dim 1 : vector<24x128xf32>, i32 -> vector<24x128xf32>
    %683 = arith.addf %681, %682 : vector<24x128xf32>
    %c127_i32_267 = arith.constant 127 : i32
    %684 = tpu.dynamic_rotate %681 by %c127_i32_267 dim 1 : vector<24x128xf32>, i32 -> vector<24x128xf32>
    %685 = arith.addf %683, %684 : vector<24x128xf32>
    %c1_i32_268 = arith.constant 1 : i32
    %686 = tpu.dynamic_rotate %685 by %c1_i32_268 dim 0 : vector<24x128xf32>, i32 -> vector<24x128xf32>
    %687 = arith.addf %685, %686 : vector<24x128xf32>
    %c23_i32_269 = arith.constant 23 : i32
    %688 = tpu.dynamic_rotate %685 by %c23_i32_269 dim 0 : vector<24x128xf32>, i32 -> vector<24x128xf32>
    %689 = arith.addf %687, %688 : vector<24x128xf32>
    %cst_270 = arith.constant 9.000000e+00 : f32
    %690 = vector.broadcast %cst_270 : f32 to vector<24x128xf32>
    %691 = arith.mulf %690, %681 : vector<24x128xf32>
    %692 = arith.subf %689, %691 : vector<24x128xf32>
    %cst_271 = arith.constant 4.000000e-02 : f32
    %693 = vector.broadcast %cst_271 : f32 to vector<24x128xf32>
    %694 = arith.mulf %692, %693 : vector<24x128xf32>
    %cst_272 = arith.constant 0.000000e+00 : f32
    %695 = vector.broadcast %cst_272 : f32 to vector<24x128xf32>
    %696 = arith.subf %695, %694 : vector<24x128xf32>
    %697 = arith.mulf %652, %679 : vector<24x128xf32>
    %698 = arith.addf %696, %697 : vector<24x128xf32>
    %699 = arith.mulf %698, %656 : vector<24x128xf32>
    %700 = arith.subf %679, %699 : vector<24x128xf32>
    %701 = arith.mulf %650, %656 : vector<24x128xf32>
    %702 = arith.addf %700, %701 : vector<24x128xf32>
    %703 = arith.addf %16, %702 : vector<24x128xf32>
    %704 = arith.subf %703, %16 : vector<24x128xf32>
    %cst_273 = arith.constant 0.000000e+00 : f32
    %705 = vector.broadcast %cst_273 : f32 to vector<24x128xf32>
    %706 = arith.select %12, %702, %705 : vector<24x128xi1>, vector<24x128xf32>
    %c127_i32_274 = arith.constant 127 : i32
    %707 = tpu.dynamic_rotate %706 by %c127_i32_274 dim 1 : vector<24x128xf32>, i32 -> vector<24x128xf32>
    %c1_i32_275 = arith.constant 1 : i32
    %708 = tpu.dynamic_rotate %706 by %c1_i32_275 dim 1 : vector<24x128xf32>, i32 -> vector<24x128xf32>
    %709 = arith.subf %707, %708 : vector<24x128xf32>
    %cst_276 = arith.constant 1.000000e-01 : f32
    %710 = vector.broadcast %cst_276 : f32 to vector<24x128xf32>
    %711 = arith.mulf %709, %710 : vector<24x128xf32>
    %cst_277 = arith.constant 4.905000e+00 : f32
    %712 = vector.broadcast %cst_277 : f32 to vector<24x128xf32>
    %713 = arith.mulf %711, %712 : vector<24x128xf32>
    %714 = arith.subf %502, %713 : vector<24x128xf32>
    %c23_i32_278 = arith.constant 23 : i32
    %715 = tpu.dynamic_rotate %706 by %c23_i32_278 dim 0 : vector<24x128xf32>, i32 -> vector<24x128xf32>
    %c1_i32_279 = arith.constant 1 : i32
    %716 = tpu.dynamic_rotate %706 by %c1_i32_279 dim 0 : vector<24x128xf32>, i32 -> vector<24x128xf32>
    %717 = arith.subf %715, %716 : vector<24x128xf32>
    %cst_280 = arith.constant 1.000000e-01 : f32
    %718 = vector.broadcast %cst_280 : f32 to vector<24x128xf32>
    %719 = arith.mulf %717, %718 : vector<24x128xf32>
    %cst_281 = arith.constant 4.905000e+00 : f32
    %720 = vector.broadcast %cst_281 : f32 to vector<24x128xf32>
    %721 = arith.mulf %719, %720 : vector<24x128xf32>
    %722 = arith.subf %503, %721 : vector<24x128xf32>
    %cst_282 = arith.constant 0.000000e+00 : f32
    %723 = vector.broadcast %cst_282 : f32 to vector<24x128xf32>
    %724 = arith.select %12, %714, %723 : vector<24x128xi1>, vector<24x128xf32>
    %c0_283 = arith.constant 0 : index
    %c0_284 = arith.constant 0 : index
    %725 = vector.load %arg11[%c0_283, %c0_284] : memref<24x128xf32, #tpu.memory_space<vmem>>, vector<24x128xf32>
    tpu.vector_store %arg11[%c0_283, %c0_284], %724 {strides = array<i32>} : memref<24x128xf32, #tpu.memory_space<vmem>>, vector<24x128xf32>,
    %cst_285 = arith.constant 0.000000e+00 : f32
    %726 = vector.broadcast %cst_285 : f32 to vector<24x128xf32>
    %727 = arith.select %12, %722, %726 : vector<24x128xi1>, vector<24x128xf32>
    %c0_286 = arith.constant 0 : index
    %c0_287 = arith.constant 0 : index
    %728 = vector.load %arg12[%c0_286, %c0_287] : memref<24x128xf32, #tpu.memory_space<vmem>>, vector<24x128xf32>
    tpu.vector_store %arg12[%c0_286, %c0_287], %727 {strides = array<i32>} : memref<24x128xf32, #tpu.memory_space<vmem>>, vector<24x128xf32>,
    %cst_288 = arith.constant 0.000000e+00 : f32
    %729 = vector.broadcast %cst_288 : f32 to vector<24x128xf32>
    %730 = arith.select %12, %703, %729 : vector<24x128xi1>, vector<24x128xf32>
    %c0_289 = arith.constant 0 : index
    %c0_290 = arith.constant 0 : index
    %731 = vector.load %arg13[%c0_289, %c0_290] : memref<24x128xf32, #tpu.memory_space<vmem>>, vector<24x128xf32>
    tpu.vector_store %arg13[%c0_289, %c0_290], %730 {strides = array<i32>} : memref<24x128xf32, #tpu.memory_space<vmem>>, vector<24x128xf32>,
    %cst_291 = arith.constant 0.000000e+00 : f32
    %732 = vector.broadcast %cst_291 : f32 to vector<24x128xf32>
    %733 = arith.select %12, %702, %732 : vector<24x128xi1>, vector<24x128xf32>
    %c0_292 = arith.constant 0 : index
    %c0_293 = arith.constant 0 : index
    %734 = vector.load %arg14[%c0_292, %c0_293] : memref<24x128xf32, #tpu.memory_space<vmem>>, vector<24x128xf32>
    tpu.vector_store %arg14[%c0_292, %c0_293], %733 {strides = array<i32>} : memref<24x128xf32, #tpu.memory_space<vmem>>, vector<24x128xf32>,
    %cst_294 = arith.constant 0.000000e+00 : f32
    %735 = vector.broadcast %cst_294 : f32 to vector<24x128xf32>
    %736 = arith.select %12, %650, %735 : vector<24x128xi1>, vector<24x128xf32>
    %c0_295 = arith.constant 0 : index
    %c0_296 = arith.constant 0 : index
    %737 = vector.load %arg15[%c0_295, %c0_296] : memref<24x128xf32, #tpu.memory_space<vmem>>, vector<24x128xf32>
    tpu.vector_store %arg15[%c0_295, %c0_296], %736 {strides = array<i32>} : memref<24x128xf32, #tpu.memory_space<vmem>>, vector<24x128xf32>,
    %cst_297 = arith.constant 0.000000e+00 : f32
    %738 = vector.broadcast %cst_297 : f32 to vector<24x128xf32>
    %739 = arith.select %12, %704, %738 : vector<24x128xi1>, vector<24x128xf32>
    %c0_298 = arith.constant 0 : index
    %c0_299 = arith.constant 0 : index
    %740 = vector.load %arg16[%c0_298, %c0_299] : memref<24x128xf32, #tpu.memory_space<vmem>>, vector<24x128xf32>
    tpu.vector_store %arg16[%c0_298, %c0_299], %739 {strides = array<i32>} : memref<24x128xf32, #tpu.memory_space<vmem>>, vector<24x128xf32>,
    %cst_300 = arith.constant 0.000000e+00 : f32
    %741 = vector.broadcast %cst_300 : f32 to vector<24x128xf32>
    %742 = arith.select %12, %496, %741 : vector<24x128xi1>, vector<24x128xf32>
    %c0_301 = arith.constant 0 : index
    %c0_302 = arith.constant 0 : index
    %743 = vector.load %arg17[%c0_301, %c0_302] : memref<24x128xf32, #tpu.memory_space<vmem>>, vector<24x128xf32>
    tpu.vector_store %arg17[%c0_301, %c0_302], %742 {strides = array<i32>} : memref<24x128xf32, #tpu.memory_space<vmem>>, vector<24x128xf32>,
    return
  }
  func.func @transform_0(%arg0: i32) -> (i32, i32) {
    %c0_i32 = arith.constant 0 : i32
    %c0_i32_0 = arith.constant 0 : i32
    %c0_i32_1 = arith.constant 0 : i32
    return %c0_i32, %c0_i32_0 : i32, i32
  }
  func.func @transform_1(%arg0: i32) -> (i32, i32) {
    %c0_i32 = arith.constant 0 : i32
    %c0_i32_0 = arith.constant 0 : i32
    %c0_i32_1 = arith.constant 0 : i32
    return %c0_i32, %c0_i32_0 : i32, i32
  }
  func.func @transform_2(%arg0: i32) -> (i32, i32) {
    %c0_i32 = arith.constant 0 : i32
    %c0_i32_0 = arith.constant 0 : i32
    %c0_i32_1 = arith.constant 0 : i32
    return %c0_i32, %c0_i32_0 : i32, i32
  }
  func.func @transform_3(%arg0: i32) -> (i32, i32) {
    %c0_i32 = arith.constant 0 : i32
    %c0_i32_0 = arith.constant 0 : i32
    %c0_i32_1 = arith.constant 0 : i32
    return %c0_i32, %c0_i32_0 : i32, i32
  }
  func.func @transform_4(%arg0: i32) -> (i32, i32) {
    %c0_i32 = arith.constant 0 : i32
    %c0_i32_0 = arith.constant 0 : i32
    %c0_i32_1 = arith.constant 0 : i32
    return %c0_i32, %c0_i32_0 : i32, i32
  }
  func.func @transform_5(%arg0: i32) -> (i32, i32) {
    %c0_i32 = arith.constant 0 : i32
    %c0_i32_0 = arith.constant 0 : i32
    %c0_i32_1 = arith.constant 0 : i32
    return %c0_i32, %c0_i32_0 : i32, i32
  }
  func.func @transform_6(%arg0: i32) -> (i32, i32) {
    %c0_i32 = arith.constant 0 : i32
    %c0_i32_0 = arith.constant 0 : i32
    %c0_i32_1 = arith.constant 0 : i32
    return %c0_i32, %c0_i32_0 : i32, i32
  }
  func.func @transform_7(%arg0: i32) -> (i32, i32) {
    %c0_i32 = arith.constant 0 : i32
    %c0_i32_0 = arith.constant 0 : i32
    %c0_i32_1 = arith.constant 0 : i32
    return %c0_i32, %c0_i32_0 : i32, i32
  }
  func.func @transform_8(%arg0: i32) -> (i32, i32) {
    %c0_i32 = arith.constant 0 : i32
    %c0_i32_0 = arith.constant 0 : i32
    %c0_i32_1 = arith.constant 0 : i32
    return %c0_i32, %c0_i32_0 : i32, i32
  }
  func.func @transform_9(%arg0: i32) -> (i32, i32) {
    %c0_i32 = arith.constant 0 : i32
    %c0_i32_0 = arith.constant 0 : i32
    %c0_i32_1 = arith.constant 0 : i32
    return %c0_i32, %c0_i32_0 : i32, i32
  }
  func.func @transform_10(%arg0: i32) -> (i32, i32) {
    %c0_i32 = arith.constant 0 : i32
    %c0_i32_0 = arith.constant 0 : i32
    %c0_i32_1 = arith.constant 0 : i32
    return %c0_i32, %c0_i32_0 : i32, i32
  }
  func.func @transform_11(%arg0: i32) -> (i32, i32) {
    %c0_i32 = arith.constant 0 : i32
    %c0_i32_0 = arith.constant 0 : i32
    %c0_i32_1 = arith.constant 0 : i32
    return %c0_i32, %c0_i32_0 : i32, i32
  }
  func.func @transform_12(%arg0: i32) -> (i32, i32) {
    %c0_i32 = arith.constant 0 : i32
    %c0_i32_0 = arith.constant 0 : i32
    %c0_i32_1 = arith.constant 0 : i32
    return %c0_i32, %c0_i32_0 : i32, i32
  }
  func.func @transform_13(%arg0: i32) -> (i32, i32) {
    %c0_i32 = arith.constant 0 : i32
    %c0_i32_0 = arith.constant 0 : i32
    %c0_i32_1 = arith.constant 0 : i32
    return %c0_i32, %c0_i32_0 : i32, i32
  }
  func.func @transform_14(%arg0: i32) -> (i32, i32) {
    %c0_i32 = arith.constant 0 : i32
    %c0_i32_0 = arith.constant 0 : i32
    %c0_i32_1 = arith.constant 0 : i32
    return %c0_i32, %c0_i32_0 : i32, i32
  }
  func.func @transform_15(%arg0: i32) -> (i32, i32) {
    %c0_i32 = arith.constant 0 : i32
    %c0_i32_0 = arith.constant 0 : i32
    %c0_i32_1 = arith.constant 0 : i32
    return %c0_i32, %c0_i32_0 : i32, i32
  }
  func.func @transform_16(%arg0: i32) -> (i32, i32) {
    %c0_i32 = arith.constant 0 : i32
    %c0_i32_0 = arith.constant 0 : i32
    %c0_i32_1 = arith.constant 0 : i32
    return %c0_i32, %c0_i32_0 : i32, i32
  }
}

</mosaic_0001>

<llo_original>
// kernel: ai4swe_forward.1
$region0: #{ai4swe_forward.1}
  #allocation0 [shape = 'u32[]', space=smem, size = 0x4, offset = 0x4, fixed_abs, tag = 'smem constant byte address 0x4 - core index']
  #allocation1 [shape = 'u32[144,128]{1,0:T(1,128)}', space=vmem, size = 0x12000, scoped, tag = 'internal scratch']
  %s0 = inlined_call_operand.hbm [shape: f32[24,128], index: 0, kind: input, shape index: {}, may-alias: {0,10}]
  %s1 = inlined_call_operand.hbm [shape: f32[24,128], index: 1, kind: input, shape index: {}, may-alias: {1,11}]
  %s2 = inlined_call_operand.hbm [shape: f32[24,128], index: 2, kind: input, shape index: {}]
  %s3 = inlined_call_operand.hbm [shape: f32[24,128], index: 3, kind: input, shape index: {}, may-alias: {3,12}]
  %s4 = inlined_call_operand.hbm [shape: f32[24,128], index: 4, kind: input, shape index: {}, may-alias: {4,13}]
  %s5 = inlined_call_operand.hbm [shape: f32[24,128], index: 5, kind: input, shape index: {}, may-alias: {5,15}]
  %s6 = inlined_call_operand.hbm [shape: f32[24,128], index: 6, kind: input, shape index: {}]
  %s7 = inlined_call_operand.hbm [shape: f32[24,128], index: 7, kind: input, shape index: {}]
  %s8 = inlined_call_operand.hbm [shape: f32[24,128], index: 8, kind: input, shape index: {}]
  %s9 = inlined_call_operand.hbm [shape: f32[24,128], index: 9, kind: input, shape index: {}]
  %s10 = inlined_call_operand.hbm [shape: f32[24,128], index: 10, kind: output, shape index: {0}, may-alias: {0,10}]
  %s11 = inlined_call_operand.hbm [shape: f32[24,128], index: 11, kind: output, shape index: {1}, may-alias: {1,11}]
  %s12 = inlined_call_operand.hbm [shape: f32[24,128], index: 12, kind: output, shape index: {2}, may-alias: {3,12}]
  %s13 = inlined_call_operand.hbm [shape: f32[24,128], index: 13, kind: output, shape index: {3}, may-alias: {4,13}]
  %s14 = inlined_call_operand.hbm [shape: f32[24,128], index: 14, kind: output, shape index: {4}]
  %s15 = inlined_call_operand.hbm [shape: f32[24,128], index: 15, kind: output, shape index: {5}, may-alias: {5,15}]
  %s16 = inlined_call_operand.hbm [shape: f32[24,128], index: 16, kind: output, shape index: {6}]
  %17 = xla_tuple %s10, %s11, %s12, %s13, %s14, %s15, %s16
  %s18 = sld [smem:[#allocation0]]
  $region138: #{ai4swe_forward.1} parent=0
    _
  %s20 = ssub.s32 1, %s18
  %s21 = scalar_select 0, %s20, %s18
  $region1: #{ai4swe_forward.1} parent=0
    #allocation2 [shape = 'u8[12288]{0}', space=vmem, size = 0x3000, scoped, tag = 'input window, operand 0, single buffered']
    #allocation3 [shape = 's32[1]{0}', space=sflag, size = 0x4, scoped, tag = 'scoped memory for ai4swe_forward.1']
    #allocation4 [shape = 's32[1]{0}', space=sflag, size = 0x4, scoped, tag = 'scoped memory for ai4swe_forward.1']
    #allocation5 [shape = 'u8[12288]{0}', space=vmem, size = 0x3000, scoped, tag = 'input window, operand 1, single buffered']
    #allocation6 [shape = 's32[1]{0}', space=sflag, size = 0x4, scoped, tag = 'scoped memory for ai4swe_forward.1']
    #allocation7 [shape = 'u8[12288]{0}', space=vmem, size = 0x3000, scoped, tag = 'input window, operand 2, single buffered']
    #allocation8 [shape = 'u8[12288]{0}', space=vmem, size = 0x3000, scoped, tag = 'input window, operand 3, single buffered']
    #allocation9 [shape = 's32[1]{0}', space=sflag, size = 0x4, scoped, tag = 'scoped memory for ai4swe_forward.1']
    #allocation10 [shape = 'u8[12288]{0}', space=vmem, size = 0x3000, scoped, tag = 'input window, operand 4, single buffered']
    #allocation11 [shape = 'u8[12288]{0}', space=vmem, size = 0x3000, scoped, tag = 'input window, operand 5, single buffered']
    #allocation12 [shape = 's32[1]{0}', space=sflag, size = 0x4, scoped, tag = 'scoped memory for ai4swe_forward.1']
    #allocation13 [shape = 'u8[12288]{0}', space=vmem, size = 0x3000, scoped, tag = 'input window, operand 6, single buffered']
    #allocation14 [shape = 'u8[12288]{0}', space=vmem, size = 0x3000, scoped, tag = 'input window, operand 7, single buffered']
    #allocation15 [shape = 's32[1]{0}', space=sflag, size = 0x4, scoped, tag = 'scoped memory for ai4swe_forward.1']
    #allocation16 [shape = 'u8[12288]{0}', space=vmem, size = 0x3000, scoped, tag = 'input window, operand 8, single buffered']
    #allocation17 [shape = 'u8[12288]{0}', space=vmem, size = 0x3000, scoped, tag = 'input window, operand 9, single buffered']
    #allocation18 [shape = 's32[1]{0}', space=sflag, size = 0x4, scoped, tag = 'scoped memory for ai4swe_forward.1']
    #allocation19 [shape = 'u8[12288]{0}', space=vmem, size = 0x3000, scoped, tag = 'output window, operand 0, single buffered']
    #allocation20 [shape = 'u8[12288]{0}', space=vmem, size = 0x3000, scoped, tag = 'output window, operand 1, single buffered']
    #allocation21 [shape = 's32[1]{0}', space=sflag, size = 0x4, scoped, tag = 'scoped memory for ai4swe_forward.1']
    #allocation22 [shape = 'u8[12288]{0}', space=vmem, size = 0x3000, scoped, tag = 'output window, operand 2, single buffered']
    #allocation23 [shape = 'u8[12288]{0}', space=vmem, size = 0x3000, scoped, tag = 'output window, operand 3, single buffered']
    #allocation24 [shape = 's32[1]{0}', space=sflag, size = 0x4, scoped, tag = 'scoped memory for ai4swe_forward.1']
    #allocation25 [shape = 'u8[12288]{0}', space=vmem, size = 0x3000, scoped, tag = 'output window, operand 4, single buffered']
    #allocation26 [shape = 'u8[12288]{0}', space=vmem, size = 0x3000, scoped, tag = 'output window, operand 5, single buffered']
    #allocation27 [shape = 's32[1]{0}', space=sflag, size = 0x4, scoped, tag = 'scoped memory for ai4swe_forward.1']
    #allocation28 [shape = 'u8[12288]{0}', space=vmem, size = 0x3000, scoped, tag = 'output window, operand 6, single buffered']
    %22 = vsyncpa [#allocation3], 0
    %23 = vsyncpa [#allocation6], 0
    %24 = vsyncpa [#allocation9], 0
    %25 = vsyncpa [#allocation12], 0
    %26 = vsyncpa [#allocation15], 0
    %27 = vsyncpa [#allocation18], 0
    %28 = vsyncpa [#allocation4], 0
    %29 = vsyncpa [#allocation21], 0
    %30 = vsyncpa [#allocation24], 0
    %31 = vsyncpa [#allocation27], 0
    // Predicated region
    $region2: #{ai4swe_forward.1} parent=1 // pred_check
      _
    $region3: #{ai4swe_forward.1} parent=1 // pred_check_branch
      %33 = sbr.rel (0) target = $region5
    $region4: #{ai4swe_forward.1} parent=1 // pred_region
      %s35 = ssub.s32 384, 384
      %36 = vsyncadd [#allocation3], %s35
      %s37 = sshll.u32 [#allocation2], 4
      %s38 = int_to_ptr.vmem [resolvable:$true] %s37
      %43 = dma.hbm_to_vmem [thread:$0]  %s0, 384, %s38, [#allocation3], 128, 128, 8
    $region5: #{ai4swe_forward.1} parent=1 // pred_fallthru
      _
    // Predicated region
    $region6: #{ai4swe_forward.1} parent=1 // pred_check
      _
    $region7: #{ai4swe_forward.1} parent=1 // pred_check_branch
      %45 = sbr.rel (0) target = $region9
    $region8: #{ai4swe_forward.1} parent=1 // pred_region
      %s47 = ssub.s32 384, 384
      %48 = vsyncadd [#allocation6], %s47
      %s49 = sshll.u32 [#allocation5], 4
      %s50 = int_to_ptr.vmem [resolvable:$true] %s49
      %55 = dma.hbm_to_vmem [thread:$0]  %s1, 384, %s50, [#allocation6], 128, 128, 8
    $region9: #{ai4swe_forward.1} parent=1 // pred_fallthru
      _
    // Predicated region
    $region10: #{ai4swe_forward.1} parent=1 // pred_check
      _
    $region11: #{ai4swe_forward.1} parent=1 // pred_check_branch
      %57 = sbr.rel (0) target = $region13
    $region12: #{ai4swe_forward.1} parent=1 // pred_region
      %s59 = ssub.s32 384, 384
      %60 = vsyncadd [#allocation6], %s59
      %s61 = sshll.u32 [#allocation7], 4
      %s62 = int_to_ptr.vmem [resolvable:$true] %s61
      %67 = dma.hbm_to_vmem [thread:$0]  %s2, 384, %s62, [#allocation6], 128, 128, 8
    $region13: #{ai4swe_forward.1} parent=1 // pred_fallthru
      _
    // Predicated region
    $region14: #{ai4swe_forward.1} parent=1 // pred_check
      _
    $region15: #{ai4swe_forward.1} parent=1 // pred_check_branch
      %69 = sbr.rel (0) target = $region17
    $region16: #{ai4swe_forward.1} parent=1 // pred_region
      %s71 = ssub.s32 384, 384
      %72 = vsyncadd [#allocation9], %s71
      %s73 = sshll.u32 [#allocation8], 4
      %s74 = int_to_ptr.vmem [resolvable:$true] %s73
      %79 = dma.hbm_to_vmem [thread:$0]  %s3, 384, %s74, [#allocation9], 128, 128, 8
    $region17: #{ai4swe_forward.1} parent=1 // pred_fallthru
      _
    // Predicated region
    $region18: #{ai4swe_forward.1} parent=1 // pred_check
      _
    $region19: #{ai4swe_forward.1} parent=1 // pred_check_branch
      %81 = sbr.rel (0) target = $region21
    $region20: #{ai4swe_forward.1} parent=1 // pred_region
      %s83 = ssub.s32 384, 384
      %84 = vsyncadd [#allocation9], %s83
      %s85 = sshll.u32 [#allocation10], 4
      %s86 = int_to_ptr.vmem [resolvable:$true] %s85
      %91 = dma.hbm_to_vmem [thread:$0]  %s4, 384, %s86, [#allocation9], 128, 128, 8
    $region21: #{ai4swe_forward.1} parent=1 // pred_fallthru
      _
    // Predicated region
    $region22: #{ai4swe_forward.1} parent=1 // pred_check
      _
    $region23: #{ai4swe_forward.1} parent=1 // pred_check_branch
      %93 = sbr.rel (0) target = $region25
    $region24: #{ai4swe_forward.1} parent=1 // pred_region
      %s95 = ssub.s32 384, 384
      %96 = vsyncadd [#allocation12], %s95
      %s97 = sshll.u32 [#allocation11], 4
      %s98 = int_to_ptr.vmem [resolvable:$true] %s97
      %103 = dma.hbm_to_vmem [thread:$0]  %s5, 384, %s98, [#allocation12], 128, 128, 8
    $region25: #{ai4swe_forward.1} parent=1 // pred_fallthru
      _
    // Predicated region
    $region26: #{ai4swe_forward.1} parent=1 // pred_check
      _
    $region27: #{ai4swe_forward.1} parent=1 // pred_check_branch
      %105 = sbr.rel (0) target = $region29
    $region28: #{ai4swe_forward.1} parent=1 // pred_region
      %s107 = ssub.s32 384, 384
      %108 = vsyncadd [#allocation12], %s107
      %s109 = sshll.u32 [#allocation13], 4
      %s110 = int_to_ptr.vmem [resolvable:$true] %s109
      %115 = dma.hbm_to_vmem [thread:$0]  %s6, 384, %s110, [#allocation12], 128, 128, 8
    $region29: #{ai4swe_forward.1} parent=1 // pred_fallthru
      _
    // Predicated region
    $region30: #{ai4swe_forward.1} parent=1 // pred_check
      _
    $region31: #{ai4swe_forward.1} parent=1 // pred_check_branch
      %117 = sbr.rel (0) target = $region33
    $region32: #{ai4swe_forward.1} parent=1 // pred_region
      %s119 = ssub.s32 384, 384
      %120 = vsyncadd [#allocation15], %s119
      %s121 = sshll.u32 [#allocation14], 4
      %s122 = int_to_ptr.vmem [resolvable:$true] %s121
      %127 = dma.hbm_to_vmem [thread:$0]  %s7, 384, %s122, [#allocation15], 128, 128, 8
    $region33: #{ai4swe_forward.1} parent=1 // pred_fallthru
      _
    // Predicated region
    $region34: #{ai4swe_forward.1} parent=1 // pred_check
      _
    $region35: #{ai4swe_forward.1} parent=1 // pred_check_branch
      %129 = sbr.rel (0) target = $region37
    $region36: #{ai4swe_forward.1} parent=1 // pred_region
      %s131 = ssub.s32 384, 384
      %132 = vsyncadd [#allocation15], %s131
      %s133 = sshll.u32 [#allocation16], 4
      %s134 = int_to_ptr.vmem [resolvable:$true] %s133
      %139 = dma.hbm_to_vmem [thread:$0]  %s8, 384, %s134, [#allocation15], 128, 128, 8
    $region37: #{ai4swe_forward.1} parent=1 // pred_fallthru
      _
    // Predicated region
    $region38: #{ai4swe_forward.1} parent=1 // pred_check
      _
    $region39: #{ai4swe_forward.1} parent=1 // pred_check_branch
      %141 = sbr.rel (0) target = $region41
    $region40: #{ai4swe_forward.1} parent=1 // pred_region
      %s143 = ssub.s32 384, 384
      %144 = vsyncadd [#allocation18], %s143
      %s145 = sshll.u32 [#allocation17], 4
      %s146 = int_to_ptr.vmem [resolvable:$true] %s145
      %151 = dma.hbm_to_vmem [thread:$0]  %s9, 384, %s146, [#allocation18], 128, 128, 8
    $region41: #{ai4swe_forward.1} parent=1 // pred_fallthru
      _
    // Predicated region
    $region42: #{ai4swe_forward.1} parent=1 // pred_check
      _
    $region43: #{ai4swe_forward.1} parent=1 // pred_check_branch
      %153 = sbr.rel (0) target = $region45
    $region44: #{ai4swe_forward.1} parent=1 // pred_region
      %154 = dma.done [#allocation3], 384
    $region45: #{ai4swe_forward.1} parent=1 // pred_fallthru
      _
    // Predicated region
    $region46: #{ai4swe_forward.1} parent=1 // pred_check
      _
    $region47: #{ai4swe_forward.1} parent=1 // pred_check_branch
      %156 = sbr.rel (0) target = $region49
    $region48: #{ai4swe_forward.1} parent=1 // pred_region
      %157 = dma.done [#allocation6], 384
    $region49: #{ai4swe_forward.1} parent=1 // pred_fallthru
      _
    // Predicated region
    $region50: #{ai4swe_forward.1} parent=1 // pred_check
      _
    $region51: #{ai4swe_forward.1} parent=1 // pred_check_branch
      %159 = sbr.rel (0) target = $region53
    $region52: #{ai4swe_forward.1} parent=1 // pred_region
      %160 = dma.done [#allocation6], 384
    $region53: #{ai4swe_forward.1} parent=1 // pred_fallthru
      _
    // Predicated region
    $region54: #{ai4swe_forward.1} parent=1 // pred_check
      _
    $region55: #{ai4swe_forward.1} parent=1 // pred_check_branch
      %162 = sbr.rel (0) target = $region57
    $region56: #{ai4swe_forward.1} parent=1 // pred_region
      %163 = dma.done [#allocation9], 384
    $region57: #{ai4swe_forward.1} parent=1 // pred_fallthru
      _
    // Predicated region
    $region58: #{ai4swe_forward.1} parent=1 // pred_check
      _
    $region59: #{ai4swe_forward.1} parent=1 // pred_check_branch
      %165 = sbr.rel (0) target = $region61
    $region60: #{ai4swe_forward.1} parent=1 // pred_region
      %166 = dma.done [#allocation9], 384
    $region61: #{ai4swe_forward.1} parent=1 // pred_fallthru
      _
    // Predicated region
    $region62: #{ai4swe_forward.1} parent=1 // pred_check
      _
    $region63: #{ai4swe_forward.1} parent=1 // pred_check_branch
      %168 = sbr.rel (0) target = $region65
    $region64: #{ai4swe_forward.1} parent=1 // pred_region
      %169 = dma.done [#allocation12], 384
    $region65: #{ai4swe_forward.1} parent=1 // pred_fallthru
      _
    // Predicated region
    $region66: #{ai4swe_forward.1} parent=1 // pred_check
      _
    $region67: #{ai4swe_forward.1} parent=1 // pred_check_branch
      %171 = sbr.rel (0) target = $region69
    $region68: #{ai4swe_forward.1} parent=1 // pred_region
      %172 = dma.done [#allocation12], 384
    $region69: #{ai4swe_forward.1} parent=1 // pred_fallthru
      _
    // Predicated region
    $region70: #{ai4swe_forward.1} parent=1 // pred_check
      _
    $region71: #{ai4swe_forward.1} parent=1 // pred_check_branch
      %174 = sbr.rel (0) target = $region73
    $region72: #{ai4swe_forward.1} parent=1 // pred_region
      %175 = dma.done [#allocation15], 384
    $region73: #{ai4swe_forward.1} parent=1 // pred_fallthru
      _
    // Predicated region
    $region74: #{ai4swe_forward.1} parent=1 // pred_check
      _
    $region75: #{ai4swe_forward.1} parent=1 // pred_check_branch
      %177 = sbr.rel (0) target = $region77
    $region76: #{ai4swe_forward.1} parent=1 // pred_region
      %178 = dma.done [#allocation15], 384
    $region77: #{ai4swe_forward.1} parent=1 // pred_fallthru
      _
    // Predicated region
    $region78: #{ai4swe_forward.1} parent=1 // pred_check
      _
    $region79: #{ai4swe_forward.1} parent=1 // pred_check_branch
      %180 = sbr.rel (0) target = $region81
    $region80: #{ai4swe_forward.1} parent=1 // pred_region
      %181 = dma.done [#allocation18], 384
    $region81: #{ai4swe_forward.1} parent=1 // pred_fallthru
      _
    %v182 = vlaneseq
    %v183 = vshrl.u32 %v182, 7
    %v184 = vadd.s32 %v183, 8
    %v185 = vadd.s32 %v183, 16
    %v186 = vlaneseq
    %v187 = vand.u32 %v186, 127
    %vm188 = vcmp.ge.s32.totalorder %v183, 1
    %vm189 = vcmp.ge.s32.totalorder %v184, 1
    %vm190 = vcmp.ge.s32.totalorder %v185, 1
    %vm191 = vcmp.le.s32.totalorder %v183, 16
    %vm192 = vcmp.le.s32.totalorder %v184, 16
    %vm193 = vcmp.le.s32.totalorder %v185, 16
    %vm194 = vmand %vm188, %vm191
    %vm195 = vmand %vm189, %vm192
    %vm196 = vmand %vm190, %vm193
    %vm197 = vcmp.ge.s32.totalorder %v187, 1
    %vm198 = vmand %vm194, %vm197
    %vm199 = vmand %vm195, %vm197
    %vm200 = vmand %vm196, %vm197
    %vm201 = vcmp.le.s32.totalorder %v187, 16
    %vm202 = vmand %vm198, %vm201
    %vm203 = vmand %vm199, %vm201
    %vm204 = vmand %vm200, %vm201
    %v205 = vld [vmem:[#allocation2] sm:$0xff]
    %v206 = vld [vmem:[#allocation2 + $0x8] sm:$0xff]
    %v207 = vld [vmem:[#allocation2 + $0x10] sm:$0xff]
    %v208 = vld [vmem:[#allocation5] sm:$0xff]
    %v209 = vld [vmem:[#allocation5 + $0x8] sm:$0xff]
    %v210 = vld [vmem:[#allocation5 + $0x10] sm:$0xff]
    %v211 = vld [vmem:[#allocation7] sm:$0xff]
    %v212 = vld [vmem:[#allocation7 + $0x8] sm:$0xff]
    %v213 = vld [vmem:[#allocation7 + $0x10] sm:$0xff]
    %v214 = vld [vmem:[#allocation8] sm:$0xff]
    %v215 = vld [vmem:[#allocation8 + $0x8] sm:$0xff]
    %v216 = vld [vmem:[#allocation8 + $0x10] sm:$0xff]
    %v217 = vld [vmem:[#allocation10] sm:$0xff]
    %v218 = vld [vmem:[#allocation10 + $0x8] sm:$0xff]
    %v219 = vld [vmem:[#allocation10 + $0x10] sm:$0xff]
    %v220 = vld [vmem:[#allocation11] sm:$0xff]
    %v221 = vld [vmem:[#allocation11 + $0x8] sm:$0xff]
    %v222 = vld [vmem:[#allocation11 + $0x10] sm:$0xff]
    %v223 = vld [vmem:[#allocation13] sm:$0xff]
    %v224 = vld [vmem:[#allocation13 + $0x8] sm:$0xff]
    %v225 = vld [vmem:[#allocation13 + $0x10] sm:$0xff]
    %v226 = vld [vmem:[#allocation14] sm:$0xff]
    %v227 = vld [vmem:[#allocation14 + $0x8] sm:$0xff]
    %v228 = vld [vmem:[#allocation14 + $0x10] sm:$0xff]
    %v229 = vld [vmem:[#allocation16] sm:$0xff]
    %v230 = vld [vmem:[#allocation16 + $0x8] sm:$0xff]
    %v231 = vld [vmem:[#allocation16 + $0x10] sm:$0xff]
    %v232 = vld [vmem:[#allocation17] sm:$0xff]
    %v233 = vld [vmem:[#allocation17 + $0x8] sm:$0xff]
    %v234 = vld [vmem:[#allocation17 + $0x10] sm:$0xff]
    %v235 = vsel %vm202, %v205, 0.0
    %v236 = vsel %vm203, %v206, 0.0
    %v237 = vsel %vm204, %v207, 0.0
    %vm238 = vcmp.eq.s32.totalorder %v183, 0
    %vm239 = vcmp.eq.s32.totalorder %v184, 0
    %vm240 = vcmp.eq.s32.totalorder %v185, 0
    %v241 = vrot.slane %v235, 1
    %v242 = vrot.slane %v236, 1
    %v243 = vrot.slane %v237, 1
    %vm244 = vcmp.lt.s32.totalorder %v183, 7
    %v245 = vsel %vm244, %v242, %v243
    %v246 = vsel %vm244, %v241, %v242
    %v247 = vsel %vm244, %v243, %v241
    %v248 = vsel %vm238, %v246, %v235
    %v249 = vsel %vm239, %v245, %v236
    %v250 = vsel %vm240, %v247, %v237
    %vm251 = vcmp.eq.s32.totalorder %v183, 17
    %vm252 = vcmp.eq.s32.totalorder %v184, 17
    %vm253 = vcmp.eq.s32.totalorder %v185, 17
    %v254 = vrot.slane %v248, 7
    %v255 = vrot.slane %v249, 7
    %v256 = vrot.slane %v250, 7
    %vm257 = vcmp.lt.s32.totalorder %v183, 1
    %v258 = vsel %vm257, %v255, %v256
    %v259 = vsel %vm257, %v254, %v255
    %v260 = vsel %vm257, %v256, %v254
    %v261 = vsel %vm251, %v260, %v248
    %v262 = vsel %vm252, %v259, %v249
    %v263 = vsel %vm253, %v258, %v250
    %v264 = vsel %vm202, %v208, 0.0
    %v265 = vsel %vm203, %v209, 0.0
    %v266 = vsel %vm204, %v210, 0.0
    %vm267 = vcmp.eq.s32.totalorder %v187, 0
    %268 = vrot.lane.b32.xlu0 %v264, 127
    %v269 = vpop.permute.xlu0 %268
    %270 = vrot.lane.b32.xlu0 %v265, 127
    %v271 = vpop.permute.xlu0 %270
    %272 = vrot.lane.b32.xlu0 %v266, 127
    %v273 = vpop.permute.xlu0 %272
    %v274 = vsel %vm267, %v269, %v264
    %v275 = vsel %vm267, %v271, %v265
    %v276 = vsel %vm267, %v273, %v266
    %vm277 = vcmp.eq.s32.totalorder %v187, 17
    %278 = vrot.lane.b32.xlu0 %v274, 1
    %v279 = vpop.permute.xlu0 %278
    %280 = vrot.lane.b32.xlu0 %v275, 1
    %v281 = vpop.permute.xlu0 %280
    %282 = vrot.lane.b32.xlu0 %v276, 1
    %v283 = vpop.permute.xlu0 %282
    %v284 = vsel %vm277, %v279, %v274
    %v285 = vsel %vm277, %v281, %v275
    %v286 = vsel %vm277, %v283, %v276
    %vm287 = vmor %vm238, %vm251
    %vm288 = vmor %vm239, %vm252
    %vm289 = vmor %vm240, %vm253
    %v290 = vsel %vm287, 0.0, %v284
    %v291 = vsel %vm288, 0.0, %v285
    %v292 = vsel %vm289, 0.0, %v286
    %293 = vrot.lane.b32.xlu0 %v261, 1
    %v294 = vpop.permute.xlu0 %293
    %295 = vrot.lane.b32.xlu0 %v262, 1
    %v296 = vpop.permute.xlu0 %295
    %297 = vrot.lane.b32.xlu0 %v263, 1
    %v298 = vpop.permute.xlu0 %297
    %299 = vrot.lane.b32.xlu0 %v261, 127
    %v300 = vpop.permute.xlu0 %299
    %301 = vrot.lane.b32.xlu0 %v262, 127
    %v302 = vpop.permute.xlu0 %301
    %303 = vrot.lane.b32.xlu0 %v263, 127
    %v304 = vpop.permute.xlu0 %303
    %v305 = vadd.f32 %v261, %v294
    %v306 = vadd.f32 %v262, %v296
    %v307 = vadd.f32 %v263, %v298
    %v308 = vadd.f32 %v305, %v300
    %v309 = vadd.f32 %v306, %v302
    %v310 = vadd.f32 %v307, %v304
    %v311 = vrot.slane %v308, 7
    %v312 = vrot.slane %v309, 7
    %v313 = vrot.slane %v310, 7
    %v314 = vsel %vm257, %v312, %v313
    %v315 = vsel %vm257, %v311, %v312
    %v316 = vsel %vm257, %v313, %v311
    %v317 = vadd.f32 %v308, %v316
    %v318 = vadd.f32 %v309, %v315
    %v319 = vadd.f32 %v310, %v314
    %v320 = vrot.slane %v308, 1
    %v321 = vrot.slane %v309, 1
    %v322 = vrot.slane %v310, 1
    %v323 = vsel %vm244, %v321, %v322
    %v324 = vsel %vm244, %v320, %v321
    %v325 = vsel %vm244, %v322, %v320
    %v326 = vadd.f32 %v317, %v324
    %v327 = vadd.f32 %v318, %v323
    %v328 = vadd.f32 %v319, %v325
    %v329 = vmul.f32 %v261, 9.0
    %v330 = vmul.f32 %v262, 9.0
    %v331 = vmul.f32 %v263, 9.0
    %v332 = vsub.f32 %v326, %v329
    %v333 = vsub.f32 %v327, %v330
    %v334 = vsub.f32 %v328, %v331
    %v335 = vmul.f32 %v332, 0.04
    %v336 = vmul.f32 %v333, 0.04
    %v337 = vmul.f32 %v334, 0.04
    %v338 = vsub.f32 %v300, %v294
    %v339 = vsub.f32 %v302, %v296
    %v340 = vsub.f32 %v304, %v298
    %v341 = vmul.f32 %v338, 0.1
    %v342 = vmul.f32 %v339, 0.1
    %v343 = vmul.f32 %v340, 0.1
    %v344 = vrot.slane %v261, 1
    %v345 = vrot.slane %v262, 1
    %v346 = vrot.slane %v263, 1
    %v347 = vsel %vm244, %v345, %v346
    %v348 = vsel %vm244, %v344, %v345
    %v349 = vsel %vm244, %v346, %v344
    %v350 = vrot.slane %v261, 7
    %v351 = vrot.slane %v262, 7
    %v352 = vrot.slane %v263, 7
    %v353 = vsel %vm257, %v351, %v352
    %v354 = vsel %vm257, %v350, %v351
    %v355 = vsel %vm257, %v352, %v350
    %v356 = vsub.f32 %v348, %v355
    %v357 = vsub.f32 %v347, %v354
    %v358 = vsub.f32 %v349, %v353
    %v359 = vmul.f32 %v356, 0.1
    %v360 = vmul.f32 %v357, 0.1
    %v361 = vmul.f32 %v358, 0.1
    %362 = vrot.lane.b32.xlu0 %v290, 1
    %v363 = vpop.permute.xlu0 %362
    %364 = vrot.lane.b32.xlu0 %v291, 1
    %v365 = vpop.permute.xlu0 %364
    %366 = vrot.lane.b32.xlu0 %v292, 1
    %v367 = vpop.permute.xlu0 %366
    %368 = vrot.lane.b32.xlu0 %v290, 127
    %v369 = vpop.permute.xlu0 %368
    %370 = vrot.lane.b32.xlu0 %v291, 127
    %v371 = vpop.permute.xlu0 %370
    %372 = vrot.lane.b32.xlu0 %v292, 127
    %v373 = vpop.permute.xlu0 %372
    %v374 = vadd.f32 %v290, %v363
    %v375 = vadd.f32 %v291, %v365
    %v376 = vadd.f32 %v292, %v367
    %v377 = vadd.f32 %v374, %v369
    %v378 = vadd.f32 %v375, %v371
    %v379 = vadd.f32 %v376, %v373
    %v380 = vrot.slane %v377, 7
    %v381 = vrot.slane %v378, 7
    %v382 = vrot.slane %v379, 7
    %v383 = vsel %vm257, %v381, %v382
    %v384 = vsel %vm257, %v380, %v381
    %v385 = vsel %vm257, %v382, %v380
    %v386 = vadd.f32 %v377, %v385
    %v387 = vadd.f32 %v378, %v384
    %v388 = vadd.f32 %v379, %v383
    %v389 = vrot.slane %v377, 1
    %v390 = vrot.slane %v378, 1
    %v391 = vrot.slane %v379, 1
    %v392 = vsel %vm244, %v390, %v391
    %v393 = vsel %vm244, %v389, %v390
    %v394 = vsel %vm244, %v391, %v389
    %v395 = vadd.f32 %v386, %v393
    %v396 = vadd.f32 %v387, %v392
    %v397 = vadd.f32 %v388, %v394
    %v398 = vmul.f32 %v290, 9.0
    %v399 = vmul.f32 %v291, 9.0
    %v400 = vmul.f32 %v292, 9.0
    %v401 = vsub.f32 %v395, %v398
    %v402 = vsub.f32 %v396, %v399
    %v403 = vsub.f32 %v397, %v400
    %v404 = vmul.f32 %v401, 0.04
    %v405 = vmul.f32 %v402, 0.04
    %v406 = vmul.f32 %v403, 0.04
    %v407 = vsub.f32 %v369, %v363
    %v408 = vsub.f32 %v371, %v365
    %v409 = vsub.f32 %v373, %v367
    %v410 = vmul.f32 %v407, 0.1
    %v411 = vmul.f32 %v408, 0.1
    %v412 = vmul.f32 %v409, 0.1
    %v413 = vrot.slane %v290, 1
    %v414 = vrot.slane %v291, 1
    %v415 = vrot.slane %v292, 1
    %v416 = vsel %vm244, %v414, %v415
    %v417 = vsel %vm244, %v413, %v414
    %v418 = vsel %vm244, %v415, %v413
    %v419 = vrot.slane %v290, 7
    %v420 = vrot.slane %v291, 7
    %v421 = vrot.slane %v292, 7
    %v422 = vsel %vm257, %v420, %v421
    %v423 = vsel %vm257, %v419, %v420
    %v424 = vsel %vm257, %v421, %v419
    %v425 = vsub.f32 %v417, %v424
    %v426 = vsub.f32 %v416, %v423
    %v427 = vsub.f32 %v418, %v422
    %v428 = vmul.f32 %v425, 0.1
    %v429 = vmul.f32 %v426, 0.1
    %v430 = vmul.f32 %v427, 0.1
    %v431 = vand.u32 2147483647, %v205
    %v432 = vand.u32 2147483647, %v206
    %v433 = vand.u32 2147483647, %v207
    %v434 = vand.u32 2147483647, %v208
    %v435 = vand.u32 2147483647, %v209
    %v436 = vand.u32 2147483647, %v210
    %v437 = vadd.f32 %v431, %v434
    %v438 = vadd.f32 %v432, %v435
    %v439 = vadd.f32 %v433, %v436
    %v440 = vmul.f32 %v437, 5.0
    %v441 = vmul.f32 %v438, 5.0
    %v442 = vmul.f32 %v439, 5.0
    %v443 = vmul.f32 %v440, %v335
    %v444 = vmul.f32 %v441, %v336
    %v445 = vmul.f32 %v442, %v337
    %v446 = vand.u32 2147483647, %v443
    %v447 = vand.u32 2147483647, %v444
    %v448 = vand.u32 2147483647, %v445
    %v449 = vmul.f32 %v446, 0.025
    %v450 = vmul.f32 %v447, 0.025
    %v451 = vmul.f32 %v448, 0.025
    %v452 = vand.u32 2147483647, %v341
    %v453 = vand.u32 2147483647, %v342
    %v454 = vand.u32 2147483647, %v343
    %v455 = vand.u32 2147483647, %v359
    %v456 = vand.u32 2147483647, %v360
    %v457 = vand.u32 2147483647, %v361
    %v458 = vadd.f32 %v452, %v455
    %v459 = vadd.f32 %v453, %v456
    %v460 = vadd.f32 %v454, %v457
    %v461 = vmul.f32 %v458, 0.02
    %v462 = vmul.f32 %v459, 0.02
    %v463 = vmul.f32 %v460, 0.02
    %v464 = vadd.f32 %v461, 0.001
    %v465 = vadd.f32 %v462, 0.001
    %v466 = vadd.f32 %v463, 0.001
    %v467 = vrcp.pop %v464
    %v468 = vrcp.pop %v465
    %v469 = vrcp.pop %v466
    %v470 = vmul.f32 %v449, %v467
    %v471 = vmul.f32 %v450, %v468
    %v472 = vmul.f32 %v451, %v469
    %v473 = vmul.f32 %v440, %v404
    %v474 = vmul.f32 %v441, %v405
    %v475 = vmul.f32 %v442, %v406
    %v476 = vand.u32 2147483647, %v473
    %v477 = vand.u32 2147483647, %v474
    %v478 = vand.u32 2147483647, %v475
    %v479 = vmul.f32 %v476, 0.025
    %v480 = vmul.f32 %v477, 0.025
    %v481 = vmul.f32 %v478, 0.025
    %v482 = vand.u32 2147483647, %v410
    %v483 = vand.u32 2147483647, %v411
    %v484 = vand.u32 2147483647, %v412
    %v485 = vand.u32 2147483647, %v428
    %v486 = vand.u32 2147483647, %v429
    %v487 = vand.u32 2147483647, %v430
    %v488 = vadd.f32 %v482, %v485
    %v489 = vadd.f32 %v483, %v486
    %v490 = vadd.f32 %v484, %v487
    %v491 = vmul.f32 %v488, 0.02
    %v492 = vmul.f32 %v489, 0.02
    %v493 = vmul.f32 %v490, 0.02
    %v494 = vadd.f32 %v491, 0.001
    %v495 = vadd.f32 %v492, 0.001
    %v496 = vadd.f32 %v493, 0.001
    %v497 = vrcp.pop %v494
    %v498 = vrcp.pop %v495
    %v499 = vrcp.pop %v496
    %v500 = vmul.f32 %v479, %v497
    %v501 = vmul.f32 %v480, %v498
    %v502 = vmul.f32 %v481, %v499
    %v503 = vmin.f32 %v470, %v229
    %v504 = vmin.f32 %v471, %v230
    %v505 = vmin.f32 %v472, %v231
    %v506 = vsel %vm202, %v503, 0.0
    %v507 = vsel %vm203, %v504, 0.0
    %v508 = vsel %vm204, %v505, 0.0
    %v509 = vmin.f32 %v500, %v229
    %v510 = vmin.f32 %v501, %v230
    %v511 = vmin.f32 %v502, %v231
    %v512 = vsel %vm202, %v509, 0.0
    %v513 = vsel %vm203, %v510, 0.0
    %v514 = vsel %vm204, %v511, 0.0
    %v515 = vmul.f32 %v470, %v335
    %v516 = vmul.f32 %v471, %v336
    %v517 = vmul.f32 %v472, %v337
    %v518 = vmul.f32 %v261, %v506
    %v519 = vmul.f32 %v262, %v507
    %v520 = vmul.f32 %v263, %v508
    %521 = vrot.lane.b32.xlu0 %v518, 1
    %v522 = vpop.permute.xlu0 %521
    %523 = vrot.lane.b32.xlu0 %v519, 1
    %v524 = vpop.permute.xlu0 %523
    %525 = vrot.lane.b32.xlu0 %v520, 1
    %v526 = vpop.permute.xlu0 %525
    %v527 = vadd.f32 %v518, %v522
    %v528 = vadd.f32 %v519, %v524
    %v529 = vadd.f32 %v520, %v526
    %530 = vrot.lane.b32.xlu0 %v518, 127
    %v531 = vpop.permute.xlu0 %530
    %532 = vrot.lane.b32.xlu0 %v519, 127
    %v533 = vpop.permute.xlu0 %532
    %534 = vrot.lane.b32.xlu0 %v520, 127
    %v535 = vpop.permute.xlu0 %534
    %v536 = vadd.f32 %v527, %v531
    %v537 = vadd.f32 %v528, %v533
    %v538 = vadd.f32 %v529, %v535
    %v539 = vrot.slane %v536, 7
    %v540 = vrot.slane %v537, 7
    %v541 = vrot.slane %v538, 7
    %v542 = vsel %vm257, %v540, %v541
    %v543 = vsel %vm257, %v539, %v540
    %v544 = vsel %vm257, %v541, %v539
    %v545 = vadd.f32 %v536, %v544
    %v546 = vadd.f32 %v537, %v543
    %v547 = vadd.f32 %v538, %v542
    %v548 = vrot.slane %v536, 1
    %v549 = vrot.slane %v537, 1
    %v550 = vrot.slane %v538, 1
    %v551 = vsel %vm244, %v549, %v550
    %v552 = vsel %vm244, %v548, %v549
    %v553 = vsel %vm244, %v550, %v548
    %v554 = vadd.f32 %v545, %v552
    %v555 = vadd.f32 %v546, %v551
    %v556 = vadd.f32 %v547, %v553
    %v557 = vmul.f32 %v518, 9.0
    %v558 = vmul.f32 %v519, 9.0
    %v559 = vmul.f32 %v520, 9.0
    %v560 = vsub.f32 %v554, %v557
    %v561 = vsub.f32 %v555, %v558
    %v562 = vsub.f32 %v556, %v559
    %v563 = vmul.f32 %v560, 0.04
    %v564 = vmul.f32 %v561, 0.04
    %v565 = vmul.f32 %v562, 0.04
    %v566 = vadd.f32 %v515, %v563
    %v567 = vadd.f32 %v516, %v564
    %v568 = vadd.f32 %v517, %v565
    %569 = vrot.lane.b32.xlu0 %v506, 1
    %v570 = vpop.permute.xlu0 %569
    %571 = vrot.lane.b32.xlu0 %v507, 1
    %v572 = vpop.permute.xlu0 %571
    %573 = vrot.lane.b32.xlu0 %v508, 1
    %v574 = vpop.permute.xlu0 %573
    %v575 = vadd.f32 %v506, %v570
    %v576 = vadd.f32 %v507, %v572
    %v577 = vadd.f32 %v508, %v574
    %578 = vrot.lane.b32.xlu0 %v506, 127
    %v579 = vpop.permute.xlu0 %578
    %580 = vrot.lane.b32.xlu0 %v507, 127
    %v581 = vpop.permute.xlu0 %580
    %582 = vrot.lane.b32.xlu0 %v508, 127
    %v583 = vpop.permute.xlu0 %582
    %v584 = vadd.f32 %v575, %v579
    %v585 = vadd.f32 %v576, %v581
    %v586 = vadd.f32 %v577, %v583
    %v587 = vrot.slane %v584, 7
    %v588 = vrot.slane %v585, 7
    %v589 = vrot.slane %v586, 7
    %v590 = vsel %vm257, %v588, %v589
    %v591 = vsel %vm257, %v587, %v588
    %v592 = vsel %vm257, %v589, %v587
    %v593 = vadd.f32 %v584, %v592
    %v594 = vadd.f32 %v585, %v591
    %v595 = vadd.f32 %v586, %v590
    %v596 = vrot.slane %v584, 1
    %v597 = vrot.slane %v585, 1
    %v598 = vrot.slane %v586, 1
    %v599 = vsel %vm244, %v597, %v598
    %v600 = vsel %vm244, %v596, %v597
    %v601 = vsel %vm244, %v598, %v596
    %v602 = vadd.f32 %v593, %v600
    %v603 = vadd.f32 %v594, %v599
    %v604 = vadd.f32 %v595, %v601
    %v605 = vmul.f32 %v506, 9.0
    %v606 = vmul.f32 %v507, 9.0
    %v607 = vmul.f32 %v508, 9.0
    %v608 = vsub.f32 %v602, %v605
    %v609 = vsub.f32 %v603, %v606
    %v610 = vsub.f32 %v604, %v607
    %v611 = vmul.f32 %v608, 0.04
    %v612 = vmul.f32 %v609, 0.04
    %v613 = vmul.f32 %v610, 0.04
    %v614 = vmul.f32 %v205, %v611
    %v615 = vmul.f32 %v206, %v612
    %v616 = vmul.f32 %v207, %v613
    %v617 = vsub.f32 %v566, %v614
    %v618 = vsub.f32 %v567, %v615
    %v619 = vsub.f32 %v568, %v616
    %v620 = vmul.f32 %v617, 0.5
    %v621 = vmul.f32 %v618, 0.5
    %v622 = vmul.f32 %v619, 0.5
    %v623 = vmul.f32 %v500, %v404
    %v624 = vmul.f32 %v501, %v405
    %v625 = vmul.f32 %v502, %v406
    %v626 = vmul.f32 %v290, %v512
    %v627 = vmul.f32 %v291, %v513
    %v628 = vmul.f32 %v292, %v514
    %629 = vrot.lane.b32.xlu0 %v626, 1
    %v630 = vpop.permute.xlu0 %629
    %631 = vrot.lane.b32.xlu0 %v627, 1
    %v632 = vpop.permute.xlu0 %631
    %633 = vrot.lane.b32.xlu0 %v628, 1
    %v634 = vpop.permute.xlu0 %633
    %v635 = vadd.f32 %v626, %v630
    %v636 = vadd.f32 %v627, %v632
    %v637 = vadd.f32 %v628, %v634
    %638 = vrot.lane.b32.xlu0 %v626, 127
    %v639 = vpop.permute.xlu0 %638
    %640 = vrot.lane.b32.xlu0 %v627, 127
    %v641 = vpop.permute.xlu0 %640
    %642 = vrot.lane.b32.xlu0 %v628, 127
    %v643 = vpop.permute.xlu0 %642
    %v644 = vadd.f32 %v635, %v639
    %v645 = vadd.f32 %v636, %v641
    %v646 = vadd.f32 %v637, %v643
    %v647 = vrot.slane %v644, 7
    %v648 = vrot.slane %v645, 7
    %v649 = vrot.slane %v646, 7
    %v650 = vsel %vm257, %v648, %v649
    %v651 = vsel %vm257, %v647, %v648
    %v652 = vsel %vm257, %v649, %v647
    %v653 = vadd.f32 %v644, %v652
    %v654 = vadd.f32 %v645, %v651
    %v655 = vadd.f32 %v646, %v650
    %v656 = vrot.slane %v644, 1
    %v657 = vrot.slane %v645, 1
    %v658 = vrot.slane %v646, 1
    %v659 = vsel %vm244, %v657, %v658
    %v660 = vsel %vm244, %v656, %v657
    %v661 = vsel %vm244, %v658, %v656
    %v662 = vadd.f32 %v653, %v660
    %v663 = vadd.f32 %v654, %v659
    %v664 = vadd.f32 %v655, %v661
    %v665 = vmul.f32 %v626, 9.0
    %v666 = vmul.f32 %v627, 9.0
    %v667 = vmul.f32 %v628, 9.0
    %v668 = vsub.f32 %v662, %v665
    %v669 = vsub.f32 %v663, %v666
    %v670 = vsub.f32 %v664, %v667
    %v671 = vmul.f32 %v668, 0.04
    %v672 = vmul.f32 %v669, 0.04
    %v673 = vmul.f32 %v670, 0.04
    %v674 = vadd.f32 %v623, %v671
    %v675 = vadd.f32 %v624, %v672
    %v676 = vadd.f32 %v625, %v673
    %677 = vrot.lane.b32.xlu0 %v512, 1
    %v678 = vpop.permute.xlu0 %677
    %679 = vrot.lane.b32.xlu0 %v513, 1
    %v680 = vpop.permute.xlu0 %679
    %681 = vrot.lane.b32.xlu0 %v514, 1
    %v682 = vpop.permute.xlu0 %681
    %v683 = vadd.f32 %v512, %v678
    %v684 = vadd.f32 %v513, %v680
    %v685 = vadd.f32 %v514, %v682
    %686 = vrot.lane.b32.xlu0 %v512, 127
    %v687 = vpop.permute.xlu0 %686
    %688 = vrot.lane.b32.xlu0 %v513, 127
    %v689 = vpop.permute.xlu0 %688
    %690 = vrot.lane.b32.xlu0 %v514, 127
    %v691 = vpop.permute.xlu0 %690
    %v692 = vadd.f32 %v683, %v687
    %v693 = vadd.f32 %v684, %v689
    %v694 = vadd.f32 %v685, %v691
    %v695 = vrot.slane %v692, 7
    %v696 = vrot.slane %v693, 7
    %v697 = vrot.slane %v694, 7
    %v698 = vsel %vm257, %v696, %v697
    %v699 = vsel %vm257, %v695, %v696
    %v700 = vsel %vm257, %v697, %v695
    %v701 = vadd.f32 %v692, %v700
    %v702 = vadd.f32 %v693, %v699
    %v703 = vadd.f32 %v694, %v698
    %v704 = vrot.slane %v692, 1
    %v705 = vrot.slane %v693, 1
    %v706 = vrot.slane %v694, 1
    %v707 = vsel %vm244, %v705, %v706
    %v708 = vsel %vm244, %v704, %v705
    %v709 = vsel %vm244, %v706, %v704
    %v710 = vadd.f32 %v701, %v708
    %v711 = vadd.f32 %v702, %v707
    %v712 = vadd.f32 %v703, %v709
    %v713 = vmul.f32 %v512, 9.0
    %v714 = vmul.f32 %v513, 9.0
    %v715 = vmul.f32 %v514, 9.0
    %v716 = vsub.f32 %v710, %v713
    %v717 = vsub.f32 %v711, %v714
    %v718 = vsub.f32 %v712, %v715
    %v719 = vmul.f32 %v716, 0.04
    %v720 = vmul.f32 %v717, 0.04
    %v721 = vmul.f32 %v718, 0.04
    %v722 = vmul.f32 %v208, %v719
    %v723 = vmul.f32 %v209, %v720
    %v724 = vmul.f32 %v210, %v721
    %v725 = vsub.f32 %v674, %v722
    %v726 = vsub.f32 %v675, %v723
    %v727 = vsub.f32 %v676, %v724
    %v728 = vmul.f32 %v725, 0.5
    %v729 = vmul.f32 %v726, 0.5
    %v730 = vmul.f32 %v727, 0.5
    %v731 = vmul.f32 %v620, 0.5
    %v732 = vmul.f32 %v621, 0.5
    %v733 = vmul.f32 %v622, 0.5
    %v734 = vmul.f32 %v205, %v341
    %v735 = vmul.f32 %v206, %v342
    %v736 = vmul.f32 %v207, %v343
    %v737 = vmul.f32 %v734, 0.5
    %v738 = vmul.f32 %v735, 0.5
    %v739 = vmul.f32 %v736, 0.5
    %v740 = vsub.f32 %v731, %v737
    %v741 = vsub.f32 %v732, %v738
    %v742 = vsub.f32 %v733, %v739
    %v743 = vmul.f32 %v208, %v359
    %v744 = vmul.f32 %v209, %v360
    %v745 = vmul.f32 %v210, %v361
    %v746 = vmul.f32 %v743, 0.5
    %v747 = vmul.f32 %v744, 0.5
    %v748 = vmul.f32 %v745, 0.5
    %v749 = vsub.f32 %v740, %v746
    %v750 = vsub.f32 %v741, %v747
    %v751 = vsub.f32 %v742, %v748
    %v752 = vmul.f32 %v749, 0.5
    %v753 = vmul.f32 %v750, 0.5
    %v754 = vmul.f32 %v751, 0.5
    %v755 = vadd.f32 %v752, %v205
    %v756 = vadd.f32 %v753, %v206
    %v757 = vadd.f32 %v754, %v207
    %v758 = vmul.f32 %v728, 0.5
    %v759 = vmul.f32 %v729, 0.5
    %v760 = vmul.f32 %v730, 0.5
    %v761 = vmul.f32 %v205, %v410
    %v762 = vmul.f32 %v206, %v411
    %v763 = vmul.f32 %v207, %v412
    %v764 = vmul.f32 %v761, 0.5
    %v765 = vmul.f32 %v762, 0.5
    %v766 = vmul.f32 %v763, 0.5
    %v767 = vsub.f32 %v758, %v764
    %v768 = vsub.f32 %v759, %v765
    %v769 = vsub.f32 %v760, %v766
    %v770 = vmul.f32 %v208, %v428
    %v771 = vmul.f32 %v209, %v429
    %v772 = vmul.f32 %v210, %v430
    %v773 = vmul.f32 %v770, 0.5
    %v774 = vmul.f32 %v771, 0.5
    %v775 = vmul.f32 %v772, 0.5
    %v776 = vsub.f32 %v767, %v773
    %v777 = vsub.f32 %v768, %v774
    %v778 = vsub.f32 %v769, %v775
    %v779 = vmul.f32 %v776, 0.5
    %v780 = vmul.f32 %v777, 0.5
    %v781 = vmul.f32 %v778, 0.5
    %v782 = vadd.f32 %v779, %v208
    %v783 = vadd.f32 %v780, %v209
    %v784 = vadd.f32 %v781, %v210
    %v785 = vsel %vm202, %v214, 0.0
    %v786 = vsel %vm203, %v215, 0.0
    %v787 = vsel %vm204, %v216, 0.0
    %788 = vrot.lane.b32.xlu0 %v785, 127
    %v789 = vpop.permute.xlu0 %788
    %790 = vrot.lane.b32.xlu0 %v786, 127
    %v791 = vpop.permute.xlu0 %790
    %792 = vrot.lane.b32.xlu0 %v787, 127
    %v793 = vpop.permute.xlu0 %792
    %794 = vrot.lane.b32.xlu0 %v785, 1
    %v795 = vpop.permute.xlu0 %794
    %796 = vrot.lane.b32.xlu0 %v786, 1
    %v797 = vpop.permute.xlu0 %796
    %798 = vrot.lane.b32.xlu0 %v787, 1
    %v799 = vpop.permute.xlu0 %798
    %v800 = vsub.f32 %v789, %v795
    %v801 = vsub.f32 %v791, %v797
    %v802 = vsub.f32 %v793, %v799
    %v803 = vmul.f32 %v800, 0.1
    %v804 = vmul.f32 %v801, 0.1
    %v805 = vmul.f32 %v802, 0.1
    %v806 = vrot.slane %v785, 1
    %v807 = vrot.slane %v786, 1
    %v808 = vrot.slane %v787, 1
    %v809 = vsel %vm244, %v807, %v808
    %v810 = vsel %vm244, %v806, %v807
    %v811 = vsel %vm244, %v808, %v806
    %v812 = vrot.slane %v785, 7
    %v813 = vrot.slane %v786, 7
    %v814 = vrot.slane %v787, 7
    %v815 = vsel %vm257, %v813, %v814
    %v816 = vsel %vm257, %v812, %v813
    %v817 = vsel %vm257, %v814, %v812
    %v818 = vsub.f32 %v810, %v817
    %v819 = vsub.f32 %v809, %v816
    %v820 = vsub.f32 %v811, %v815
    %v821 = vmul.f32 %v818, 0.1
    %v822 = vmul.f32 %v819, 0.1
    %v823 = vmul.f32 %v820, 0.1
    %v824 = vmul.f32 %v803, 0.5
    %v825 = vmul.f32 %v804, 0.5
    %v826 = vmul.f32 %v805, 0.5
    %v827 = vsub.f32 %v755, %v824
    %v828 = vsub.f32 %v756, %v825
    %v829 = vsub.f32 %v757, %v826
    %v830 = vmul.f32 %v821, 0.5
    %v831 = vmul.f32 %v822, 0.5
    %v832 = vmul.f32 %v823, 0.5
    %v833 = vsub.f32 %v782, %v830
    %v834 = vsub.f32 %v783, %v831
    %v835 = vsub.f32 %v784, %v832
    %v836 = vsel %vm202, %v827, 0.0
    %v837 = vsel %vm203, %v828, 0.0
    %v838 = vsel %vm204, %v829, 0.0
    %v839 = vrot.slane %v836, 1
    %v840 = vrot.slane %v837, 1
    %v841 = vrot.slane %v838, 1
    %v842 = vsel %vm244, %v840, %v841
    %v843 = vsel %vm244, %v839, %v840
    %v844 = vsel %vm244, %v841, %v839
    %v845 = vsel %vm238, %v843, %v836
    %v846 = vsel %vm239, %v842, %v837
    %v847 = vsel %vm240, %v844, %v838
    %v848 = vrot.slane %v845, 7
    %v849 = vrot.slane %v846, 7
    %v850 = vrot.slane %v847, 7
    %v851 = vsel %vm257, %v849, %v850
    %v852 = vsel %vm257, %v848, %v849
    %v853 = vsel %vm257, %v850, %v848
    %v854 = vsel %vm251, %v853, %v845
    %v855 = vsel %vm252, %v852, %v846
    %v856 = vsel %vm253, %v851, %v847
    %v857 = vsel %vm202, %v833, 0.0
    %v858 = vsel %vm203, %v834, 0.0
    %v859 = vsel %vm204, %v835, 0.0
    %860 = vrot.lane.b32.xlu0 %v857, 127
    %v861 = vpop.permute.xlu0 %860
    %862 = vrot.lane.b32.xlu0 %v858, 127
    %v863 = vpop.permute.xlu0 %862
    %864 = vrot.lane.b32.xlu0 %v859, 127
    %v865 = vpop.permute.xlu0 %864
    %v866 = vsel %vm267, %v861, %v857
    %v867 = vsel %vm267, %v863, %v858
    %v868 = vsel %vm267, %v865, %v859
    %869 = vrot.lane.b32.xlu0 %v866, 1
    %v870 = vpop.permute.xlu0 %869
    %871 = vrot.lane.b32.xlu0 %v867, 1
    %v872 = vpop.permute.xlu0 %871
    %873 = vrot.lane.b32.xlu0 %v868, 1
    %v874 = vpop.permute.xlu0 %873
    %v875 = vsel %vm277, %v870, %v866
    %v876 = vsel %vm277, %v872, %v867
    %v877 = vsel %vm277, %v874, %v868
    %v878 = vsel %vm287, 0.0, %v875
    %v879 = vsel %vm288, 0.0, %v876
    %v880 = vsel %vm289, 0.0, %v877
    %v881 = vadd.f32 %v211, %v214
    %v882 = vadd.f32 %v212, %v215
    %v883 = vadd.f32 %v213, %v216
    %v884 = vsel %vm202, %v881, 0.0
    %v885 = vsel %vm203, %v882, 0.0
    %v886 = vsel %vm204, %v883, 0.0
    %887 = vrot.lane.b32.xlu0 %v884, 1
    %v888 = vpop.permute.xlu0 %887
    %889 = vrot.lane.b32.xlu0 %v885, 1
    %v890 = vpop.permute.xlu0 %889
    %891 = vrot.lane.b32.xlu0 %v886, 1
    %v892 = vpop.permute.xlu0 %891
    %v893 = vadd.f32 %v884, %v888
    %v894 = vadd.f32 %v885, %v890
    %v895 = vadd.f32 %v886, %v892
    %896 = vrot.lane.b32.xlu0 %v884, 127
    %v897 = vpop.permute.xlu0 %896
    %898 = vrot.lane.b32.xlu0 %v885, 127
    %v899 = vpop.permute.xlu0 %898
    %900 = vrot.lane.b32.xlu0 %v886, 127
    %v901 = vpop.permute.xlu0 %900
    %v902 = vadd.f32 %v893, %v897
    %v903 = vadd.f32 %v894, %v899
    %v904 = vadd.f32 %v895, %v901
    %v905 = vrot.slane %v902, 7
    %v906 = vrot.slane %v903, 7
    %v907 = vrot.slane %v904, 7
    %v908 = vsel %vm257, %v906, %v907
    %v909 = vsel %vm257, %v905, %v906
    %v910 = vsel %vm257, %v907, %v905
    %v911 = vadd.f32 %v902, %v910
    %v912 = vadd.f32 %v903, %v909
    %v913 = vadd.f32 %v904, %v908
    %v914 = vrot.slane %v902, 1
    %v915 = vrot.slane %v903, 1
    %v916 = vrot.slane %v904, 1
    %v917 = vsel %vm244, %v915, %v916
    %v918 = vsel %vm244, %v914, %v915
    %v919 = vsel %vm244, %v916, %v914
    %v920 = vadd.f32 %v911, %v918
    %v921 = vadd.f32 %v912, %v917
    %v922 = vadd.f32 %v913, %v919
    %v923 = vmul.f32 %v920, 0.11111111
    %v924 = vmul.f32 %v921, 0.11111111
    %v925 = vmul.f32 %v922, 0.11111111
    %v926 = vmul.f32 %v923, 5.0
    %v927 = vmul.f32 %v924, 5.0
    %v928 = vmul.f32 %v925, 5.0
    %v929 = vmul.f32 %v926, 0.01
    %v930 = vmul.f32 %v927, 0.01
    %v931 = vmul.f32 %v928, 0.01
    %v932 = vmul.f32 %v881, 0.99
    %v933 = vmul.f32 %v882, 0.99
    %v934 = vmul.f32 %v883, 0.99
    %v935 = vadd.f32 %v929, %v932
    %v936 = vadd.f32 %v930, %v933
    %v937 = vadd.f32 %v931, %v934
    %v938 = vmax.f32 %v223, %v935
    %v939 = vmax.f32 %v224, %v936
    %v940 = vmax.f32 %v225, %v937
    %v941 = vmax.f32 %v938, 1e-30
    %v942 = vmax.f32 %v939, 1e-30
    %v943 = vmax.f32 %v940, 1e-30
    %v944 = vlog2.pop %v941
    %v945 = vmul.f32 %v944, 0.6931472
    %v946 = vlog2.pop %v942
    %v947 = vmul.f32 %v946, 0.6931472
    %v948 = vlog2.pop %v943
    %v949 = vmul.f32 %v948, 0.6931472
    %v950 = vmul.f32 %v945, 1.3333334
    %v951 = vmul.f32 %v947, 1.3333334
    %v952 = vmul.f32 %v949, 1.3333334
    %v953 = vmul.f32 %v950, 1.442695
    %v954 = vpow.pop %v953
    %v955 = vmul.f32 %v951, 1.442695
    %v956 = vpow.pop %v955
    %v957 = vmul.f32 %v952, 1.442695
    %v958 = vpow.pop %v957
    %v959 = vmul.f32 %v827, %v827
    %v960 = vmul.f32 %v828, %v828
    %v961 = vmul.f32 %v829, %v829
    %v962 = vmul.f32 %v833, %v833
    %v963 = vmul.f32 %v834, %v834
    %v964 = vmul.f32 %v835, %v835
    %v965 = vadd.f32 %v959, %v962
    %v966 = vadd.f32 %v960, %v963
    %v967 = vadd.f32 %v961, %v964
    %v968 = vrsqrt.pop %v965
    %v969 = vmul.f32 %v965, %v968
    %vm970 = vcmp.eq.f32.partialorder %v965, inf
    %v971 = vsel %vm970, %v965, %v969
    %vm972 = vcmp.eq.f32.partialorder %v965, 0.0
    %v973 = vand.u32 %v965, 2147483648
    %v974 = vsel %vm972, %v973, %v971
    %v975 = vrsqrt.pop %v966
    %v976 = vmul.f32 %v966, %v975
    %vm977 = vcmp.eq.f32.partialorder %v966, inf
    %v978 = vsel %vm977, %v966, %v976
    %vm979 = vcmp.eq.f32.partialorder %v966, 0.0
    %v980 = vand.u32 %v966, 2147483648
    %v981 = vsel %vm979, %v980, %v978
    %v982 = vrsqrt.pop %v967
    %v983 = vmul.f32 %v967, %v982
    %vm984 = vcmp.eq.f32.partialorder %v967, inf
    %v985 = vsel %vm984, %v967, %v983
    %vm986 = vcmp.eq.f32.partialorder %v967, 0.0
    %v987 = vand.u32 %v967, 2147483648
    %v988 = vsel %vm986, %v987, %v985
    %v989 = vmul.f32 %v974, 0.003025
    %v990 = vmul.f32 %v981, 0.003025
    %v991 = vmul.f32 %v988, 0.003025
    %v992 = vrcp.pop %v954
    %v993 = vmul.f32 %v989, %v992
    %v994 = vrcp.pop %v956
    %v995 = vmul.f32 %v990, %v994
    %v996 = vrcp.pop %v958
    %v997 = vmul.f32 %v991, %v996
    %v998 = vmul.f32 %v993, 4.905
    %v999 = vmul.f32 %v995, 4.905
    %v1000 = vmul.f32 %v997, 4.905
    %v1001 = vadd.f32 %v998, 1.0
    %v1002 = vadd.f32 %v999, 1.0
    %v1003 = vadd.f32 %v1000, 1.0
    %v1004 = vrcp.pop %v1001
    %v1005 = vrcp.pop %v1002
    %v1006 = vrcp.pop %v1003
    %v1007 = vmul.f32 %v827, %v1004
    %v1008 = vmul.f32 %v828, %v1005
    %v1009 = vmul.f32 %v829, %v1006
    %v1010 = vmul.f32 %v833, %v1004
    %v1011 = vmul.f32 %v834, %v1005
    %v1012 = vmul.f32 %v835, %v1006
    %1013 = vrot.lane.b32.xlu0 %v854, 1
    %v1014 = vpop.permute.xlu0 %1013
    %1015 = vrot.lane.b32.xlu0 %v855, 1
    %v1016 = vpop.permute.xlu0 %1015
    %1017 = vrot.lane.b32.xlu0 %v856, 1
    %v1018 = vpop.permute.xlu0 %1017
    %1019 = vrot.lane.b32.xlu0 %v854, 127
    %v1020 = vpop.permute.xlu0 %1019
    %1021 = vrot.lane.b32.xlu0 %v855, 127
    %v1022 = vpop.permute.xlu0 %1021
    %1023 = vrot.lane.b32.xlu0 %v856, 127
    %v1024 = vpop.permute.xlu0 %1023
    %v1025 = vadd.f32 %v854, %v1014
    %v1026 = vadd.f32 %v855, %v1016
    %v1027 = vadd.f32 %v856, %v1018
    %v1028 = vadd.f32 %v1025, %v1020
    %v1029 = vadd.f32 %v1026, %v1022
    %v1030 = vadd.f32 %v1027, %v1024
    %v1031 = vrot.slane %v1028, 7
    %v1032 = vrot.slane %v1029, 7
    %v1033 = vrot.slane %v1030, 7
    %v1034 = vsel %vm257, %v1032, %v1033
    %v1035 = vsel %vm257, %v1031, %v1032
    %v1036 = vsel %vm257, %v1033, %v1031
    %v1037 = vadd.f32 %v1028, %v1036
    %v1038 = vadd.f32 %v1029, %v1035
    %v1039 = vadd.f32 %v1030, %v1034
    %v1040 = vrot.slane %v1028, 1
    %v1041 = vrot.slane %v1029, 1
    %v1042 = vrot.slane %v1030, 1
    %v1043 = vsel %vm244, %v1041, %v1042
    %v1044 = vsel %vm244, %v1040, %v1041
    %v1045 = vsel %vm244, %v1042, %v1040
    %v1046 = vadd.f32 %v1037, %v1044
    %v1047 = vadd.f32 %v1038, %v1043
    %v1048 = vadd.f32 %v1039, %v1045
    %v1049 = vmul.f32 %v854, 9.0
    %v1050 = vmul.f32 %v855, 9.0
    %v1051 = vmul.f32 %v856, 9.0
    %v1052 = vsub.f32 %v1046, %v1049
    %v1053 = vsub.f32 %v1047, %v1050
    %v1054 = vsub.f32 %v1048, %v1051
    %v1055 = vmul.f32 %v1052, 0.04
    %v1056 = vmul.f32 %v1053, 0.04
    %v1057 = vmul.f32 %v1054, 0.04
    %v1058 = vsub.f32 %v1020, %v1014
    %v1059 = vsub.f32 %v1022, %v1016
    %v1060 = vsub.f32 %v1024, %v1018
    %v1061 = vmul.f32 %v1058, 0.1
    %v1062 = vmul.f32 %v1059, 0.1
    %v1063 = vmul.f32 %v1060, 0.1
    %v1064 = vrot.slane %v854, 1
    %v1065 = vrot.slane %v855, 1
    %v1066 = vrot.slane %v856, 1
    %v1067 = vsel %vm244, %v1065, %v1066
    %v1068 = vsel %vm244, %v1064, %v1065
    %v1069 = vsel %vm244, %v1066, %v1064
    %v1070 = vrot.slane %v854, 7
    %v1071 = vrot.slane %v855, 7
    %v1072 = vrot.slane %v856, 7
    %v1073 = vsel %vm257, %v1071, %v1072
    %v1074 = vsel %vm257, %v1070, %v1071
    %v1075 = vsel %vm257, %v1072, %v1070
    %v1076 = vsub.f32 %v1068, %v1075
    %v1077 = vsub.f32 %v1067, %v1074
    %v1078 = vsub.f32 %v1069, %v1073
    %v1079 = vmul.f32 %v1076, 0.1
    %v1080 = vmul.f32 %v1077, 0.1
    %v1081 = vmul.f32 %v1078, 0.1
    %1082 = vrot.lane.b32.xlu0 %v878, 1
    %v1083 = vpop.permute.xlu0 %1082
    %1084 = vrot.lane.b32.xlu0 %v879, 1
    %v1085 = vpop.permute.xlu0 %1084
    %1086 = vrot.lane.b32.xlu0 %v880, 1
    %v1087 = vpop.permute.xlu0 %1086
    %1088 = vrot.lane.b32.xlu0 %v878, 127
    %v1089 = vpop.permute.xlu0 %1088
    %1090 = vrot.lane.b32.xlu0 %v879, 127
    %v1091 = vpop.permute.xlu0 %1090
    %1092 = vrot.lane.b32.xlu0 %v880, 127
    %v1093 = vpop.permute.xlu0 %1092
    %v1094 = vadd.f32 %v878, %v1083
    %v1095 = vadd.f32 %v879, %v1085
    %v1096 = vadd.f32 %v880, %v1087
    %v1097 = vadd.f32 %v1094, %v1089
    %v1098 = vadd.f32 %v1095, %v1091
    %v1099 = vadd.f32 %v1096, %v1093
    %v1100 = vrot.slane %v1097, 7
    %v1101 = vrot.slane %v1098, 7
    %v1102 = vrot.slane %v1099, 7
    %v1103 = vsel %vm257, %v1101, %v1102
    %v1104 = vsel %vm257, %v1100, %v1101
    %v1105 = vsel %vm257, %v1102, %v1100
    %v1106 = vadd.f32 %v1097, %v1105
    %v1107 = vadd.f32 %v1098, %v1104
    %v1108 = vadd.f32 %v1099, %v1103
    %v1109 = vrot.slane %v1097, 1
    %v1110 = vrot.slane %v1098, 1
    %v1111 = vrot.slane %v1099, 1
    %v1112 = vsel %vm244, %v1110, %v1111
    %v1113 = vsel %vm244, %v1109, %v1110
    %v1114 = vsel %vm244, %v1111, %v1109
    %v1115 = vadd.f32 %v1106, %v1113
    %v1116 = vadd.f32 %v1107, %v1112
    %v1117 = vadd.f32 %v1108, %v1114
    %v1118 = vmul.f32 %v878, 9.0
    %v1119 = vmul.f32 %v879, 9.0
    %v1120 = vmul.f32 %v880, 9.0
    %v1121 = vsub.f32 %v1115, %v1118
    %v1122 = vsub.f32 %v1116, %v1119
    %v1123 = vsub.f32 %v1117, %v1120
    %v1124 = vmul.f32 %v1121, 0.04
    %v1125 = vmul.f32 %v1122, 0.04
    %v1126 = vmul.f32 %v1123, 0.04
    %v1127 = vsub.f32 %v1089, %v1083
    %v1128 = vsub.f32 %v1091, %v1085
    %v1129 = vsub.f32 %v1093, %v1087
    %v1130 = vmul.f32 %v1127, 0.1
    %v1131 = vmul.f32 %v1128, 0.1
    %v1132 = vmul.f32 %v1129, 0.1
    %v1133 = vrot.slane %v878, 1
    %v1134 = vrot.slane %v879, 1
    %v1135 = vrot.slane %v880, 1
    %v1136 = vsel %vm244, %v1134, %v1135
    %v1137 = vsel %vm244, %v1133, %v1134
    %v1138 = vsel %vm244, %v1135, %v1133
    %v1139 = vrot.slane %v878, 7
    %v1140 = vrot.slane %v879, 7
    %v1141 = vrot.slane %v880, 7
    %v1142 = vsel %vm257, %v1140, %v1141
    %v1143 = vsel %vm257, %v1139, %v1140
    %v1144 = vsel %vm257, %v1141, %v1139
    %v1145 = vsub.f32 %v1137, %v1144
    %v1146 = vsub.f32 %v1136, %v1143
    %v1147 = vsub.f32 %v1138, %v1142
    %v1148 = vmul.f32 %v1145, 0.1
    %v1149 = vmul.f32 %v1146, 0.1
    %v1150 = vmul.f32 %v1147, 0.1
    %v1151 = vand.u32 2147483647, %v1007
    %v1152 = vand.u32 2147483647, %v1008
    %v1153 = vand.u32 2147483647, %v1009
    %v1154 = vand.u32 2147483647, %v1010
    %v1155 = vand.u32 2147483647, %v1011
    %v1156 = vand.u32 2147483647, %v1012
    %v1157 = vadd.f32 %v1151, %v1154
    %v1158 = vadd.f32 %v1152, %v1155
    %v1159 = vadd.f32 %v1153, %v1156
    %v1160 = vmul.f32 %v1157, 5.0
    %v1161 = vmul.f32 %v1158, 5.0
    %v1162 = vmul.f32 %v1159, 5.0
    %v1163 = vmul.f32 %v1160, %v1055
    %v1164 = vmul.f32 %v1161, %v1056
    %v1165 = vmul.f32 %v1162, %v1057
    %v1166 = vand.u32 2147483647, %v1163
    %v1167 = vand.u32 2147483647, %v1164
    %v1168 = vand.u32 2147483647, %v1165
    %v1169 = vmul.f32 %v1166, 0.025
    %v1170 = vmul.f32 %v1167, 0.025
    %v1171 = vmul.f32 %v1168, 0.025
    %v1172 = vand.u32 2147483647, %v1061
    %v1173 = vand.u32 2147483647, %v1062
    %v1174 = vand.u32 2147483647, %v1063
    %v1175 = vand.u32 2147483647, %v1079
    %v1176 = vand.u32 2147483647, %v1080
    %v1177 = vand.u32 2147483647, %v1081
    %v1178 = vadd.f32 %v1172, %v1175
    %v1179 = vadd.f32 %v1173, %v1176
    %v1180 = vadd.f32 %v1174, %v1177
    %v1181 = vmul.f32 %v1178, 0.02
    %v1182 = vmul.f32 %v1179, 0.02
    %v1183 = vmul.f32 %v1180, 0.02
    %v1184 = vadd.f32 %v1181, 0.001
    %v1185 = vadd.f32 %v1182, 0.001
    %v1186 = vadd.f32 %v1183, 0.001
    %v1187 = vrcp.pop %v1184
    %v1188 = vrcp.pop %v1185
    %v1189 = vrcp.pop %v1186
    %v1190 = vmul.f32 %v1169, %v1187
    %v1191 = vmul.f32 %v1170, %v1188
    %v1192 = vmul.f32 %v1171, %v1189
    %v1193 = vmul.f32 %v1160, %v1124
    %v1194 = vmul.f32 %v1161, %v1125
    %v1195 = vmul.f32 %v1162, %v1126
    %v1196 = vand.u32 2147483647, %v1193
    %v1197 = vand.u32 2147483647, %v1194
    %v1198 = vand.u32 2147483647, %v1195
    %v1199 = vmul.f32 %v1196, 0.025
    %v1200 = vmul.f32 %v1197, 0.025
    %v1201 = vmul.f32 %v1198, 0.025
    %v1202 = vand.u32 2147483647, %v1130
    %v1203 = vand.u32 2147483647, %v1131
    %v1204 = vand.u32 2147483647, %v1132
    %v1205 = vand.u32 2147483647, %v1148
    %v1206 = vand.u32 2147483647, %v1149
    %v1207 = vand.u32 2147483647, %v1150
    %v1208 = vadd.f32 %v1202, %v1205
    %v1209 = vadd.f32 %v1203, %v1206
    %v1210 = vadd.f32 %v1204, %v1207
    %v1211 = vmul.f32 %v1208, 0.02
    %v1212 = vmul.f32 %v1209, 0.02
    %v1213 = vmul.f32 %v1210, 0.02
    %v1214 = vadd.f32 %v1211, 0.001
    %v1215 = vadd.f32 %v1212, 0.001
    %v1216 = vadd.f32 %v1213, 0.001
    %v1217 = vrcp.pop %v1214
    %v1218 = vrcp.pop %v1215
    %v1219 = vrcp.pop %v1216
    %v1220 = vmul.f32 %v1199, %v1217
    %v1221 = vmul.f32 %v1200, %v1218
    %v1222 = vmul.f32 %v1201, %v1219
    %v1223 = vmin.f32 %v1190, %v229
    %v1224 = vmin.f32 %v1191, %v230
    %v1225 = vmin.f32 %v1192, %v231
    %v1226 = vsel %vm202, %v1223, 0.0
    %v1227 = vsel %vm203, %v1224, 0.0
    %v1228 = vsel %vm204, %v1225, 0.0
    %v1229 = vmin.f32 %v1220, %v229
    %v1230 = vmin.f32 %v1221, %v230
    %v1231 = vmin.f32 %v1222, %v231
    %v1232 = vsel %vm202, %v1229, 0.0
    %v1233 = vsel %vm203, %v1230, 0.0
    %v1234 = vsel %vm204, %v1231, 0.0
    %v1235 = vmul.f32 %v1190, %v1055
    %v1236 = vmul.f32 %v1191, %v1056
    %v1237 = vmul.f32 %v1192, %v1057
    %v1238 = vmul.f32 %v854, %v1226
    %v1239 = vmul.f32 %v855, %v1227
    %v1240 = vmul.f32 %v856, %v1228
    %1241 = vrot.lane.b32.xlu0 %v1238, 1
    %v1242 = vpop.permute.xlu0 %1241
    %1243 = vrot.lane.b32.xlu0 %v1239, 1
    %v1244 = vpop.permute.xlu0 %1243
    %1245 = vrot.lane.b32.xlu0 %v1240, 1
    %v1246 = vpop.permute.xlu0 %1245
    %v1247 = vadd.f32 %v1238, %v1242
    %v1248 = vadd.f32 %v1239, %v1244
    %v1249 = vadd.f32 %v1240, %v1246
    %1250 = vrot.lane.b32.xlu0 %v1238, 127
    %v1251 = vpop.permute.xlu0 %1250
    %1252 = vrot.lane.b32.xlu0 %v1239, 127
    %v1253 = vpop.permute.xlu0 %1252
    %1254 = vrot.lane.b32.xlu0 %v1240, 127
    %v1255 = vpop.permute.xlu0 %1254
    %v1256 = vadd.f32 %v1247, %v1251
    %v1257 = vadd.f32 %v1248, %v1253
    %v1258 = vadd.f32 %v1249, %v1255
    %v1259 = vrot.slane %v1256, 7
    %v1260 = vrot.slane %v1257, 7
    %v1261 = vrot.slane %v1258, 7
    %v1262 = vsel %vm257, %v1260, %v1261
    %v1263 = vsel %vm257, %v1259, %v1260
    %v1264 = vsel %vm257, %v1261, %v1259
    %v1265 = vadd.f32 %v1256, %v1264
    %v1266 = vadd.f32 %v1257, %v1263
    %v1267 = vadd.f32 %v1258, %v1262
    %v1268 = vrot.slane %v1256, 1
    %v1269 = vrot.slane %v1257, 1
    %v1270 = vrot.slane %v1258, 1
    %v1271 = vsel %vm244, %v1269, %v1270
    %v1272 = vsel %vm244, %v1268, %v1269
    %v1273 = vsel %vm244, %v1270, %v1268
    %v1274 = vadd.f32 %v1265, %v1272
    %v1275 = vadd.f32 %v1266, %v1271
    %v1276 = vadd.f32 %v1267, %v1273
    %v1277 = vmul.f32 %v1238, 9.0
    %v1278 = vmul.f32 %v1239, 9.0
    %v1279 = vmul.f32 %v1240, 9.0
    %v1280 = vsub.f32 %v1274, %v1277
    %v1281 = vsub.f32 %v1275, %v1278
    %v1282 = vsub.f32 %v1276, %v1279
    %v1283 = vmul.f32 %v1280, 0.04
    %v1284 = vmul.f32 %v1281, 0.04
    %v1285 = vmul.f32 %v1282, 0.04
    %v1286 = vadd.f32 %v1235, %v1283
    %v1287 = vadd.f32 %v1236, %v1284
    %v1288 = vadd.f32 %v1237, %v1285
    %1289 = vrot.lane.b32.xlu0 %v1226, 1
    %v1290 = vpop.permute.xlu0 %1289
    %1291 = vrot.lane.b32.xlu0 %v1227, 1
    %v1292 = vpop.permute.xlu0 %1291
    %1293 = vrot.lane.b32.xlu0 %v1228, 1
    %v1294 = vpop.permute.xlu0 %1293
    %v1295 = vadd.f32 %v1226, %v1290
    %v1296 = vadd.f32 %v1227, %v1292
    %v1297 = vadd.f32 %v1228, %v1294
    %1298 = vrot.lane.b32.xlu0 %v1226, 127
    %v1299 = vpop.permute.xlu0 %1298
    %1300 = vrot.lane.b32.xlu0 %v1227, 127
    %v1301 = vpop.permute.xlu0 %1300
    %1302 = vrot.lane.b32.xlu0 %v1228, 127
    %v1303 = vpop.permute.xlu0 %1302
    %v1304 = vadd.f32 %v1295, %v1299
    %v1305 = vadd.f32 %v1296, %v1301
    %v1306 = vadd.f32 %v1297, %v1303
    %v1307 = vrot.slane %v1304, 7
    %v1308 = vrot.slane %v1305, 7
    %v1309 = vrot.slane %v1306, 7
    %v1310 = vsel %vm257, %v1308, %v1309
    %v1311 = vsel %vm257, %v1307, %v1308
    %v1312 = vsel %vm257, %v1309, %v1307
    %v1313 = vadd.f32 %v1304, %v1312
    %v1314 = vadd.f32 %v1305, %v1311
    %v1315 = vadd.f32 %v1306, %v1310
    %v1316 = vrot.slane %v1304, 1
    %v1317 = vrot.slane %v1305, 1
    %v1318 = vrot.slane %v1306, 1
    %v1319 = vsel %vm244, %v1317, %v1318
    %v1320 = vsel %vm244, %v1316, %v1317
    %v1321 = vsel %vm244, %v1318, %v1316
    %v1322 = vadd.f32 %v1313, %v1320
    %v1323 = vadd.f32 %v1314, %v1319
    %v1324 = vadd.f32 %v1315, %v1321
    %v1325 = vmul.f32 %v1226, 9.0
    %v1326 = vmul.f32 %v1227, 9.0
    %v1327 = vmul.f32 %v1228, 9.0
    %v1328 = vsub.f32 %v1322, %v1325
    %v1329 = vsub.f32 %v1323, %v1326
    %v1330 = vsub.f32 %v1324, %v1327
    %v1331 = vmul.f32 %v1328, 0.04
    %v1332 = vmul.f32 %v1329, 0.04
    %v1333 = vmul.f32 %v1330, 0.04
    %v1334 = vmul.f32 %v1007, %v1331
    %v1335 = vmul.f32 %v1008, %v1332
    %v1336 = vmul.f32 %v1009, %v1333
    %v1337 = vsub.f32 %v1286, %v1334
    %v1338 = vsub.f32 %v1287, %v1335
    %v1339 = vsub.f32 %v1288, %v1336
    %v1340 = vmul.f32 %v1337, 0.5
    %v1341 = vmul.f32 %v1338, 0.5
    %v1342 = vmul.f32 %v1339, 0.5
    %v1343 = vmul.f32 %v1220, %v1124
    %v1344 = vmul.f32 %v1221, %v1125
    %v1345 = vmul.f32 %v1222, %v1126
    %v1346 = vmul.f32 %v878, %v1232
    %v1347 = vmul.f32 %v879, %v1233
    %v1348 = vmul.f32 %v880, %v1234
    %1349 = vrot.lane.b32.xlu0 %v1346, 1
    %v1350 = vpop.permute.xlu0 %1349
    %1351 = vrot.lane.b32.xlu0 %v1347, 1
    %v1352 = vpop.permute.xlu0 %1351
    %1353 = vrot.lane.b32.xlu0 %v1348, 1
    %v1354 = vpop.permute.xlu0 %1353
    %v1355 = vadd.f32 %v1346, %v1350
    %v1356 = vadd.f32 %v1347, %v1352
    %v1357 = vadd.f32 %v1348, %v1354
    %1358 = vrot.lane.b32.xlu0 %v1346, 127
    %v1359 = vpop.permute.xlu0 %1358
    %1360 = vrot.lane.b32.xlu0 %v1347, 127
    %v1361 = vpop.permute.xlu0 %1360
    %1362 = vrot.lane.b32.xlu0 %v1348, 127
    %v1363 = vpop.permute.xlu0 %1362
    %v1364 = vadd.f32 %v1355, %v1359
    %v1365 = vadd.f32 %v1356, %v1361
    %v1366 = vadd.f32 %v1357, %v1363
    %v1367 = vrot.slane %v1364, 7
    %v1368 = vrot.slane %v1365, 7
    %v1369 = vrot.slane %v1366, 7
    %v1370 = vsel %vm257, %v1368, %v1369
    %v1371 = vsel %vm257, %v1367, %v1368
    %v1372 = vsel %vm257, %v1369, %v1367
    %v1373 = vadd.f32 %v1364, %v1372
    %v1374 = vadd.f32 %v1365, %v1371
    %v1375 = vadd.f32 %v1366, %v1370
    %v1376 = vrot.slane %v1364, 1
    %v1377 = vrot.slane %v1365, 1
    %v1378 = vrot.slane %v1366, 1
    %v1379 = vsel %vm244, %v1377, %v1378
    %v1380 = vsel %vm244, %v1376, %v1377
    %v1381 = vsel %vm244, %v1378, %v1376
    %v1382 = vadd.f32 %v1373, %v1380
    %v1383 = vadd.f32 %v1374, %v1379
    %v1384 = vadd.f32 %v1375, %v1381
    %v1385 = vmul.f32 %v1346, 9.0
    %v1386 = vmul.f32 %v1347, 9.0
    %v1387 = vmul.f32 %v1348, 9.0
    %v1388 = vsub.f32 %v1382, %v1385
    %v1389 = vsub.f32 %v1383, %v1386
    %v1390 = vsub.f32 %v1384, %v1387
    %v1391 = vmul.f32 %v1388, 0.04
    %v1392 = vmul.f32 %v1389, 0.04
    %v1393 = vmul.f32 %v1390, 0.04
    %v1394 = vadd.f32 %v1343, %v1391
    %v1395 = vadd.f32 %v1344, %v1392
    %v1396 = vadd.f32 %v1345, %v1393
    %1397 = vrot.lane.b32.xlu0 %v1232, 1
    %v1398 = vpop.permute.xlu0 %1397
    %1399 = vrot.lane.b32.xlu0 %v1233, 1
    %v1400 = vpop.permute.xlu0 %1399
    %1401 = vrot.lane.b32.xlu0 %v1234, 1
    %v1402 = vpop.permute.xlu0 %1401
    %v1403 = vadd.f32 %v1232, %v1398
    %v1404 = vadd.f32 %v1233, %v1400
    %v1405 = vadd.f32 %v1234, %v1402
    %1406 = vrot.lane.b32.xlu0 %v1232, 127
    %v1407 = vpop.permute.xlu0 %1406
    %1408 = vrot.lane.b32.xlu0 %v1233, 127
    %v1409 = vpop.permute.xlu0 %1408
    %1410 = vrot.lane.b32.xlu0 %v1234, 127
    %v1411 = vpop.permute.xlu0 %1410
    %v1412 = vadd.f32 %v1403, %v1407
    %v1413 = vadd.f32 %v1404, %v1409
    %v1414 = vadd.f32 %v1405, %v1411
    %v1415 = vrot.slane %v1412, 7
    %v1416 = vrot.slane %v1413, 7
    %v1417 = vrot.slane %v1414, 7
    %v1418 = vsel %vm257, %v1416, %v1417
    %v1419 = vsel %vm257, %v1415, %v1416
    %v1420 = vsel %vm257, %v1417, %v1415
    %v1421 = vadd.f32 %v1412, %v1420
    %v1422 = vadd.f32 %v1413, %v1419
    %v1423 = vadd.f32 %v1414, %v1418
    %v1424 = vrot.slane %v1412, 1
    %v1425 = vrot.slane %v1413, 1
    %v1426 = vrot.slane %v1414, 1
    %v1427 = vsel %vm244, %v1425, %v1426
    %v1428 = vsel %vm244, %v1424, %v1425
    %v1429 = vsel %vm244, %v1426, %v1424
    %v1430 = vadd.f32 %v1421, %v1428
    %v1431 = vadd.f32 %v1422, %v1427
    %v1432 = vadd.f32 %v1423, %v1429
    %v1433 = vmul.f32 %v1232, 9.0
    %v1434 = vmul.f32 %v1233, 9.0
    %v1435 = vmul.f32 %v1234, 9.0
    %v1436 = vsub.f32 %v1430, %v1433
    %v1437 = vsub.f32 %v1431, %v1434
    %v1438 = vsub.f32 %v1432, %v1435
    %v1439 = vmul.f32 %v1436, 0.04
    %v1440 = vmul.f32 %v1437, 0.04
    %v1441 = vmul.f32 %v1438, 0.04
    %v1442 = vmul.f32 %v1010, %v1439
    %v1443 = vmul.f32 %v1011, %v1440
    %v1444 = vmul.f32 %v1012, %v1441
    %v1445 = vsub.f32 %v1394, %v1442
    %v1446 = vsub.f32 %v1395, %v1443
    %v1447 = vsub.f32 %v1396, %v1444
    %v1448 = vmul.f32 %v1445, 0.5
    %v1449 = vmul.f32 %v1446, 0.5
    %v1450 = vmul.f32 %v1447, 0.5
    %v1451 = vmul.f32 %v1340, 0.5
    %v1452 = vmul.f32 %v1341, 0.5
    %v1453 = vmul.f32 %v1342, 0.5
    %v1454 = vadd.f32 %v205, %v1451
    %v1455 = vadd.f32 %v206, %v1452
    %v1456 = vadd.f32 %v207, %v1453
    %v1457 = vmul.f32 %v1007, %v1061
    %v1458 = vmul.f32 %v1008, %v1062
    %v1459 = vmul.f32 %v1009, %v1063
    %v1460 = vmul.f32 %v1457, 0.5
    %v1461 = vmul.f32 %v1458, 0.5
    %v1462 = vmul.f32 %v1459, 0.5
    %v1463 = vsub.f32 %v1454, %v1460
    %v1464 = vsub.f32 %v1455, %v1461
    %v1465 = vsub.f32 %v1456, %v1462
    %v1466 = vmul.f32 %v1010, %v1079
    %v1467 = vmul.f32 %v1011, %v1080
    %v1468 = vmul.f32 %v1012, %v1081
    %v1469 = vmul.f32 %v1466, 0.5
    %v1470 = vmul.f32 %v1467, 0.5
    %v1471 = vmul.f32 %v1468, 0.5
    %v1472 = vsub.f32 %v1463, %v1469
    %v1473 = vsub.f32 %v1464, %v1470
    %v1474 = vsub.f32 %v1465, %v1471
    %v1475 = vmul.f32 %v1448, 0.5
    %v1476 = vmul.f32 %v1449, 0.5
    %v1477 = vmul.f32 %v1450, 0.5
    %v1478 = vadd.f32 %v208, %v1475
    %v1479 = vadd.f32 %v209, %v1476
    %v1480 = vadd.f32 %v210, %v1477
    %v1481 = vmul.f32 %v1007, %v1130
    %v1482 = vmul.f32 %v1008, %v1131
    %v1483 = vmul.f32 %v1009, %v1132
    %v1484 = vmul.f32 %v1481, 0.5
    %v1485 = vmul.f32 %v1482, 0.5
    %v1486 = vmul.f32 %v1483, 0.5
    %v1487 = vsub.f32 %v1478, %v1484
    %v1488 = vsub.f32 %v1479, %v1485
    %v1489 = vsub.f32 %v1480, %v1486
    %v1490 = vmul.f32 %v1010, %v1148
    %v1491 = vmul.f32 %v1011, %v1149
    %v1492 = vmul.f32 %v1012, %v1150
    %v1493 = vmul.f32 %v1490, 0.5
    %v1494 = vmul.f32 %v1491, 0.5
    %v1495 = vmul.f32 %v1492, 0.5
    %v1496 = vsub.f32 %v1487, %v1493
    %v1497 = vsub.f32 %v1488, %v1494
    %v1498 = vsub.f32 %v1489, %v1495
    %v1499 = vsub.f32 %v1472, %v824
    %v1500 = vsub.f32 %v1473, %v825
    %v1501 = vsub.f32 %v1474, %v826
    %v1502 = vsub.f32 %v1496, %v830
    %v1503 = vsub.f32 %v1497, %v831
    %v1504 = vsub.f32 %v1498, %v832
    %v1505 = vmul.f32 %v1499, %v1499
    %v1506 = vmul.f32 %v1500, %v1500
    %v1507 = vmul.f32 %v1501, %v1501
    %v1508 = vmul.f32 %v1502, %v1502
    %v1509 = vmul.f32 %v1503, %v1503
    %v1510 = vmul.f32 %v1504, %v1504
    %v1511 = vadd.f32 %v1505, %v1508
    %v1512 = vadd.f32 %v1506, %v1509
    %v1513 = vadd.f32 %v1507, %v1510
    %v1514 = vrsqrt.pop %v1511
    %v1515 = vmul.f32 %v1511, %v1514
    %vm1516 = vcmp.eq.f32.partialorder %v1511, inf
    %v1517 = vsel %vm1516, %v1511, %v1515
    %vm1518 = vcmp.eq.f32.partialorder %v1511, 0.0
    %v1519 = vand.u32 %v1511, 2147483648
    %v1520 = vsel %vm1518, %v1519, %v1517
    %v1521 = vrsqrt.pop %v1512
    %v1522 = vmul.f32 %v1512, %v1521
    %vm1523 = vcmp.eq.f32.partialorder %v1512, inf
    %v1524 = vsel %vm1523, %v1512, %v1522
    %vm1525 = vcmp.eq.f32.partialorder %v1512, 0.0
    %v1526 = vand.u32 %v1512, 2147483648
    %v1527 = vsel %vm1525, %v1526, %v1524
    %v1528 = vrsqrt.pop %v1513
    %v1529 = vmul.f32 %v1513, %v1528
    %vm1530 = vcmp.eq.f32.partialorder %v1513, inf
    %v1531 = vsel %vm1530, %v1513, %v1529
    %vm1532 = vcmp.eq.f32.partialorder %v1513, 0.0
    %v1533 = vand.u32 %v1513, 2147483648
    %v1534 = vsel %vm1532, %v1533, %v1531
    %v1535 = vmul.f32 %v1520, 0.003025
    %v1536 = vmul.f32 %v1527, 0.003025
    %v1537 = vmul.f32 %v1534, 0.003025
    %v1538 = vmul.f32 %v1535, %v992
    %v1539 = vmul.f32 %v1536, %v994
    %v1540 = vmul.f32 %v1537, %v996
    %v1541 = vmul.f32 %v1538, 4.905
    %v1542 = vmul.f32 %v1539, 4.905
    %v1543 = vmul.f32 %v1540, 4.905
    %v1544 = vadd.f32 %v1541, 1.0
    %v1545 = vadd.f32 %v1542, 1.0
    %v1546 = vadd.f32 %v1543, 1.0
    %v1547 = vrcp.pop %v1544
    %v1548 = vrcp.pop %v1545
    %v1549 = vrcp.pop %v1546
    %v1550 = vmul.f32 %v1499, %v1547
    %v1551 = vmul.f32 %v1500, %v1548
    %v1552 = vmul.f32 %v1501, %v1549
    %v1553 = vmul.f32 %v1502, %v1547
    %v1554 = vmul.f32 %v1503, %v1548
    %v1555 = vmul.f32 %v1504, %v1549
    %v1556 = vsel %vm202, %v1550, 0.0
    %v1557 = vsel %vm203, %v1551, 0.0
    %v1558 = vsel %vm204, %v1552, 0.0
    %v1559 = vrot.slane %v1556, 1
    %v1560 = vrot.slane %v1557, 1
    %v1561 = vrot.slane %v1558, 1
    %v1562 = vsel %vm244, %v1560, %v1561
    %v1563 = vsel %vm244, %v1559, %v1560
    %v1564 = vsel %vm244, %v1561, %v1559
    %v1565 = vsel %vm238, %v1563, %v1556
    %v1566 = vsel %vm239, %v1562, %v1557
    %v1567 = vsel %vm240, %v1564, %v1558
    %v1568 = vrot.slane %v1565, 7
    %v1569 = vrot.slane %v1566, 7
    %v1570 = vrot.slane %v1567, 7
    %v1571 = vsel %vm257, %v1569, %v1570
    %v1572 = vsel %vm257, %v1568, %v1569
    %v1573 = vsel %vm257, %v1570, %v1568
    %v1574 = vsel %vm251, %v1573, %v1565
    %v1575 = vsel %vm252, %v1572, %v1566
    %v1576 = vsel %vm253, %v1571, %v1567
    %v1577 = vsel %vm202, %v1553, 0.0
    %v1578 = vsel %vm203, %v1554, 0.0
    %v1579 = vsel %vm204, %v1555, 0.0
    %1580 = vrot.lane.b32.xlu0 %v1577, 127
    %v1581 = vpop.permute.xlu0 %1580
    %1582 = vrot.lane.b32.xlu0 %v1578, 127
    %v1583 = vpop.permute.xlu0 %1582
    %1584 = vrot.lane.b32.xlu0 %v1579, 127
    %v1585 = vpop.permute.xlu0 %1584
    %v1586 = vsel %vm267, %v1581, %v1577
    %v1587 = vsel %vm267, %v1583, %v1578
    %v1588 = vsel %vm267, %v1585, %v1579
    %1589 = vrot.lane.b32.xlu0 %v1586, 1
    %v1590 = vpop.permute.xlu0 %1589
    %1591 = vrot.lane.b32.xlu0 %v1587, 1
    %v1592 = vpop.permute.xlu0 %1591
    %1593 = vrot.lane.b32.xlu0 %v1588, 1
    %v1594 = vpop.permute.xlu0 %1593
    %v1595 = vsel %vm277, %v1590, %v1586
    %v1596 = vsel %vm277, %v1592, %v1587
    %v1597 = vsel %vm277, %v1594, %v1588
    %v1598 = vsel %vm287, 0.0, %v1595
    %v1599 = vsel %vm288, 0.0, %v1596
    %v1600 = vsel %vm289, 0.0, %v1597
    %v1601 = vmax.f32 %v226, %v881
    %v1602 = vmax.f32 %v227, %v882
    %v1603 = vmax.f32 %v228, %v883
    %v1604 = vmax.f32 %v223, %v881
    %v1605 = vmax.f32 %v224, %v882
    %v1606 = vmax.f32 %v225, %v883
    %v1607 = vsel %vm202, %v1601, 0.0
    %v1608 = vsel %vm203, %v1602, 0.0
    %v1609 = vsel %vm204, %v1603, 0.0
    %1610 = vrot.lane.b32.xlu0 %v1607, 1
    %v1611 = vpop.permute.xlu0 %1610
    %1612 = vrot.lane.b32.xlu0 %v1608, 1
    %v1613 = vpop.permute.xlu0 %1612
    %1614 = vrot.lane.b32.xlu0 %v1609, 1
    %v1615 = vpop.permute.xlu0 %1614
    %1616 = vrot.lane.b32.xlu0 %v1607, 127
    %v1617 = vpop.permute.xlu0 %1616
    %1618 = vrot.lane.b32.xlu0 %v1608, 127
    %v1619 = vpop.permute.xlu0 %1618
    %1620 = vrot.lane.b32.xlu0 %v1609, 127
    %v1621 = vpop.permute.xlu0 %1620
    %v1622 = vadd.f32 %v1607, %v1611
    %v1623 = vadd.f32 %v1608, %v1613
    %v1624 = vadd.f32 %v1609, %v1615
    %v1625 = vadd.f32 %v1622, %v1617
    %v1626 = vadd.f32 %v1623, %v1619
    %v1627 = vadd.f32 %v1624, %v1621
    %v1628 = vrot.slane %v1625, 7
    %v1629 = vrot.slane %v1626, 7
    %v1630 = vrot.slane %v1627, 7
    %v1631 = vsel %vm257, %v1629, %v1630
    %v1632 = vsel %vm257, %v1628, %v1629
    %v1633 = vsel %vm257, %v1630, %v1628
    %v1634 = vadd.f32 %v1625, %v1633
    %v1635 = vadd.f32 %v1626, %v1632
    %v1636 = vadd.f32 %v1627, %v1631
    %v1637 = vrot.slane %v1625, 1
    %v1638 = vrot.slane %v1626, 1
    %v1639 = vrot.slane %v1627, 1
    %v1640 = vsel %vm244, %v1638, %v1639
    %v1641 = vsel %vm244, %v1637, %v1638
    %v1642 = vsel %vm244, %v1639, %v1637
    %v1643 = vadd.f32 %v1634, %v1641
    %v1644 = vadd.f32 %v1635, %v1640
    %v1645 = vadd.f32 %v1636, %v1642
    %v1646 = vmul.f32 %v1607, 9.0
    %v1647 = vmul.f32 %v1608, 9.0
    %v1648 = vmul.f32 %v1609, 9.0
    %v1649 = vsub.f32 %v1643, %v1646
    %v1650 = vsub.f32 %v1644, %v1647
    %v1651 = vsub.f32 %v1645, %v1648
    %v1652 = vmul.f32 %v1649, 0.04
    %v1653 = vmul.f32 %v1650, 0.04
    %v1654 = vmul.f32 %v1651, 0.04
    %v1655 = vsub.f32 %v1617, %v1611
    %v1656 = vsub.f32 %v1619, %v1613
    %v1657 = vsub.f32 %v1621, %v1615
    %v1658 = vmul.f32 %v1655, 0.1
    %v1659 = vmul.f32 %v1656, 0.1
    %v1660 = vmul.f32 %v1657, 0.1
    %v1661 = vrot.slane %v1607, 1
    %v1662 = vrot.slane %v1608, 1
    %v1663 = vrot.slane %v1609, 1
    %v1664 = vsel %vm244, %v1662, %v1663
    %v1665 = vsel %vm244, %v1661, %v1662
    %v1666 = vsel %vm244, %v1663, %v1661
    %v1667 = vrot.slane %v1607, 7
    %v1668 = vrot.slane %v1608, 7
    %v1669 = vrot.slane %v1609, 7
    %v1670 = vsel %vm257, %v1668, %v1669
    %v1671 = vsel %vm257, %v1667, %v1668
    %v1672 = vsel %vm257, %v1669, %v1667
    %v1673 = vsub.f32 %v1665, %v1672
    %v1674 = vsub.f32 %v1664, %v1671
    %v1675 = vsub.f32 %v1666, %v1670
    %v1676 = vmul.f32 %v1673, 0.1
    %v1677 = vmul.f32 %v1674, 0.1
    %v1678 = vmul.f32 %v1675, 0.1
    %1679 = vrot.lane.b32.xlu0 %v1574, 127
    %v1680 = vpop.permute.xlu0 %1679
    %1681 = vrot.lane.b32.xlu0 %v1575, 127
    %v1682 = vpop.permute.xlu0 %1681
    %1683 = vrot.lane.b32.xlu0 %v1576, 127
    %v1684 = vpop.permute.xlu0 %1683
    %1685 = vrot.lane.b32.xlu0 %v1574, 1
    %v1686 = vpop.permute.xlu0 %1685
    %1687 = vrot.lane.b32.xlu0 %v1575, 1
    %v1688 = vpop.permute.xlu0 %1687
    %1689 = vrot.lane.b32.xlu0 %v1576, 1
    %v1690 = vpop.permute.xlu0 %1689
    %v1691 = vsub.f32 %v1680, %v1686
    %v1692 = vsub.f32 %v1682, %v1688
    %v1693 = vsub.f32 %v1684, %v1690
    %v1694 = vmul.f32 %v1691, 0.1
    %v1695 = vmul.f32 %v1692, 0.1
    %v1696 = vmul.f32 %v1693, 0.1
    %v1697 = vrot.slane %v1598, 1
    %v1698 = vrot.slane %v1599, 1
    %v1699 = vrot.slane %v1600, 1
    %v1700 = vsel %vm244, %v1698, %v1699
    %v1701 = vsel %vm244, %v1697, %v1698
    %v1702 = vsel %vm244, %v1699, %v1697
    %v1703 = vrot.slane %v1598, 7
    %v1704 = vrot.slane %v1599, 7
    %v1705 = vrot.slane %v1600, 7
    %v1706 = vsel %vm257, %v1704, %v1705
    %v1707 = vsel %vm257, %v1703, %v1704
    %v1708 = vsel %vm257, %v1705, %v1703
    %v1709 = vsub.f32 %v1701, %v1708
    %v1710 = vsub.f32 %v1700, %v1707
    %v1711 = vsub.f32 %v1702, %v1706
    %v1712 = vmul.f32 %v1709, 0.1
    %v1713 = vmul.f32 %v1710, 0.1
    %v1714 = vmul.f32 %v1711, 0.1
    %v1715 = vand.u32 2147483647, %v1550
    %v1716 = vand.u32 2147483647, %v1551
    %v1717 = vand.u32 2147483647, %v1552
    %v1718 = vand.u32 2147483647, %v1553
    %v1719 = vand.u32 2147483647, %v1554
    %v1720 = vand.u32 2147483647, %v1555
    %v1721 = vadd.f32 %v1715, %v1718
    %v1722 = vadd.f32 %v1716, %v1719
    %v1723 = vadd.f32 %v1717, %v1720
    %v1724 = vmul.f32 %v1721, 5.0
    %v1725 = vmul.f32 %v1722, 5.0
    %v1726 = vmul.f32 %v1723, 5.0
    %v1727 = vmul.f32 %v1724, %v1652
    %v1728 = vmul.f32 %v1725, %v1653
    %v1729 = vmul.f32 %v1726, %v1654
    %v1730 = vand.u32 2147483647, %v1727
    %v1731 = vand.u32 2147483647, %v1728
    %v1732 = vand.u32 2147483647, %v1729
    %v1733 = vmul.f32 %v1730, 0.025
    %v1734 = vmul.f32 %v1731, 0.025
    %v1735 = vmul.f32 %v1732, 0.025
    %v1736 = vand.u32 2147483647, %v1658
    %v1737 = vand.u32 2147483647, %v1659
    %v1738 = vand.u32 2147483647, %v1660
    %v1739 = vand.u32 2147483647, %v1676
    %v1740 = vand.u32 2147483647, %v1677
    %v1741 = vand.u32 2147483647, %v1678
    %v1742 = vadd.f32 %v1736, %v1739
    %v1743 = vadd.f32 %v1737, %v1740
    %v1744 = vadd.f32 %v1738, %v1741
    %v1745 = vmul.f32 %v1742, 0.02
    %v1746 = vmul.f32 %v1743, 0.02
    %v1747 = vmul.f32 %v1744, 0.02
    %v1748 = vadd.f32 %v1745, 0.001
    %v1749 = vadd.f32 %v1746, 0.001
    %v1750 = vadd.f32 %v1747, 0.001
    %v1751 = vrcp.pop %v1748
    %v1752 = vrcp.pop %v1749
    %v1753 = vrcp.pop %v1750
    %v1754 = vmul.f32 %v1733, %v1751
    %v1755 = vmul.f32 %v1734, %v1752
    %v1756 = vmul.f32 %v1735, %v1753
    %v1757 = vmin.f32 %v1754, %v229
    %v1758 = vmin.f32 %v1755, %v230
    %v1759 = vmin.f32 %v1756, %v231
    %v1760 = vsel %vm202, %v1757, 0.0
    %v1761 = vsel %vm203, %v1758, 0.0
    %v1762 = vsel %vm204, %v1759, 0.0
    %v1763 = vmul.f32 %v1754, %v1652
    %v1764 = vmul.f32 %v1755, %v1653
    %v1765 = vmul.f32 %v1756, %v1654
    %v1766 = vmul.f32 %v1607, %v1760
    %v1767 = vmul.f32 %v1608, %v1761
    %v1768 = vmul.f32 %v1609, %v1762
    %1769 = vrot.lane.b32.xlu0 %v1766, 1
    %v1770 = vpop.permute.xlu0 %1769
    %1771 = vrot.lane.b32.xlu0 %v1767, 1
    %v1772 = vpop.permute.xlu0 %1771
    %1773 = vrot.lane.b32.xlu0 %v1768, 1
    %v1774 = vpop.permute.xlu0 %1773
    %v1775 = vadd.f32 %v1766, %v1770
    %v1776 = vadd.f32 %v1767, %v1772
    %v1777 = vadd.f32 %v1768, %v1774
    %1778 = vrot.lane.b32.xlu0 %v1766, 127
    %v1779 = vpop.permute.xlu0 %1778
    %1780 = vrot.lane.b32.xlu0 %v1767, 127
    %v1781 = vpop.permute.xlu0 %1780
    %1782 = vrot.lane.b32.xlu0 %v1768, 127
    %v1783 = vpop.permute.xlu0 %1782
    %v1784 = vadd.f32 %v1775, %v1779
    %v1785 = vadd.f32 %v1776, %v1781
    %v1786 = vadd.f32 %v1777, %v1783
    %v1787 = vrot.slane %v1784, 7
    %v1788 = vrot.slane %v1785, 7
    %v1789 = vrot.slane %v1786, 7
    %v1790 = vsel %vm257, %v1788, %v1789
    %v1791 = vsel %vm257, %v1787, %v1788
    %v1792 = vsel %vm257, %v1789, %v1787
    %v1793 = vadd.f32 %v1784, %v1792
    %v1794 = vadd.f32 %v1785, %v1791
    %v1795 = vadd.f32 %v1786, %v1790
    %v1796 = vrot.slane %v1784, 1
    %v1797 = vrot.slane %v1785, 1
    %v1798 = vrot.slane %v1786, 1
    %v1799 = vsel %vm244, %v1797, %v1798
    %v1800 = vsel %vm244, %v1796, %v1797
    %v1801 = vsel %vm244, %v1798, %v1796
    %v1802 = vadd.f32 %v1793, %v1800
    %v1803 = vadd.f32 %v1794, %v1799
    %v1804 = vadd.f32 %v1795, %v1801
    %v1805 = vmul.f32 %v1766, 9.0
    %v1806 = vmul.f32 %v1767, 9.0
    %v1807 = vmul.f32 %v1768, 9.0
    %v1808 = vsub.f32 %v1802, %v1805
    %v1809 = vsub.f32 %v1803, %v1806
    %v1810 = vsub.f32 %v1804, %v1807
    %v1811 = vmul.f32 %v1808, 0.04
    %v1812 = vmul.f32 %v1809, 0.04
    %v1813 = vmul.f32 %v1810, 0.04
    %v1814 = vadd.f32 %v1763, %v1811
    %v1815 = vadd.f32 %v1764, %v1812
    %v1816 = vadd.f32 %v1765, %v1813
    %1817 = vrot.lane.b32.xlu0 %v1760, 1
    %v1818 = vpop.permute.xlu0 %1817
    %1819 = vrot.lane.b32.xlu0 %v1761, 1
    %v1820 = vpop.permute.xlu0 %1819
    %1821 = vrot.lane.b32.xlu0 %v1762, 1
    %v1822 = vpop.permute.xlu0 %1821
    %v1823 = vadd.f32 %v1760, %v1818
    %v1824 = vadd.f32 %v1761, %v1820
    %v1825 = vadd.f32 %v1762, %v1822
    %1826 = vrot.lane.b32.xlu0 %v1760, 127
    %v1827 = vpop.permute.xlu0 %1826
    %1828 = vrot.lane.b32.xlu0 %v1761, 127
    %v1829 = vpop.permute.xlu0 %1828
    %1830 = vrot.lane.b32.xlu0 %v1762, 127
    %v1831 = vpop.permute.xlu0 %1830
    %v1832 = vadd.f32 %v1823, %v1827
    %v1833 = vadd.f32 %v1824, %v1829
    %v1834 = vadd.f32 %v1825, %v1831
    %v1835 = vrot.slane %v1832, 7
    %v1836 = vrot.slane %v1833, 7
    %v1837 = vrot.slane %v1834, 7
    %v1838 = vsel %vm257, %v1836, %v1837
    %v1839 = vsel %vm257, %v1835, %v1836
    %v1840 = vsel %vm257, %v1837, %v1835
    %v1841 = vadd.f32 %v1832, %v1840
    %v1842 = vadd.f32 %v1833, %v1839
    %v1843 = vadd.f32 %v1834, %v1838
    %v1844 = vrot.slane %v1832, 1
    %v1845 = vrot.slane %v1833, 1
    %v1846 = vrot.slane %v1834, 1
    %v1847 = vsel %vm244, %v1845, %v1846
    %v1848 = vsel %vm244, %v1844, %v1845
    %v1849 = vsel %vm244, %v1846, %v1844
    %v1850 = vadd.f32 %v1841, %v1848
    %v1851 = vadd.f32 %v1842, %v1847
    %v1852 = vadd.f32 %v1843, %v1849
    %v1853 = vmul.f32 %v1760, 9.0
    %v1854 = vmul.f32 %v1761, 9.0
    %v1855 = vmul.f32 %v1762, 9.0
    %v1856 = vsub.f32 %v1850, %v1853
    %v1857 = vsub.f32 %v1851, %v1854
    %v1858 = vsub.f32 %v1852, %v1855
    %v1859 = vmul.f32 %v1856, 0.04
    %v1860 = vmul.f32 %v1857, 0.04
    %v1861 = vmul.f32 %v1858, 0.04
    %v1862 = vmul.f32 %v1601, %v1859
    %v1863 = vmul.f32 %v1602, %v1860
    %v1864 = vmul.f32 %v1603, %v1861
    %v1865 = vsub.f32 %v1814, %v1862
    %v1866 = vsub.f32 %v1815, %v1863
    %v1867 = vsub.f32 %v1816, %v1864
    %v1868 = vmul.f32 %v1865, 0.5
    %v1869 = vmul.f32 %v1866, 0.5
    %v1870 = vmul.f32 %v1867, 0.5
    %v1871 = vsel %vm202, %v220, 0.0
    %v1872 = vsel %vm203, %v221, 0.0
    %v1873 = vsel %vm204, %v222, 0.0
    %1874 = vrot.lane.b32.xlu0 %v1871, 1
    %v1875 = vpop.permute.xlu0 %1874
    %1876 = vrot.lane.b32.xlu0 %v1872, 1
    %v1877 = vpop.permute.xlu0 %1876
    %1878 = vrot.lane.b32.xlu0 %v1873, 1
    %v1879 = vpop.permute.xlu0 %1878
    %v1880 = vadd.f32 %v1871, %v1875
    %v1881 = vadd.f32 %v1872, %v1877
    %v1882 = vadd.f32 %v1873, %v1879
    %1883 = vrot.lane.b32.xlu0 %v1871, 127
    %v1884 = vpop.permute.xlu0 %1883
    %1885 = vrot.lane.b32.xlu0 %v1872, 127
    %v1886 = vpop.permute.xlu0 %1885
    %1887 = vrot.lane.b32.xlu0 %v1873, 127
    %v1888 = vpop.permute.xlu0 %1887
    %v1889 = vadd.f32 %v1880, %v1884
    %v1890 = vadd.f32 %v1881, %v1886
    %v1891 = vadd.f32 %v1882, %v1888
    %v1892 = vrot.slane %v1889, 7
    %v1893 = vrot.slane %v1890, 7
    %v1894 = vrot.slane %v1891, 7
    %v1895 = vsel %vm257, %v1893, %v1894
    %v1896 = vsel %vm257, %v1892, %v1893
    %v1897 = vsel %vm257, %v1894, %v1892
    %v1898 = vadd.f32 %v1889, %v1897
    %v1899 = vadd.f32 %v1890, %v1896
    %v1900 = vadd.f32 %v1891, %v1895
    %v1901 = vrot.slane %v1889, 1
    %v1902 = vrot.slane %v1890, 1
    %v1903 = vrot.slane %v1891, 1
    %v1904 = vsel %vm244, %v1902, %v1903
    %v1905 = vsel %vm244, %v1901, %v1902
    %v1906 = vsel %vm244, %v1903, %v1901
    %v1907 = vadd.f32 %v1898, %v1905
    %v1908 = vadd.f32 %v1899, %v1904
    %v1909 = vadd.f32 %v1900, %v1906
    %v1910 = vmul.f32 %v1907, 0.11111111
    %v1911 = vmul.f32 %v1908, 0.11111111
    %v1912 = vmul.f32 %v1909, 0.11111111
    %v1913 = vsub.f32 0.0, %v1658
    %v1914 = vsub.f32 0.0, %v1659
    %v1915 = vsub.f32 0.0, %v1660
    %v1916 = vmul.f32 %v1913, %v1550
    %v1917 = vmul.f32 %v1914, %v1551
    %v1918 = vmul.f32 %v1915, %v1552
    %v1919 = vmul.f32 %v1676, %v1553
    %v1920 = vmul.f32 %v1677, %v1554
    %v1921 = vmul.f32 %v1678, %v1555
    %v1922 = vsub.f32 %v1916, %v1919
    %v1923 = vsub.f32 %v1917, %v1920
    %v1924 = vsub.f32 %v1918, %v1921
    %v1925 = vmul.f32 %v1601, %v1694
    %v1926 = vmul.f32 %v1602, %v1695
    %v1927 = vmul.f32 %v1603, %v1696
    %v1928 = vsub.f32 %v1922, %v1925
    %v1929 = vsub.f32 %v1923, %v1926
    %v1930 = vsub.f32 %v1924, %v1927
    %v1931 = vmul.f32 %v1601, %v1712
    %v1932 = vmul.f32 %v1602, %v1713
    %v1933 = vmul.f32 %v1603, %v1714
    %v1934 = vsub.f32 %v1928, %v1931
    %v1935 = vsub.f32 %v1929, %v1932
    %v1936 = vsub.f32 %v1930, %v1933
    %v1937 = vadd.f32 %v1934, %v1868
    %v1938 = vadd.f32 %v1935, %v1869
    %v1939 = vadd.f32 %v1936, %v1870
    %v1940 = vmul.f32 %v1910, 2.0
    %v1941 = vmul.f32 %v1911, 2.0
    %v1942 = vmul.f32 %v1912, 2.0
    %v1943 = vsub.f32 %v1937, %v1940
    %v1944 = vsub.f32 %v1938, %v1941
    %v1945 = vsub.f32 %v1939, %v1942
    %v1946 = vadd.f32 %v1943, %v232
    %v1947 = vadd.f32 %v1944, %v233
    %v1948 = vadd.f32 %v1945, %v234
    %v1949 = vmul.f32 %v1946, 0.4077472
    %v1950 = vmul.f32 %v1947, 0.4077472
    %v1951 = vmul.f32 %v1948, 0.4077472
    %v1952 = vmul.f32 %v1604, 0.5
    %v1953 = vmul.f32 %v1605, 0.5
    %v1954 = vmul.f32 %v1606, 0.5
    %v1955 = vrcp.pop %v1952
    %v1956 = vmul.f32 %v1949, %v1955
    %v1957 = vrcp.pop %v1953
    %v1958 = vmul.f32 %v1950, %v1957
    %v1959 = vrcp.pop %v1954
    %v1960 = vmul.f32 %v1951, %v1959
    %v1961 = vrcp.pop %v1604
    %v1962 = vmul.f32 1.6309888, %v1961
    %v1963 = vrcp.pop %v1605
    %v1964 = vmul.f32 1.6309888, %v1963
    %v1965 = vrcp.pop %v1606
    %v1966 = vmul.f32 1.6309888, %v1965
    %v1967 = vadd.f32 %v1962, 0.32
    %v1968 = vadd.f32 %v1964, 0.32
    %v1969 = vadd.f32 %v1966, 0.32
    %v1970 = vrcp.pop %v1967
    %v1971 = vmul.f32 1.0, %v1970
    %v1972 = vrcp.pop %v1968
    %v1973 = vmul.f32 1.0, %v1972
    %v1974 = vrcp.pop %v1969
    %v1975 = vmul.f32 1.0, %v1974
    %v1976 = vsel %vm202, %v217, 0.0
    %v1977 = vsel %vm203, %v218, 0.0
    %v1978 = vsel %vm204, %v219, 0.0
    %1979 = vrot.lane.b32.xlu0 %v1976, 1
    %v1980 = vpop.permute.xlu0 %1979
    %1981 = vrot.lane.b32.xlu0 %v1977, 1
    %v1982 = vpop.permute.xlu0 %1981
    %1983 = vrot.lane.b32.xlu0 %v1978, 1
    %v1984 = vpop.permute.xlu0 %1983
    %v1985 = vadd.f32 %v1976, %v1980
    %v1986 = vadd.f32 %v1977, %v1982
    %v1987 = vadd.f32 %v1978, %v1984
    %1988 = vrot.lane.b32.xlu0 %v1976, 127
    %v1989 = vpop.permute.xlu0 %1988
    %1990 = vrot.lane.b32.xlu0 %v1977, 127
    %v1991 = vpop.permute.xlu0 %1990
    %1992 = vrot.lane.b32.xlu0 %v1978, 127
    %v1993 = vpop.permute.xlu0 %1992
    %v1994 = vadd.f32 %v1985, %v1989
    %v1995 = vadd.f32 %v1986, %v1991
    %v1996 = vadd.f32 %v1987, %v1993
    %v1997 = vrot.slane %v1994, 7
    %v1998 = vrot.slane %v1995, 7
    %v1999 = vrot.slane %v1996, 7
    %v2000 = vsel %vm257, %v1998, %v1999
    %v2001 = vsel %vm257, %v1997, %v1998
    %v2002 = vsel %vm257, %v1999, %v1997
    %v2003 = vadd.f32 %v1994, %v2002
    %v2004 = vadd.f32 %v1995, %v2001
    %v2005 = vadd.f32 %v1996, %v2000
    %v2006 = vrot.slane %v1994, 1
    %v2007 = vrot.slane %v1995, 1
    %v2008 = vrot.slane %v1996, 1
    %v2009 = vsel %vm244, %v2007, %v2008
    %v2010 = vsel %vm244, %v2006, %v2007
    %v2011 = vsel %vm244, %v2008, %v2006
    %v2012 = vadd.f32 %v2003, %v2010
    %v2013 = vadd.f32 %v2004, %v2009
    %v2014 = vadd.f32 %v2005, %v2011
    %v2015 = vmul.f32 %v1976, 9.0
    %v2016 = vmul.f32 %v1977, 9.0
    %v2017 = vmul.f32 %v1978, 9.0
    %v2018 = vsub.f32 %v2012, %v2015
    %v2019 = vsub.f32 %v2013, %v2016
    %v2020 = vsub.f32 %v2014, %v2017
    %v2021 = vmul.f32 %v2018, 0.04
    %v2022 = vmul.f32 %v2019, 0.04
    %v2023 = vmul.f32 %v2020, 0.04
    %v2024 = vsub.f32 0.0, %v2021
    %v2025 = vsub.f32 0.0, %v2022
    %v2026 = vsub.f32 0.0, %v2023
    %v2027 = vmul.f32 %v1962, %v217
    %v2028 = vmul.f32 %v1964, %v218
    %v2029 = vmul.f32 %v1966, %v219
    %v2030 = vadd.f32 %v2024, %v2027
    %v2031 = vadd.f32 %v2025, %v2028
    %v2032 = vadd.f32 %v2026, %v2029
    %v2033 = vmul.f32 %v2030, %v1971
    %v2034 = vmul.f32 %v2031, %v1973
    %v2035 = vmul.f32 %v2032, %v1975
    %v2036 = vsub.f32 %v217, %v2033
    %v2037 = vsub.f32 %v218, %v2034
    %v2038 = vsub.f32 %v219, %v2035
    %v2039 = vmul.f32 %v1956, %v1971
    %v2040 = vmul.f32 %v1958, %v1973
    %v2041 = vmul.f32 %v1960, %v1975
    %v2042 = vadd.f32 %v2036, %v2039
    %v2043 = vadd.f32 %v2037, %v2040
    %v2044 = vadd.f32 %v2038, %v2041
    %v2045 = vsel %vm202, %v2042, 0.0
    %v2046 = vsel %vm203, %v2043, 0.0
    %v2047 = vsel %vm204, %v2044, 0.0
    %2048 = vrot.lane.b32.xlu0 %v2045, 1
    %v2049 = vpop.permute.xlu0 %2048
    %2050 = vrot.lane.b32.xlu0 %v2046, 1
    %v2051 = vpop.permute.xlu0 %2050
    %2052 = vrot.lane.b32.xlu0 %v2047, 1
    %v2053 = vpop.permute.xlu0 %2052
    %v2054 = vadd.f32 %v2045, %v2049
    %v2055 = vadd.f32 %v2046, %v2051
    %v2056 = vadd.f32 %v2047, %v2053
    %2057 = vrot.lane.b32.xlu0 %v2045, 127
    %v2058 = vpop.permute.xlu0 %2057
    %2059 = vrot.lane.b32.xlu0 %v2046, 127
    %v2060 = vpop.permute.xlu0 %2059
    %2061 = vrot.lane.b32.xlu0 %v2047, 127
    %v2062 = vpop.permute.xlu0 %2061
    %v2063 = vadd.f32 %v2054, %v2058
    %v2064 = vadd.f32 %v2055, %v2060
    %v2065 = vadd.f32 %v2056, %v2062
    %v2066 = vrot.slane %v2063, 7
    %v2067 = vrot.slane %v2064, 7
    %v2068 = vrot.slane %v2065, 7
    %v2069 = vsel %vm257, %v2067, %v2068
    %v2070 = vsel %vm257, %v2066, %v2067
    %v2071 = vsel %vm257, %v2068, %v2066
    %v2072 = vadd.f32 %v2063, %v2071
    %v2073 = vadd.f32 %v2064, %v2070
    %v2074 = vadd.f32 %v2065, %v2069
    %v2075 = vrot.slane %v2063, 1
    %v2076 = vrot.slane %v2064, 1
    %v2077 = vrot.slane %v2065, 1
    %v2078 = vsel %vm244, %v2076, %v2077
    %v2079 = vsel %vm244, %v2075, %v2076
    %v2080 = vsel %vm244, %v2077, %v2075
    %v2081 = vadd.f32 %v2072, %v2079
    %v2082 = vadd.f32 %v2073, %v2078
    %v2083 = vadd.f32 %v2074, %v2080
    %v2084 = vmul.f32 %v2045, 9.0
    %v2085 = vmul.f32 %v2046, 9.0
    %v2086 = vmul.f32 %v2047, 9.0
    %v2087 = vsub.f32 %v2081, %v2084
    %v2088 = vsub.f32 %v2082, %v2085
    %v2089 = vsub.f32 %v2083, %v2086
    %v2090 = vmul.f32 %v2087, 0.04
    %v2091 = vmul.f32 %v2088, 0.04
    %v2092 = vmul.f32 %v2089, 0.04
    %v2093 = vsub.f32 0.0, %v2090
    %v2094 = vsub.f32 0.0, %v2091
    %v2095 = vsub.f32 0.0, %v2092
    %v2096 = vmul.f32 %v1962, %v2042
    %v2097 = vmul.f32 %v1964, %v2043
    %v2098 = vmul.f32 %v1966, %v2044
    %v2099 = vadd.f32 %v2093, %v2096
    %v2100 = vadd.f32 %v2094, %v2097
    %v2101 = vadd.f32 %v2095, %v2098
    %v2102 = vmul.f32 %v2099, %v1971
    %v2103 = vmul.f32 %v2100, %v1973
    %v2104 = vmul.f32 %v2101, %v1975
    %v2105 = vsub.f32 %v2042, %v2102
    %v2106 = vsub.f32 %v2043, %v2103
    %v2107 = vsub.f32 %v2044, %v2104
    %v2108 = vadd.f32 %v2105, %v2039
    %v2109 = vadd.f32 %v2106, %v2040
    %v2110 = vadd.f32 %v2107, %v2041
    %v2111 = vadd.f32 %v214, %v2108
    %v2112 = vadd.f32 %v215, %v2109
    %v2113 = vadd.f32 %v216, %v2110
    %v2114 = vsub.f32 %v2111, %v214
    %v2115 = vsub.f32 %v2112, %v215
    %v2116 = vsub.f32 %v2113, %v216
    %v2117 = vsel %vm202, %v2108, 0.0
    %v2118 = vsel %vm203, %v2109, 0.0
    %v2119 = vsel %vm204, %v2110, 0.0
    %2120 = vrot.lane.b32.xlu0 %v2117, 127
    %v2121 = vpop.permute.xlu0 %2120
    %2122 = vrot.lane.b32.xlu0 %v2118, 127
    %v2123 = vpop.permute.xlu0 %2122
    %2124 = vrot.lane.b32.xlu0 %v2119, 127
    %v2125 = vpop.permute.xlu0 %2124
    %2126 = vrot.lane.b32.xlu0 %v2117, 1
    %v2127 = vpop.permute.xlu0 %2126
    %2128 = vrot.lane.b32.xlu0 %v2118, 1
    %v2129 = vpop.permute.xlu0 %2128
    %2130 = vrot.lane.b32.xlu0 %v2119, 1
    %v2131 = vpop.permute.xlu0 %2130
    %v2132 = vsub.f32 %v2121, %v2127
    %v2133 = vsub.f32 %v2123, %v2129
    %v2134 = vsub.f32 %v2125, %v2131
    %v2135 = vmul.f32 %v2132, 0.1
    %v2136 = vmul.f32 %v2133, 0.1
    %v2137 = vmul.f32 %v2134, 0.1
    %v2138 = vmul.f32 %v2135, 4.905
    %v2139 = vmul.f32 %v2136, 4.905
    %v2140 = vmul.f32 %v2137, 4.905
    %v2141 = vsub.f32 %v1550, %v2138
    %v2142 = vsub.f32 %v1551, %v2139
    %v2143 = vsub.f32 %v1552, %v2140
    %v2144 = vrot.slane %v2117, 1
    %v2145 = vrot.slane %v2118, 1
    %v2146 = vrot.slane %v2119, 1
    %v2147 = vsel %vm244, %v2145, %v2146
    %v2148 = vsel %vm244, %v2144, %v2145
    %v2149 = vsel %vm244, %v2146, %v2144
    %v2150 = vrot.slane %v2117, 7
    %v2151 = vrot.slane %v2118, 7
    %v2152 = vrot.slane %v2119, 7
    %v2153 = vsel %vm257, %v2151, %v2152
    %v2154 = vsel %vm257, %v2150, %v2151
    %v2155 = vsel %vm257, %v2152, %v2150
    %v2156 = vsub.f32 %v2148, %v2155
    %v2157 = vsub.f32 %v2147, %v2154
    %v2158 = vsub.f32 %v2149, %v2153
    %v2159 = vmul.f32 %v2156, 0.1
    %v2160 = vmul.f32 %v2157, 0.1
    %v2161 = vmul.f32 %v2158, 0.1
    %v2162 = vmul.f32 %v2159, 4.905
    %v2163 = vmul.f32 %v2160, 4.905
    %v2164 = vmul.f32 %v2161, 4.905
    %v2165 = vsub.f32 %v1553, %v2162
    %v2166 = vsub.f32 %v1554, %v2163
    %v2167 = vsub.f32 %v1555, %v2164
    %v2168 = vsel %vm202, %v2141, 0.0
    %v2169 = vsel %vm203, %v2142, 0.0
    %v2170 = vsel %vm204, %v2143, 0.0
    %2171 = vst [vmem:[#allocation19] sm:$0xff] %v2168
    %2172 = vst [vmem:[#allocation19 + $0x8] sm:$0xff] %v2169
    %2173 = vst [vmem:[#allocation19 + $0x10] sm:$0xff] %v2170
    %v2174 = vsel %vm202, %v2165, 0.0
    %v2175 = vsel %vm203, %v2166, 0.0
    %v2176 = vsel %vm204, %v2167, 0.0
    %2177 = vst [vmem:[#allocation20] sm:$0xff] %v2174
    %2178 = vst [vmem:[#allocation20 + $0x8] sm:$0xff] %v2175
    %2179 = vst [vmem:[#allocation20 + $0x10] sm:$0xff] %v2176
    %v2180 = vsel %vm202, %v2111, 0.0
    %v2181 = vsel %vm203, %v2112, 0.0
    %v2182 = vsel %vm204, %v2113, 0.0
    %2183 = vst [vmem:[#allocation22] sm:$0xff] %v2180
    %2184 = vst [vmem:[#allocation22 + $0x8] sm:$0xff] %v2181
    %2185 = vst [vmem:[#allocation22 + $0x10] sm:$0xff] %v2182
    %2186 = vst [vmem:[#allocation23] sm:$0xff] %v2117
    %2187 = vst [vmem:[#allocation23 + $0x8] sm:$0xff] %v2118
    %2188 = vst [vmem:[#allocation23 + $0x10] sm:$0xff] %v2119
    %v2189 = vsel %vm202, %v1956, 0.0
    %v2190 = vsel %vm203, %v1958, 0.0
    %v2191 = vsel %vm204, %v1960, 0.0
    %2192 = vst [vmem:[#allocation25] sm:$0xff] %v2189
    %2193 = vst [vmem:[#allocation25 + $0x8] sm:$0xff] %v2190
    %2194 = vst [vmem:[#allocation25 + $0x10] sm:$0xff] %v2191
    %v2195 = vsel %vm202, %v2114, 0.0
    %v2196 = vsel %vm203, %v2115, 0.0
    %v2197 = vsel %vm204, %v2116, 0.0
    %2198 = vst [vmem:[#allocation26] sm:$0xff] %v2195
    %2199 = vst [vmem:[#allocation26 + $0x8] sm:$0xff] %v2196
    %2200 = vst [vmem:[#allocation26 + $0x10] sm:$0xff] %v2197
    %v2201 = vsel %vm202, %v1538, 0.0
    %v2202 = vsel %vm203, %v1539, 0.0
    %v2203 = vsel %vm204, %v1540, 0.0
    %2204 = vst [vmem:[#allocation28] sm:$0xff] %v2201
    %2205 = vst [vmem:[#allocation28 + $0x8] sm:$0xff] %v2202
    %2206 = vst [vmem:[#allocation28 + $0x10] sm:$0xff] %v2203
    // Predicated region
    $region82: #{ai4swe_forward.1} parent=1 // pred_check
      _
    $region83: #{ai4swe_forward.1} parent=1 // pred_check_branch
      %2208 = sbr.rel (0) target = $region85
    $region84: #{ai4swe_forward.1} parent=1 // pred_region
      %s2210 = ssub.s32 384, 384
      %2211 = vsyncadd [#allocation4], %s2210
      %s2212 = sshll.u32 [#allocation19], 4
      %s2213 = int_to_ptr.vmem [resolvable:$true] %s2212
      %2218 = dma.vmem_to_hbm [thread:$0]  %s2213, 384, %s10, [#allocation4], 128, 128, 8
    $region85: #{ai4swe_forward.1} parent=1 // pred_fallthru
      _
    // Predicated region
    $region86: #{ai4swe_forward.1} parent=1 // pred_check
      _
    $region87: #{ai4swe_forward.1} parent=1 // pred_check_branch
      %2220 = sbr.rel (0) target = $region89
    $region88: #{ai4swe_forward.1} parent=1 // pred_region
      %s2222 = ssub.s32 384, 384
      %2223 = vsyncadd [#allocation21], %s2222
      %s2224 = sshll.u32 [#allocation20], 4
      %s2225 = int_to_ptr.vmem [resolvable:$true] %s2224
      %2230 = dma.vmem_to_hbm [thread:$0]  %s2225, 384, %s11, [#allocation21], 128, 128, 8
    $region89: #{ai4swe_forward.1} parent=1 // pred_fallthru
      _
    // Predicated region
    $region90: #{ai4swe_forward.1} parent=1 // pred_check
      _
    $region91: #{ai4swe_forward.1} parent=1 // pred_check_branch
      %2232 = sbr.rel (0) target = $region93
    $region92: #{ai4swe_forward.1} parent=1 // pred_region
      %s2234 = ssub.s32 384, 384
      %2235 = vsyncadd [#allocation21], %s2234
      %s2236 = sshll.u32 [#allocation22], 4
      %s2237 = int_to_ptr.vmem [resolvable:$true] %s2236
      %2242 = dma.vmem_to_hbm [thread:$0]  %s2237, 384, %s12, [#allocation21], 128, 128, 8
    $region93: #{ai4swe_forward.1} parent=1 // pred_fallthru
      _
    // Predicated region
    $region94: #{ai4swe_forward.1} parent=1 // pred_check
      _
    $region95: #{ai4swe_forward.1} parent=1 // pred_check_branch
      %2244 = sbr.rel (0) target = $region97
    $region96: #{ai4swe_forward.1} parent=1 // pred_region
      %s2246 = ssub.s32 384, 384
      %2247 = vsyncadd [#allocation24], %s2246
      %s2248 = sshll.u32 [#allocation23], 4
      %s2249 = int_to_ptr.vmem [resolvable:$true] %s2248
      %2254 = dma.vmem_to_hbm [thread:$0]  %s2249, 384, %s13, [#allocation24], 128, 128, 8
    $region97: #{ai4swe_forward.1} parent=1 // pred_fallthru
      _
    // Predicated region
    $region98: #{ai4swe_forward.1} parent=1 // pred_check
      _
    $region99: #{ai4swe_forward.1} parent=1 // pred_check_branch
      %2256 = sbr.rel (0) target = $region101
    $region100: #{ai4swe_forward.1} parent=1 // pred_region
      %s2258 = ssub.s32 384, 384
      %2259 = vsyncadd [#allocation24], %s2258
      %s2260 = sshll.u32 [#allocation25], 4
      %s2261 = int_to_ptr.vmem [resolvable:$true] %s2260
      %2266 = dma.vmem_to_hbm [thread:$0]  %s2261, 384, %s14, [#allocation24], 128, 128, 8
    $region101: #{ai4swe_forward.1} parent=1 // pred_fallthru
      _
    // Predicated region
    $region102: #{ai4swe_forward.1} parent=1 // pred_check
      _
    $region103: #{ai4swe_forward.1} parent=1 // pred_check_branch
      %2268 = sbr.rel (0) target = $region105
    $region104: #{ai4swe_forward.1} parent=1 // pred_region
      %s2270 = ssub.s32 384, 384
      %2271 = vsyncadd [#allocation27], %s2270
      %s2272 = sshll.u32 [#allocation26], 4
      %s2273 = int_to_ptr.vmem [resolvable:$true] %s2272
      %2278 = dma.vmem_to_hbm [thread:$0]  %s2273, 384, %s15, [#allocation27], 128, 128, 8
    $region105: #{ai4swe_forward.1} parent=1 // pred_fallthru
      _
    // Predicated region
    $region106: #{ai4swe_forward.1} parent=1 // pred_check
      _
    $region107: #{ai4swe_forward.1} parent=1 // pred_check_branch
      %2280 = sbr.rel (0) target = $region109
    $region108: #{ai4swe_forward.1} parent=1 // pred_region
      %s2282 = ssub.s32 384, 384
      %2283 = vsyncadd [#allocation27], %s2282
      %s2284 = sshll.u32 [#allocation28], 4
      %s2285 = int_to_ptr.vmem [resolvable:$true] %s2284
      %2290 = dma.vmem_to_hbm [thread:$0]  %s2285, 384, %s16, [#allocation27], 128, 128, 8
    $region109: #{ai4swe_forward.1} parent=1 // pred_fallthru
      _
    // Predicated region
    $region110: #{ai4swe_forward.1} parent=1 // pred_check
      _
    $region111: #{ai4swe_forward.1} parent=1 // pred_check_branch
      %2292 = sbr.rel (0) target = $region113
    $region112: #{ai4swe_forward.1} parent=1 // pred_region
      %2293 = dma.done [#allocation4], 384
    $region113: #{ai4swe_forward.1} parent=1 // pred_fallthru
      _
    // Predicated region
    $region114: #{ai4swe_forward.1} parent=1 // pred_check
      _
    $region115: #{ai4swe_forward.1} parent=1 // pred_check_branch
      %2295 = sbr.rel (0) target = $region117
    $region116: #{ai4swe_forward.1} parent=1 // pred_region
      %2296 = dma.done [#allocation21], 384
    $region117: #{ai4swe_forward.1} parent=1 // pred_fallthru
      _
    // Predicated region
    $region118: #{ai4swe_forward.1} parent=1 // pred_check
      _
    $region119: #{ai4swe_forward.1} parent=1 // pred_check_branch
      %2298 = sbr.rel (0) target = $region121
    $region120: #{ai4swe_forward.1} parent=1 // pred_region
      %2299 = dma.done [#allocation21], 384
    $region121: #{ai4swe_forward.1} parent=1 // pred_fallthru
      _
    // Predicated region
    $region122: #{ai4swe_forward.1} parent=1 // pred_check
      _
    $region123: #{ai4swe_forward.1} parent=1 // pred_check_branch
      %2301 = sbr.rel (0) target = $region125
    $region124: #{ai4swe_forward.1} parent=1 // pred_region
      %2302 = dma.done [#allocation24], 384
    $region125: #{ai4swe_forward.1} parent=1 // pred_fallthru
      _
    // Predicated region
    $region126: #{ai4swe_forward.1} parent=1 // pred_check
      _
    $region127: #{ai4swe_forward.1} parent=1 // pred_check_branch
      %2304 = sbr.rel (0) target = $region129
    $region128: #{ai4swe_forward.1} parent=1 // pred_region
      %2305 = dma.done [#allocation24], 384
    $region129: #{ai4swe_forward.1} parent=1 // pred_fallthru
      _
    // Predicated region
    $region130: #{ai4swe_forward.1} parent=1 // pred_check
      _
    $region131: #{ai4swe_forward.1} parent=1 // pred_check_branch
      %2307 = sbr.rel (0) target = $region133
    $region132: #{ai4swe_forward.1} parent=1 // pred_region
      %2308 = dma.done [#allocation27], 384
    $region133: #{ai4swe_forward.1} parent=1 // pred_fallthru
      _
    // Predicated region
    $region134: #{ai4swe_forward.1} parent=1 // pred_check
      _
    $region135: #{ai4swe_forward.1} parent=1 // pred_check_branch
      %2310 = sbr.rel (0) target = $region137
    $region136: #{ai4swe_forward.1} parent=1 // pred_region
      %2311 = dma.done [#allocation27], 384
    $region137: #{ai4swe_forward.1} parent=1 // pred_fallthru
      _
    %2312 = vsyncpa [#allocation3], 1
    %2313 = vsyncpa [#allocation6], 1
    %2314 = vsyncpa [#allocation9], 1
    %2315 = vsyncpa [#allocation12], 1
    %2316 = vsyncpa [#allocation15], 1
    %2317 = vsyncpa [#allocation18], 1
    %2318 = vsyncpa [#allocation4], 1
    %2319 = vsyncpa [#allocation21], 1
    %2320 = vsyncpa [#allocation24], 1
    %2321 = vsyncpa [#allocation27], 1

</llo_original>
